<compile_context>
chip_gen: v7x
topology: tpu7x:2x2x1
jax: 0.10.0
libtpu: 0.0.40
codegen_flags: <defaults>
</compile_context>

<pallas_src>
import functools

import numpy as np
import jax
import jax.numpy as jnp
from jax.experimental import pallas as pl
from jax.experimental.pallas import tpu as pltpu

# ------------------------- small Whisper-like dims -------------------------
N_MELS = 8
N_AUDIO_CTX = 8                 # encoder sequence length after the stride-2 conv
N_STATE = 32                    # n_audio_state == n_text_state
N_HEAD = 4
N_LAYER = 2
NUM_ACCENT_CLASSES = 2
MEL_LEN = 2 * N_AUDIO_CTX       # raw mel frames (conv2 has stride 2)

_INV_SQRT2 = float(1.0 / np.sqrt(2.0))


# ----------------------------- in-kernel helpers ----------------------------
def _gelu(x):
    # exact (erf) GELU, matching torch.nn.functional.gelu default
    return 0.5 * x * (1.0 + jax.lax.erf(x * _INV_SQRT2))


def _layernorm(x, g, b, eps=1e-5):
    mean = jnp.mean(x, axis=-1, keepdims=True)
    var = jnp.mean(jnp.square(x - mean), axis=-1, keepdims=True)
    return (x - mean) * jax.lax.rsqrt(var + eps) * g + b


def _softmax_rows(s):
    s = s - jnp.max(s, axis=-1, keepdims=True)
    p = jnp.exp(s)
    return p * pl.reciprocal(jnp.sum(p, axis=-1, keepdims=True), approx=True)


# ------------------------------ the fused kernel -----------------------------
def _fused_whisper_kernel(patches_ref, w_ref, out_ref, *,
                          offsets, seq, d, n_head, n_layer):
    hd = d // n_head

    def w(name):                       # full packed item (static ref slice)
        off, r, c = offsets[name]
        return w_ref[off:off + r, 0:c]

    def w_rows(name, r0, r1):          # sublane-aligned row block of a packed item
        off, _, c = offsets[name]
        return w_ref[off + r0:off + r1, 0:c]

    # ---- conv1 (k=3, s=1, p=1) + GELU: one im2col matmul ----
    patches = patches_ref[0]                                         # (L, 3*n_mels)
    h = _gelu(jnp.dot(patches, w("c1w"),
                      preferred_element_type=jnp.float32) + w("c1b"))   # (L, d)

    # ---- conv2 (k=3, s=2, p=1) + GELU ----
    # One stacked 0/1 selector matmul gathers all three stride-2 taps (rows j*seq+t
    # hold h[2t+j-1] or zero padding), then three sublane-sliced weight matmuls.
    taps = jnp.dot(w("sel"), h, preferred_element_type=jnp.float32)  # (3*seq, d)
    acc = jnp.zeros((seq, d), jnp.float32)
    for j in range(3):
        acc = acc + jnp.dot(taps[j * seq:(j + 1) * seq, :],
                            w_rows("c2w", j * d, (j + 1) * d),
                            preferred_element_type=jnp.float32)
    x = _gelu(acc + w("c2b")) + w("pos")                              # (seq, d)

    # ---- transformer encoder blocks (all activations stay in VMEM/vregs) ----
    for l in range(n_layer):
        # multi-head self-attention (pre-LN, fused QKV, scale folded into weights)
        hln = _layernorm(x, w(f"ln1_g{l}"), w(f"ln1_b{l}"))
        qkv = jnp.dot(hln, w(f"qkv_w{l}"),
                      preferred_element_type=jnp.float32) + w(f"qkv_b{l}")   # (seq, 3d)
        kT = qkv[:, d:2 * d].T                       # single K transpose per layer
        attn = jnp.zeros((seq, d), jnp.float32)
        for hh in range(n_head):
            c0 = hh * hd
            s = jnp.dot(qkv[:, c0:c0 + hd], kT[c0:c0 + hd, :],
                        preferred_element_type=jnp.float32)          # (seq, seq)
            p = _softmax_rows(s)
            ctx = jnp.dot(p, qkv[:, 2 * d + c0:2 * d + c0 + hd],
                          preferred_element_type=jnp.float32)        # (seq, hd)
            # merge heads through out_w row blocks (sublane slice) instead of concat
            attn = attn + jnp.dot(ctx, w_rows(f"out_w{l}", c0, c0 + hd),
                                  preferred_element_type=jnp.float32)
        x = x + attn + w(f"out_b{l}")

        # MLP
        hln = _layernorm(x, w(f"ln2_g{l}"), w(f"ln2_b{l}"))
        mid = _gelu(jnp.dot(hln, w(f"fc1_w{l}"),
                            preferred_element_type=jnp.float32) + w(f"fc1_b{l}"))
        x = x + jnp.dot(mid, w(f"fc2_w{l}"),
                        preferred_element_type=jnp.float32) + w(f"fc2_b{l}")

    # ---- final LayerNorm, mean-pool over time, accent classifier ----
    x = _layernorm(x, w("lnp_g"), w("lnp_b"))
    pooled = jnp.mean(x, axis=0, keepdims=True)                       # (1, d)
    logits = jnp.dot(pooled, w("cls_w"),
                     preferred_element_type=jnp.float32) + w("cls_b")  # (1, classes)
    out_ref[0] = logits.astype(out_ref.dtype)


# ------------------------------ wrapper / glue -------------------------------
def _conv2_tap_selectors(mel_len, seq):
    """Stacked 0/1 selector (3*seq, mel_len): row j*seq+t picks h[2t+j-1] (zero row =
    left padding) — the tap gather for a k=3, stride=2, pad=1 Conv1d."""
    sel = np.zeros((3 * seq, mel_len), np.float32)
    for j in range(3):
        for t in range(seq):
            src = 2 * t + j - 1
            if 0 <= src < mel_len:
                sel[j * seq + t, src] = 1.0
    return jnp.asarray(sel)


def _pack_slab(items):
    """Pack (name, array) items into one lane-dense (rows, 128) f32 slab.
    Each item is zero-padded to a multiple of 8 rows and to 128 lanes; returns the
    slab, a name -> (row_offset, rows, cols) dict of static offsets, and total rows."""
    blocks, offsets, off = [], {}, 0
    for name, arr in items:
        arr = jnp.asarray(arr, jnp.float32)
        if arr.ndim == 1:
            arr = arr.reshape(1, -1)
        r, c = arr.shape
        rp = ((r + 7) // 8) * 8
        blocks.append(jnp.pad(arr, ((0, rp - r), (0, 128 - c))))
        offsets[name] = (off, r, c)
        off += rp
    return jnp.concatenate(blocks, axis=0), offsets, off


def modified_whisper_forward(params, mel, tokens):
    # `tokens` is accepted (as in the PyTorch forward) but unused: only the audio
    # encoder output is mean-pooled and classified.
    del tokens
    B, n_mels, L = mel.shape
    D = N_STATE
    T = L // 2                                   # encoder context after stride-2 conv
    n_layer = len(params["blocks"])
    hd = D // N_HEAD
    scale = float(hd) ** -0.25

    # ---------- host-side layout glue: conv1 im2col of the raw mel ----------
    x = jnp.transpose(mel, (0, 2, 1))                           # NCL -> (B, L, n_mels)
    xp = jnp.pad(x, ((0, 0), (1, 1), (0, 0)))
    patches = jnp.concatenate([xp[:, j:j + L, :] for j in range(3)], axis=-1)
    # (B, L, 3*n_mels)

    # ---------- host-side parameter packing into ONE lane-dense slab ----------
    items = [
        ("c1w", jnp.transpose(params["conv1_w"], (2, 1, 0)).reshape(3 * n_mels, D)),
        ("c1b", params["conv1_b"]),
        ("sel", _conv2_tap_selectors(L, T)),
        ("c2w", jnp.transpose(params["conv2_w"], (2, 1, 0)).reshape(3 * D, D)),
        ("c2b", params["conv2_b"]),
        ("pos", params["pos_emb"]),
    ]
    for l, blk in enumerate(params["blocks"]):
        # fold the hd**-0.25 attention scale into Q/K weights & biases (k_b == 0)
        qkv_w = jnp.concatenate(
            [blk["q_w"] * scale, blk["k_w"] * scale, blk["v_w"]], axis=1)   # (D, 3D)
        qkv_b = jnp.concatenate(
            [blk["q_b"] * scale, blk["k_b"] * scale, blk["v_b"]])           # (3D,)
        items += [
            (f"ln1_g{l}", blk["attn_ln_g"]), (f"ln1_b{l}", blk["attn_ln_b"]),
            (f"qkv_w{l}", qkv_w), (f"qkv_b{l}", qkv_b),
            (f"out_w{l}", blk["out_w"]), (f"out_b{l}", blk["out_b"]),
            (f"ln2_g{l}", blk["mlp_ln_g"]), (f"ln2_b{l}", blk["mlp_ln_b"]),
            (f"fc1_w{l}", blk["fc1_w"]), (f"fc1_b{l}", blk["fc1_b"]),
            (f"fc2_w{l}", blk["fc2_w"]), (f"fc2_b{l}", blk["fc2_b"]),
        ]
    items += [("lnp_g", params["ln_post_g"]), ("lnp_b", params["ln_post_b"]),
              ("cls_w", params["cls_w"]), ("cls_b", params["cls_b"])]

    wslab, offsets, total_rows = _pack_slab(items)

    kernel = functools.partial(
        _fused_whisper_kernel,
        offsets=offsets, seq=T, d=D, n_head=N_HEAD, n_layer=n_layer)

    out = pl.pallas_call(
        kernel,
        grid=(B,),                                              # one batch element / step
        in_specs=[
            pl.BlockSpec((1, L, 3 * n_mels), lambda b: (b, 0, 0)),   # per-batch patches
            pl.BlockSpec((total_rows, 128), lambda b: (0, 0)),       # weights: fetched once
        ],
        out_specs=pl.BlockSpec((1, 1, NUM_ACCENT_CLASSES), lambda b: (b, 0, 0)),
        out_shape=jax.ShapeDtypeStruct((B, 1, NUM_ACCENT_CLASSES), jnp.float32),
        compiler_params=pltpu.CompilerParams(
            dimension_semantics=("parallel",)),                 # both TCs on v7x
    )(patches, wslab)
    return out.reshape(B, NUM_ACCENT_CLASSES)


# ------------------------------ parameter init ------------------------------
def sinusoids(length, channels, max_timescale=10000):
    log_timescale_increment = np.log(max_timescale) / (channels // 2 - 1)
    inv_timescales = jnp.exp(-log_timescale_increment *
                             jnp.arange(channels // 2, dtype=jnp.float32))
    scaled_time = jnp.arange(length, dtype=jnp.float32)[:, None] * inv_timescales[None, :]
    return jnp.concatenate([jnp.sin(scaled_time), jnp.cos(scaled_time)], axis=1)


def init_params(key):
    keys = iter(jax.random.split(key, 128))

    def w(shape, scale=0.02):
        return scale * jax.random.normal(next(keys), shape, dtype=jnp.float32)

    params = {
        "conv1_w": w((N_STATE, N_MELS, 3)),
        "conv1_b": w((N_STATE,)),
        "conv2_w": w((N_STATE, N_STATE, 3)),
        "conv2_b": w((N_STATE,)),
        "pos_emb": sinusoids(N_AUDIO_CTX, N_STATE),
        "ln_post_g": jnp.ones((N_STATE,), jnp.float32),
        "ln_post_b": jnp.zeros((N_STATE,), jnp.float32),
        "cls_w": w((N_STATE, NUM_ACCENT_CLASSES)),
        "cls_b": jnp.zeros((NUM_ACCENT_CLASSES,), jnp.float32),
        "blocks": [],
    }
    for _ in range(N_LAYER):
        params["blocks"].append({
            "attn_ln_g": jnp.ones((N_STATE,), jnp.float32),
            "attn_ln_b": jnp.zeros((N_STATE,), jnp.float32),
            "q_w": w((N_STATE, N_STATE)), "q_b": w((N_STATE,)),
            "k_w": w((N_STATE, N_STATE)),
            "k_b": jnp.zeros((N_STATE,), jnp.float32),   # Whisper key proj has no bias
            "v_w": w((N_STATE, N_STATE)), "v_b": w((N_STATE,)),
            "out_w": w((N_STATE, N_STATE)), "out_b": w((N_STATE,)),
            "mlp_ln_g": jnp.ones((N_STATE,), jnp.float32),
            "mlp_ln_b": jnp.zeros((N_STATE,), jnp.float32),
            "fc1_w": w((N_STATE, 4 * N_STATE)), "fc1_b": w((4 * N_STATE,)),
            "fc2_w": w((4 * N_STATE, N_STATE)), "fc2_b": w((N_STATE,)),
        })
    return params


# ----------------------------------- main -----------------------------------
if __name__ == "__main__":
    key = jax.random.PRNGKey(0)
    pkey, mkey, tkey = jax.random.split(key, 3)
    params = init_params(pkey)
    mel = jax.random.normal(mkey, (2, N_MELS, MEL_LEN), dtype=jnp.float32)   # (B, n_mels, L)
    tokens = jax.random.randint(tkey, (2, 4), 0, 100)                        # unused by forward

    out = jax.jit(modified_whisper_forward)(params, mel, tokens)
    out = jax.block_until_ready(out)
    assert out.shape == (2, NUM_ACCENT_CLASSES) and out.dtype == jnp.float32
    assert bool(jnp.all(jnp.isfinite(out)))
    print("KERNEL_OK")
</pallas_src>

<mosaic_0001>
module attributes {stable_mosaic.version = 11 : i64} {
  func.func @_fused_whisper_kernel(%arg0: i32, %arg1: memref<1x16x24xf32, #tpu.memory_space<vmem>>, %arg2: memref<800x128xf32, #tpu.memory_space<vmem>>, %arg3: memref<1x1x2xf32, #tpu.memory_space<vmem>>) attributes {dimension_semantics = [#tpu.dimension_semantics<parallel>], iteration_bounds = array<i64: 2>, scalar_prefetch = 0 : i64, scratch_operands = 0 : i64, tpu.core_type = #tpu.core_type<tc>, window_params = [{transform_indices = @transform_0, window_bounds = array<i64: 1, 16, 24>}, {pipeline_mode = #tpu.pipeline_mode<synchronous>, transform_indices = @transform_1, window_bounds = array<i64: 800, 128>}, {transform_indices = @transform_2, window_bounds = array<i64: 1, 1, 2>}]} {
    %c0 = arith.constant 0 : index
    %c0_0 = arith.constant 0 : index
    %c0_1 = arith.constant 0 : index
    %0 = vector.load %arg1[%c0, %c0_0, %c0_1] : memref<1x16x24xf32, #tpu.memory_space<vmem>>, vector<1x16x24xf32>
    %1 = vector.shape_cast %0 : vector<1x16x24xf32> to vector<16x24xf32>
    %c0_2 = arith.constant 0 : index
    %c0_3 = arith.constant 0 : index
    %2 = vector.load %arg2[%c0_2, %c0_3] : memref<800x128xf32, #tpu.memory_space<vmem>>, vector<24x32xf32>
    %cst = arith.constant dense<0.000000e+00> : vector<16x32xf32>
    %3 = tpu.matmul %1, %2, %cst {dimension_numbers = #tpu.dot_dimension_numbers<[1], [0], [0], [1], [0, 0, 1, 1], [], []>} : vector<16x24xf32>, vector<24x32xf32>, vector<16x32xf32> -> vector<16x32xf32>
    %c24 = arith.constant 24 : index
    %c0_4 = arith.constant 0 : index
    %4 = vector.load %arg2[%c24, %c0_4] : memref<800x128xf32, #tpu.memory_space<vmem>>, vector<1x32xf32>
    %5 = vector.broadcast %4 : vector<1x32xf32> to vector<16x32xf32>
    %6 = arith.addf %3, %5 : vector<16x32xf32>
    %cst_5 = arith.constant 5.000000e-01 : f32
    %7 = vector.broadcast %cst_5 : f32 to vector<16x32xf32>
    %8 = arith.mulf %7, %6 : vector<16x32xf32>
    %cst_6 = arith.constant 0.707106769 : f32
    %9 = vector.broadcast %cst_6 : f32 to vector<16x32xf32>
    %10 = arith.mulf %6, %9 : vector<16x32xf32>
    %11 = math.erf %10 : vector<16x32xf32>
    %cst_7 = arith.constant 1.000000e+00 : f32
    %12 = vector.broadcast %cst_7 : f32 to vector<16x32xf32>
    %13 = arith.addf %12, %11 : vector<16x32xf32>
    %14 = arith.mulf %8, %13 : vector<16x32xf32>
    %c32 = arith.constant 32 : index
    %c0_8 = arith.constant 0 : index
    %15 = vector.load %arg2[%c32, %c0_8] : memref<800x128xf32, #tpu.memory_space<vmem>>, vector<24x16xf32>
    %cst_9 = arith.constant dense<0.000000e+00> : vector<24x32xf32>
    %16 = tpu.matmul %15, %14, %cst_9 {dimension_numbers = #tpu.dot_dimension_numbers<[1], [0], [0], [1], [0, 0, 1, 1], [], []>} : vector<24x16xf32>, vector<16x32xf32>, vector<24x32xf32> -> vector<24x32xf32>
    %cst_10 = arith.constant 0.000000e+00 : f32
    %17 = vector.broadcast %cst_10 : f32 to vector<8x32xf32>
    %18 = vector.extract_strided_slice %16 {offsets = [0, 0], sizes = [8, 32], strides = [1, 1]} : vector<24x32xf32> to vector<8x32xf32>
    %c56 = arith.constant 56 : index
    %c0_11 = arith.constant 0 : index
    %19 = vector.load %arg2[%c56, %c0_11] : memref<800x128xf32, #tpu.memory_space<vmem>>, vector<32x32xf32>
    %cst_12 = arith.constant dense<0.000000e+00> : vector<8x32xf32>
    %20 = tpu.matmul %18, %19, %cst_12 {dimension_numbers = #tpu.dot_dimension_numbers<[1], [0], [0], [1], [0, 0, 1, 1], [], []>} : vector<8x32xf32>, vector<32x32xf32>, vector<8x32xf32> -> vector<8x32xf32>
    %21 = arith.addf %17, %20 : vector<8x32xf32>
    %22 = vector.extract_strided_slice %16 {offsets = [8, 0], sizes = [8, 32], strides = [1, 1]} : vector<24x32xf32> to vector<8x32xf32>
    %c88 = arith.constant 88 : index
    %c0_13 = arith.constant 0 : index
    %23 = vector.load %arg2[%c88, %c0_13] : memref<800x128xf32, #tpu.memory_space<vmem>>, vector<32x32xf32>
    %cst_14 = arith.constant dense<0.000000e+00> : vector<8x32xf32>
    %24 = tpu.matmul %22, %23, %cst_14 {dimension_numbers = #tpu.dot_dimension_numbers<[1], [0], [0], [1], [0, 0, 1, 1], [], []>} : vector<8x32xf32>, vector<32x32xf32>, vector<8x32xf32> -> vector<8x32xf32>
    %25 = arith.addf %21, %24 : vector<8x32xf32>
    %26 = vector.extract_strided_slice %16 {offsets = [16, 0], sizes = [8, 32], strides = [1, 1]} : vector<24x32xf32> to vector<8x32xf32>
    %c120 = arith.constant 120 : index
    %c0_15 = arith.constant 0 : index
    %27 = vector.load %arg2[%c120, %c0_15] : memref<800x128xf32, #tpu.memory_space<vmem>>, vector<32x32xf32>
    %cst_16 = arith.constant dense<0.000000e+00> : vector<8x32xf32>
    %28 = tpu.matmul %26, %27, %cst_16 {dimension_numbers = #tpu.dot_dimension_numbers<[1], [0], [0], [1], [0, 0, 1, 1], [], []>} : vector<8x32xf32>, vector<32x32xf32>, vector<8x32xf32> -> vector<8x32xf32>
    %29 = arith.addf %25, %28 : vector<8x32xf32>
    %c152 = arith.constant 152 : index
    %c0_17 = arith.constant 0 : index
    %30 = vector.load %arg2[%c152, %c0_17] : memref<800x128xf32, #tpu.memory_space<vmem>>, vector<1x32xf32>
    %31 = vector.broadcast %30 : vector<1x32xf32> to vector<8x32xf32>
    %32 = arith.addf %29, %31 : vector<8x32xf32>
    %cst_18 = arith.constant 5.000000e-01 : f32
    %33 = vector.broadcast %cst_18 : f32 to vector<8x32xf32>
    %34 = arith.mulf %33, %32 : vector<8x32xf32>
    %cst_19 = arith.constant 0.707106769 : f32
    %35 = vector.broadcast %cst_19 : f32 to vector<8x32xf32>
    %36 = arith.mulf %32, %35 : vector<8x32xf32>
    %37 = math.erf %36 : vector<8x32xf32>
    %cst_20 = arith.constant 1.000000e+00 : f32
    %38 = vector.broadcast %cst_20 : f32 to vector<8x32xf32>
    %39 = arith.addf %38, %37 : vector<8x32xf32>
    %40 = arith.mulf %34, %39 : vector<8x32xf32>
    %c160 = arith.constant 160 : index
    %c0_21 = arith.constant 0 : index
    %41 = vector.load %arg2[%c160, %c0_21] : memref<800x128xf32, #tpu.memory_space<vmem>>, vector<8x32xf32>
    %42 = arith.addf %40, %41 : vector<8x32xf32>
    %c168 = arith.constant 168 : index
    %c0_22 = arith.constant 0 : index
    %43 = vector.load %arg2[%c168, %c0_22] : memref<800x128xf32, #tpu.memory_space<vmem>>, vector<1x32xf32>
    %c176 = arith.constant 176 : index
    %c0_23 = arith.constant 0 : index
    %44 = vector.load %arg2[%c176, %c0_23] : memref<800x128xf32, #tpu.memory_space<vmem>>, vector<1x32xf32>
    %cst_24 = arith.constant dense<0.000000e+00> : vector<8xf32>
    %45 = vector.multi_reduction <add>, %42, %cst_24 [1] : vector<8x32xf32> to vector<8xf32>
    %46 = vector.shape_cast %45 : vector<8xf32> to vector<8x1xf32>
    %cst_25 = arith.constant 3.200000e+01 : f32
    %47 = vector.broadcast %cst_25 : f32 to vector<8x1xf32>
    %48 = arith.divf %46, %47 : vector<8x1xf32>
    %49 = vector.broadcast %48 : vector<8x1xf32> to vector<8x32xf32>
    %50 = arith.subf %42, %49 : vector<8x32xf32>
    %51 = arith.mulf %50, %50 : vector<8x32xf32>
    %cst_26 = arith.constant dense<0.000000e+00> : vector<8xf32>
    %52 = vector.multi_reduction <add>, %51, %cst_26 [1] : vector<8x32xf32> to vector<8xf32>
    %53 = vector.shape_cast %52 : vector<8xf32> to vector<8x1xf32>
    %cst_27 = arith.constant 3.200000e+01 : f32
    %54 = vector.broadcast %cst_27 : f32 to vector<8x1xf32>
    %55 = arith.divf %53, %54 : vector<8x1xf32>
    %56 = vector.broadcast %48 : vector<8x1xf32> to vector<8x32xf32>
    %57 = arith.subf %42, %56 : vector<8x32xf32>
    %cst_28 = arith.constant 9.99999974E-6 : f32
    %58 = vector.broadcast %cst_28 : f32 to vector<8x1xf32>
    %59 = arith.addf %55, %58 : vector<8x1xf32>
    %60 = math.rsqrt %59 : vector<8x1xf32>
    %61 = vector.broadcast %60 : vector<8x1xf32> to vector<8x32xf32>
    %62 = arith.mulf %57, %61 : vector<8x32xf32>
    %63 = vector.broadcast %43 : vector<1x32xf32> to vector<8x32xf32>
    %64 = arith.mulf %62, %63 : vector<8x32xf32>
    %65 = vector.broadcast %44 : vector<1x32xf32> to vector<8x32xf32>
    %66 = arith.addf %64, %65 : vector<8x32xf32>
    %c184 = arith.constant 184 : index
    %c0_29 = arith.constant 0 : index
    %67 = vector.load %arg2[%c184, %c0_29] : memref<800x128xf32, #tpu.memory_space<vmem>>, vector<32x96xf32>
    %cst_30 = arith.constant dense<0.000000e+00> : vector<8x96xf32>
    %68 = tpu.matmul %66, %67, %cst_30 {dimension_numbers = #tpu.dot_dimension_numbers<[1], [0], [0], [1], [0, 0, 1, 1], [], []>} : vector<8x32xf32>, vector<32x96xf32>, vector<8x96xf32> -> vector<8x96xf32>
    %c216 = arith.constant 216 : index
    %c0_31 = arith.constant 0 : index
    %69 = vector.load %arg2[%c216, %c0_31] : memref<800x128xf32, #tpu.memory_space<vmem>>, vector<1x96xf32>
    %70 = vector.broadcast %69 : vector<1x96xf32> to vector<8x96xf32>
    %71 = arith.addf %68, %70 : vector<8x96xf32>
    %72 = vector.extract_strided_slice %71 {offsets = [0, 32], sizes = [8, 32], strides = [1, 1]} : vector<8x96xf32> to vector<8x32xf32>
    %73 = tpu.transpose %72, [1, 0] : vector<8x32xf32> -> vector<32x8xf32>
    %cst_32 = arith.constant 0.000000e+00 : f32
    %74 = vector.broadcast %cst_32 : f32 to vector<8x32xf32>
    %75 = vector.extract_strided_slice %71 {offsets = [0, 0], sizes = [8, 8], strides = [1, 1]} : vector<8x96xf32> to vector<8x8xf32>
    %76 = vector.extract_strided_slice %73 {offsets = [0, 0], sizes = [8, 8], strides = [1, 1]} : vector<32x8xf32> to vector<8x8xf32>
    %cst_33 = arith.constant dense<0.000000e+00> : vector<8x8xf32>
    %77 = tpu.matmul %75, %76, %cst_33 {dimension_numbers = #tpu.dot_dimension_numbers<[1], [0], [0], [1], [0, 0, 1, 1], [], []>} : vector<8x8xf32>, vector<8x8xf32>, vector<8x8xf32> -> vector<8x8xf32>
    %cst_34 = arith.constant dense<0xFF800000> : vector<8xf32>
    %78 = vector.multi_reduction <maximumf>, %77, %cst_34 [1] : vector<8x8xf32> to vector<8xf32>
    %79 = vector.shape_cast %78 : vector<8xf32> to vector<8x1xf32>
    %80 = vector.broadcast %79 : vector<8x1xf32> to vector<8x8xf32>
    %81 = arith.subf %77, %80 : vector<8x8xf32>
    %82 = math.exp %81 : vector<8x8xf32>
    %cst_35 = arith.constant dense<0.000000e+00> : vector<8xf32>
    %83 = vector.multi_reduction <add>, %82, %cst_35 [1] : vector<8x8xf32> to vector<8xf32>
    %84 = vector.shape_cast %83 : vector<8xf32> to vector<8x1xf32>
    %85 = tpu.reciprocal %84 {approx = true} : vector<8x1xf32> -> vector<8x1xf32>
    %86 = vector.broadcast %85 : vector<8x1xf32> to vector<8x8xf32>
    %87 = arith.mulf %82, %86 : vector<8x8xf32>
    %88 = vector.extract_strided_slice %71 {offsets = [0, 64], sizes = [8, 8], strides = [1, 1]} : vector<8x96xf32> to vector<8x8xf32>
    %cst_36 = arith.constant dense<0.000000e+00> : vector<8x8xf32>
    %89 = tpu.matmul %87, %88, %cst_36 {dimension_numbers = #tpu.dot_dimension_numbers<[1], [0], [0], [1], [0, 0, 1, 1], [], []>} : vector<8x8xf32>, vector<8x8xf32>, vector<8x8xf32> -> vector<8x8xf32>
    %c224 = arith.constant 224 : index
    %c0_37 = arith.constant 0 : index
    %90 = vector.load %arg2[%c224, %c0_37] : memref<800x128xf32, #tpu.memory_space<vmem>>, vector<8x32xf32>
    %cst_38 = arith.constant dense<0.000000e+00> : vector<8x32xf32>
    %91 = tpu.matmul %89, %90, %cst_38 {dimension_numbers = #tpu.dot_dimension_numbers<[1], [0], [0], [1], [0, 0, 1, 1], [], []>} : vector<8x8xf32>, vector<8x32xf32>, vector<8x32xf32> -> vector<8x32xf32>
    %92 = arith.addf %74, %91 : vector<8x32xf32>
    %93 = vector.extract_strided_slice %71 {offsets = [0, 8], sizes = [8, 8], strides = [1, 1]} : vector<8x96xf32> to vector<8x8xf32>
    %94 = vector.extract_strided_slice %73 {offsets = [8, 0], sizes = [8, 8], strides = [1, 1]} : vector<32x8xf32> to vector<8x8xf32>
    %cst_39 = arith.constant dense<0.000000e+00> : vector<8x8xf32>
    %95 = tpu.matmul %93, %94, %cst_39 {dimension_numbers = #tpu.dot_dimension_numbers<[1], [0], [0], [1], [0, 0, 1, 1], [], []>} : vector<8x8xf32>, vector<8x8xf32>, vector<8x8xf32> -> vector<8x8xf32>
    %cst_40 = arith.constant dense<0xFF800000> : vector<8xf32>
    %96 = vector.multi_reduction <maximumf>, %95, %cst_40 [1] : vector<8x8xf32> to vector<8xf32>
    %97 = vector.shape_cast %96 : vector<8xf32> to vector<8x1xf32>
    %98 = vector.broadcast %97 : vector<8x1xf32> to vector<8x8xf32>
    %99 = arith.subf %95, %98 : vector<8x8xf32>
    %100 = math.exp %99 : vector<8x8xf32>
    %cst_41 = arith.constant dense<0.000000e+00> : vector<8xf32>
    %101 = vector.multi_reduction <add>, %100, %cst_41 [1] : vector<8x8xf32> to vector<8xf32>
    %102 = vector.shape_cast %101 : vector<8xf32> to vector<8x1xf32>
    %103 = tpu.reciprocal %102 {approx = true} : vector<8x1xf32> -> vector<8x1xf32>
    %104 = vector.broadcast %103 : vector<8x1xf32> to vector<8x8xf32>
    %105 = arith.mulf %100, %104 : vector<8x8xf32>
    %106 = vector.extract_strided_slice %71 {offsets = [0, 72], sizes = [8, 8], strides = [1, 1]} : vector<8x96xf32> to vector<8x8xf32>
    %cst_42 = arith.constant dense<0.000000e+00> : vector<8x8xf32>
    %107 = tpu.matmul %105, %106, %cst_42 {dimension_numbers = #tpu.dot_dimension_numbers<[1], [0], [0], [1], [0, 0, 1, 1], [], []>} : vector<8x8xf32>, vector<8x8xf32>, vector<8x8xf32> -> vector<8x8xf32>
    %c232 = arith.constant 232 : index
    %c0_43 = arith.constant 0 : index
    %108 = vector.load %arg2[%c232, %c0_43] : memref<800x128xf32, #tpu.memory_space<vmem>>, vector<8x32xf32>
    %cst_44 = arith.constant dense<0.000000e+00> : vector<8x32xf32>
    %109 = tpu.matmul %107, %108, %cst_44 {dimension_numbers = #tpu.dot_dimension_numbers<[1], [0], [0], [1], [0, 0, 1, 1], [], []>} : vector<8x8xf32>, vector<8x32xf32>, vector<8x32xf32> -> vector<8x32xf32>
    %110 = arith.addf %92, %109 : vector<8x32xf32>
    %111 = vector.extract_strided_slice %71 {offsets = [0, 16], sizes = [8, 8], strides = [1, 1]} : vector<8x96xf32> to vector<8x8xf32>
    %112 = vector.extract_strided_slice %73 {offsets = [16, 0], sizes = [8, 8], strides = [1, 1]} : vector<32x8xf32> to vector<8x8xf32>
    %cst_45 = arith.constant dense<0.000000e+00> : vector<8x8xf32>
    %113 = tpu.matmul %111, %112, %cst_45 {dimension_numbers = #tpu.dot_dimension_numbers<[1], [0], [0], [1], [0, 0, 1, 1], [], []>} : vector<8x8xf32>, vector<8x8xf32>, vector<8x8xf32> -> vector<8x8xf32>
    %cst_46 = arith.constant dense<0xFF800000> : vector<8xf32>
    %114 = vector.multi_reduction <maximumf>, %113, %cst_46 [1] : vector<8x8xf32> to vector<8xf32>
    %115 = vector.shape_cast %114 : vector<8xf32> to vector<8x1xf32>
    %116 = vector.broadcast %115 : vector<8x1xf32> to vector<8x8xf32>
    %117 = arith.subf %113, %116 : vector<8x8xf32>
    %118 = math.exp %117 : vector<8x8xf32>
    %cst_47 = arith.constant dense<0.000000e+00> : vector<8xf32>
    %119 = vector.multi_reduction <add>, %118, %cst_47 [1] : vector<8x8xf32> to vector<8xf32>
    %120 = vector.shape_cast %119 : vector<8xf32> to vector<8x1xf32>
    %121 = tpu.reciprocal %120 {approx = true} : vector<8x1xf32> -> vector<8x1xf32>
    %122 = vector.broadcast %121 : vector<8x1xf32> to vector<8x8xf32>
    %123 = arith.mulf %118, %122 : vector<8x8xf32>
    %124 = vector.extract_strided_slice %71 {offsets = [0, 80], sizes = [8, 8], strides = [1, 1]} : vector<8x96xf32> to vector<8x8xf32>
    %cst_48 = arith.constant dense<0.000000e+00> : vector<8x8xf32>
    %125 = tpu.matmul %123, %124, %cst_48 {dimension_numbers = #tpu.dot_dimension_numbers<[1], [0], [0], [1], [0, 0, 1, 1], [], []>} : vector<8x8xf32>, vector<8x8xf32>, vector<8x8xf32> -> vector<8x8xf32>
    %c240 = arith.constant 240 : index
    %c0_49 = arith.constant 0 : index
    %126 = vector.load %arg2[%c240, %c0_49] : memref<800x128xf32, #tpu.memory_space<vmem>>, vector<8x32xf32>
    %cst_50 = arith.constant dense<0.000000e+00> : vector<8x32xf32>
    %127 = tpu.matmul %125, %126, %cst_50 {dimension_numbers = #tpu.dot_dimension_numbers<[1], [0], [0], [1], [0, 0, 1, 1], [], []>} : vector<8x8xf32>, vector<8x32xf32>, vector<8x32xf32> -> vector<8x32xf32>
    %128 = arith.addf %110, %127 : vector<8x32xf32>
    %129 = vector.extract_strided_slice %71 {offsets = [0, 24], sizes = [8, 8], strides = [1, 1]} : vector<8x96xf32> to vector<8x8xf32>
    %130 = vector.extract_strided_slice %73 {offsets = [24, 0], sizes = [8, 8], strides = [1, 1]} : vector<32x8xf32> to vector<8x8xf32>
    %cst_51 = arith.constant dense<0.000000e+00> : vector<8x8xf32>
    %131 = tpu.matmul %129, %130, %cst_51 {dimension_numbers = #tpu.dot_dimension_numbers<[1], [0], [0], [1], [0, 0, 1, 1], [], []>} : vector<8x8xf32>, vector<8x8xf32>, vector<8x8xf32> -> vector<8x8xf32>
    %cst_52 = arith.constant dense<0xFF800000> : vector<8xf32>
    %132 = vector.multi_reduction <maximumf>, %131, %cst_52 [1] : vector<8x8xf32> to vector<8xf32>
    %133 = vector.shape_cast %132 : vector<8xf32> to vector<8x1xf32>
    %134 = vector.broadcast %133 : vector<8x1xf32> to vector<8x8xf32>
    %135 = arith.subf %131, %134 : vector<8x8xf32>
    %136 = math.exp %135 : vector<8x8xf32>
    %cst_53 = arith.constant dense<0.000000e+00> : vector<8xf32>
    %137 = vector.multi_reduction <add>, %136, %cst_53 [1] : vector<8x8xf32> to vector<8xf32>
    %138 = vector.shape_cast %137 : vector<8xf32> to vector<8x1xf32>
    %139 = tpu.reciprocal %138 {approx = true} : vector<8x1xf32> -> vector<8x1xf32>
    %140 = vector.broadcast %139 : vector<8x1xf32> to vector<8x8xf32>
    %141 = arith.mulf %136, %140 : vector<8x8xf32>
    %142 = vector.extract_strided_slice %71 {offsets = [0, 88], sizes = [8, 8], strides = [1, 1]} : vector<8x96xf32> to vector<8x8xf32>
    %cst_54 = arith.constant dense<0.000000e+00> : vector<8x8xf32>
    %143 = tpu.matmul %141, %142, %cst_54 {dimension_numbers = #tpu.dot_dimension_numbers<[1], [0], [0], [1], [0, 0, 1, 1], [], []>} : vector<8x8xf32>, vector<8x8xf32>, vector<8x8xf32> -> vector<8x8xf32>
    %c248 = arith.constant 248 : index
    %c0_55 = arith.constant 0 : index
    %144 = vector.load %arg2[%c248, %c0_55] : memref<800x128xf32, #tpu.memory_space<vmem>>, vector<8x32xf32>
    %cst_56 = arith.constant dense<0.000000e+00> : vector<8x32xf32>
    %145 = tpu.matmul %143, %144, %cst_56 {dimension_numbers = #tpu.dot_dimension_numbers<[1], [0], [0], [1], [0, 0, 1, 1], [], []>} : vector<8x8xf32>, vector<8x32xf32>, vector<8x32xf32> -> vector<8x32xf32>
    %146 = arith.addf %128, %145 : vector<8x32xf32>
    %147 = arith.addf %42, %146 : vector<8x32xf32>
    %c256 = arith.constant 256 : index
    %c0_57 = arith.constant 0 : index
    %148 = vector.load %arg2[%c256, %c0_57] : memref<800x128xf32, #tpu.memory_space<vmem>>, vector<1x32xf32>
    %149 = vector.broadcast %148 : vector<1x32xf32> to vector<8x32xf32>
    %150 = arith.addf %147, %149 : vector<8x32xf32>
    %c264 = arith.constant 264 : index
    %c0_58 = arith.constant 0 : index
    %151 = vector.load %arg2[%c264, %c0_58] : memref<800x128xf32, #tpu.memory_space<vmem>>, vector<1x32xf32>
    %c272 = arith.constant 272 : index
    %c0_59 = arith.constant 0 : index
    %152 = vector.load %arg2[%c272, %c0_59] : memref<800x128xf32, #tpu.memory_space<vmem>>, vector<1x32xf32>
    %cst_60 = arith.constant dense<0.000000e+00> : vector<8xf32>
    %153 = vector.multi_reduction <add>, %150, %cst_60 [1] : vector<8x32xf32> to vector<8xf32>
    %154 = vector.shape_cast %153 : vector<8xf32> to vector<8x1xf32>
    %cst_61 = arith.constant 3.200000e+01 : f32
    %155 = vector.broadcast %cst_61 : f32 to vector<8x1xf32>
    %156 = arith.divf %154, %155 : vector<8x1xf32>
    %157 = vector.broadcast %156 : vector<8x1xf32> to vector<8x32xf32>
    %158 = arith.subf %150, %157 : vector<8x32xf32>
    %159 = arith.mulf %158, %158 : vector<8x32xf32>
    %cst_62 = arith.constant dense<0.000000e+00> : vector<8xf32>
    %160 = vector.multi_reduction <add>, %159, %cst_62 [1] : vector<8x32xf32> to vector<8xf32>
    %161 = vector.shape_cast %160 : vector<8xf32> to vector<8x1xf32>
    %cst_63 = arith.constant 3.200000e+01 : f32
    %162 = vector.broadcast %cst_63 : f32 to vector<8x1xf32>
    %163 = arith.divf %161, %162 : vector<8x1xf32>
    %164 = vector.broadcast %156 : vector<8x1xf32> to vector<8x32xf32>
    %165 = arith.subf %150, %164 : vector<8x32xf32>
    %cst_64 = arith.constant 9.99999974E-6 : f32
    %166 = vector.broadcast %cst_64 : f32 to vector<8x1xf32>
    %167 = arith.addf %163, %166 : vector<8x1xf32>
    %168 = math.rsqrt %167 : vector<8x1xf32>
    %169 = vector.broadcast %168 : vector<8x1xf32> to vector<8x32xf32>
    %170 = arith.mulf %165, %169 : vector<8x32xf32>
    %171 = vector.broadcast %151 : vector<1x32xf32> to vector<8x32xf32>
    %172 = arith.mulf %170, %171 : vector<8x32xf32>
    %173 = vector.broadcast %152 : vector<1x32xf32> to vector<8x32xf32>
    %174 = arith.addf %172, %173 : vector<8x32xf32>
    %c280 = arith.constant 280 : index
    %c0_65 = arith.constant 0 : index
    %175 = vector.load %arg2[%c280, %c0_65] : memref<800x128xf32, #tpu.memory_space<vmem>>, vector<32x128xf32>
    %cst_66 = arith.constant dense<0.000000e+00> : vector<8x128xf32>
    %176 = tpu.matmul %174, %175, %cst_66 {dimension_numbers = #tpu.dot_dimension_numbers<[1], [0], [0], [1], [0, 0, 1, 1], [], []>} : vector<8x32xf32>, vector<32x128xf32>, vector<8x128xf32> -> vector<8x128xf32>
    %c312 = arith.constant 312 : index
    %c0_67 = arith.constant 0 : index
    %177 = vector.load %arg2[%c312, %c0_67] : memref<800x128xf32, #tpu.memory_space<vmem>>, vector<1x128xf32>
    %178 = vector.broadcast %177 : vector<1x128xf32> to vector<8x128xf32>
    %179 = arith.addf %176, %178 : vector<8x128xf32>
    %cst_68 = arith.constant 5.000000e-01 : f32
    %180 = vector.broadcast %cst_68 : f32 to vector<8x128xf32>
    %181 = arith.mulf %180, %179 : vector<8x128xf32>
    %cst_69 = arith.constant 0.707106769 : f32
    %182 = vector.broadcast %cst_69 : f32 to vector<8x128xf32>
    %183 = arith.mulf %179, %182 : vector<8x128xf32>
    %184 = math.erf %183 : vector<8x128xf32>
    %cst_70 = arith.constant 1.000000e+00 : f32
    %185 = vector.broadcast %cst_70 : f32 to vector<8x128xf32>
    %186 = arith.addf %185, %184 : vector<8x128xf32>
    %187 = arith.mulf %181, %186 : vector<8x128xf32>
    %c320 = arith.constant 320 : index
    %c0_71 = arith.constant 0 : index
    %188 = vector.load %arg2[%c320, %c0_71] : memref<800x128xf32, #tpu.memory_space<vmem>>, vector<128x32xf32>
    %cst_72 = arith.constant dense<0.000000e+00> : vector<8x32xf32>
    %189 = tpu.matmul %187, %188, %cst_72 {dimension_numbers = #tpu.dot_dimension_numbers<[1], [0], [0], [1], [0, 0, 1, 1], [], []>} : vector<8x128xf32>, vector<128x32xf32>, vector<8x32xf32> -> vector<8x32xf32>
    %190 = arith.addf %150, %189 : vector<8x32xf32>
    %c448 = arith.constant 448 : index
    %c0_73 = arith.constant 0 : index
    %191 = vector.load %arg2[%c448, %c0_73] : memref<800x128xf32, #tpu.memory_space<vmem>>, vector<1x32xf32>
    %192 = vector.broadcast %191 : vector<1x32xf32> to vector<8x32xf32>
    %193 = arith.addf %190, %192 : vector<8x32xf32>
    %c456 = arith.constant 456 : index
    %c0_74 = arith.constant 0 : index
    %194 = vector.load %arg2[%c456, %c0_74] : memref<800x128xf32, #tpu.memory_space<vmem>>, vector<1x32xf32>
    %c464 = arith.constant 464 : index
    %c0_75 = arith.constant 0 : index
    %195 = vector.load %arg2[%c464, %c0_75] : memref<800x128xf32, #tpu.memory_space<vmem>>, vector<1x32xf32>
    %cst_76 = arith.constant dense<0.000000e+00> : vector<8xf32>
    %196 = vector.multi_reduction <add>, %193, %cst_76 [1] : vector<8x32xf32> to vector<8xf32>
    %197 = vector.shape_cast %196 : vector<8xf32> to vector<8x1xf32>
    %cst_77 = arith.constant 3.200000e+01 : f32
    %198 = vector.broadcast %cst_77 : f32 to vector<8x1xf32>
    %199 = arith.divf %197, %198 : vector<8x1xf32>
    %200 = vector.broadcast %199 : vector<8x1xf32> to vector<8x32xf32>
    %201 = arith.subf %193, %200 : vector<8x32xf32>
    %202 = arith.mulf %201, %201 : vector<8x32xf32>
    %cst_78 = arith.constant dense<0.000000e+00> : vector<8xf32>
    %203 = vector.multi_reduction <add>, %202, %cst_78 [1] : vector<8x32xf32> to vector<8xf32>
    %204 = vector.shape_cast %203 : vector<8xf32> to vector<8x1xf32>
    %cst_79 = arith.constant 3.200000e+01 : f32
    %205 = vector.broadcast %cst_79 : f32 to vector<8x1xf32>
    %206 = arith.divf %204, %205 : vector<8x1xf32>
    %207 = vector.broadcast %199 : vector<8x1xf32> to vector<8x32xf32>
    %208 = arith.subf %193, %207 : vector<8x32xf32>
    %cst_80 = arith.constant 9.99999974E-6 : f32
    %209 = vector.broadcast %cst_80 : f32 to vector<8x1xf32>
    %210 = arith.addf %206, %209 : vector<8x1xf32>
    %211 = math.rsqrt %210 : vector<8x1xf32>
    %212 = vector.broadcast %211 : vector<8x1xf32> to vector<8x32xf32>
    %213 = arith.mulf %208, %212 : vector<8x32xf32>
    %214 = vector.broadcast %194 : vector<1x32xf32> to vector<8x32xf32>
    %215 = arith.mulf %213, %214 : vector<8x32xf32>
    %216 = vector.broadcast %195 : vector<1x32xf32> to vector<8x32xf32>
    %217 = arith.addf %215, %216 : vector<8x32xf32>
    %c472 = arith.constant 472 : index
    %c0_81 = arith.constant 0 : index
    %218 = vector.load %arg2[%c472, %c0_81] : memref<800x128xf32, #tpu.memory_space<vmem>>, vector<32x96xf32>
    %cst_82 = arith.constant dense<0.000000e+00> : vector<8x96xf32>
    %219 = tpu.matmul %217, %218, %cst_82 {dimension_numbers = #tpu.dot_dimension_numbers<[1], [0], [0], [1], [0, 0, 1, 1], [], []>} : vector<8x32xf32>, vector<32x96xf32>, vector<8x96xf32> -> vector<8x96xf32>
    %c504 = arith.constant 504 : index
    %c0_83 = arith.constant 0 : index
    %220 = vector.load %arg2[%c504, %c0_83] : memref<800x128xf32, #tpu.memory_space<vmem>>, vector<1x96xf32>
    %221 = vector.broadcast %220 : vector<1x96xf32> to vector<8x96xf32>
    %222 = arith.addf %219, %221 : vector<8x96xf32>
    %223 = vector.extract_strided_slice %222 {offsets = [0, 32], sizes = [8, 32], strides = [1, 1]} : vector<8x96xf32> to vector<8x32xf32>
    %224 = tpu.transpose %223, [1, 0] : vector<8x32xf32> -> vector<32x8xf32>
    %cst_84 = arith.constant 0.000000e+00 : f32
    %225 = vector.broadcast %cst_84 : f32 to vector<8x32xf32>
    %226 = vector.extract_strided_slice %222 {offsets = [0, 0], sizes = [8, 8], strides = [1, 1]} : vector<8x96xf32> to vector<8x8xf32>
    %227 = vector.extract_strided_slice %224 {offsets = [0, 0], sizes = [8, 8], strides = [1, 1]} : vector<32x8xf32> to vector<8x8xf32>
    %cst_85 = arith.constant dense<0.000000e+00> : vector<8x8xf32>
    %228 = tpu.matmul %226, %227, %cst_85 {dimension_numbers = #tpu.dot_dimension_numbers<[1], [0], [0], [1], [0, 0, 1, 1], [], []>} : vector<8x8xf32>, vector<8x8xf32>, vector<8x8xf32> -> vector<8x8xf32>
    %cst_86 = arith.constant dense<0xFF800000> : vector<8xf32>
    %229 = vector.multi_reduction <maximumf>, %228, %cst_86 [1] : vector<8x8xf32> to vector<8xf32>
    %230 = vector.shape_cast %229 : vector<8xf32> to vector<8x1xf32>
    %231 = vector.broadcast %230 : vector<8x1xf32> to vector<8x8xf32>
    %232 = arith.subf %228, %231 : vector<8x8xf32>
    %233 = math.exp %232 : vector<8x8xf32>
    %cst_87 = arith.constant dense<0.000000e+00> : vector<8xf32>
    %234 = vector.multi_reduction <add>, %233, %cst_87 [1] : vector<8x8xf32> to vector<8xf32>
    %235 = vector.shape_cast %234 : vector<8xf32> to vector<8x1xf32>
    %236 = tpu.reciprocal %235 {approx = true} : vector<8x1xf32> -> vector<8x1xf32>
    %237 = vector.broadcast %236 : vector<8x1xf32> to vector<8x8xf32>
    %238 = arith.mulf %233, %237 : vector<8x8xf32>
    %239 = vector.extract_strided_slice %222 {offsets = [0, 64], sizes = [8, 8], strides = [1, 1]} : vector<8x96xf32> to vector<8x8xf32>
    %cst_88 = arith.constant dense<0.000000e+00> : vector<8x8xf32>
    %240 = tpu.matmul %238, %239, %cst_88 {dimension_numbers = #tpu.dot_dimension_numbers<[1], [0], [0], [1], [0, 0, 1, 1], [], []>} : vector<8x8xf32>, vector<8x8xf32>, vector<8x8xf32> -> vector<8x8xf32>
    %c512 = arith.constant 512 : index
    %c0_89 = arith.constant 0 : index
    %241 = vector.load %arg2[%c512, %c0_89] : memref<800x128xf32, #tpu.memory_space<vmem>>, vector<8x32xf32>
    %cst_90 = arith.constant dense<0.000000e+00> : vector<8x32xf32>
    %242 = tpu.matmul %240, %241, %cst_90 {dimension_numbers = #tpu.dot_dimension_numbers<[1], [0], [0], [1], [0, 0, 1, 1], [], []>} : vector<8x8xf32>, vector<8x32xf32>, vector<8x32xf32> -> vector<8x32xf32>
    %243 = arith.addf %225, %242 : vector<8x32xf32>
    %244 = vector.extract_strided_slice %222 {offsets = [0, 8], sizes = [8, 8], strides = [1, 1]} : vector<8x96xf32> to vector<8x8xf32>
    %245 = vector.extract_strided_slice %224 {offsets = [8, 0], sizes = [8, 8], strides = [1, 1]} : vector<32x8xf32> to vector<8x8xf32>
    %cst_91 = arith.constant dense<0.000000e+00> : vector<8x8xf32>
    %246 = tpu.matmul %244, %245, %cst_91 {dimension_numbers = #tpu.dot_dimension_numbers<[1], [0], [0], [1], [0, 0, 1, 1], [], []>} : vector<8x8xf32>, vector<8x8xf32>, vector<8x8xf32> -> vector<8x8xf32>
    %cst_92 = arith.constant dense<0xFF800000> : vector<8xf32>
    %247 = vector.multi_reduction <maximumf>, %246, %cst_92 [1] : vector<8x8xf32> to vector<8xf32>
    %248 = vector.shape_cast %247 : vector<8xf32> to vector<8x1xf32>
    %249 = vector.broadcast %248 : vector<8x1xf32> to vector<8x8xf32>
    %250 = arith.subf %246, %249 : vector<8x8xf32>
    %251 = math.exp %250 : vector<8x8xf32>
    %cst_93 = arith.constant dense<0.000000e+00> : vector<8xf32>
    %252 = vector.multi_reduction <add>, %251, %cst_93 [1] : vector<8x8xf32> to vector<8xf32>
    %253 = vector.shape_cast %252 : vector<8xf32> to vector<8x1xf32>
    %254 = tpu.reciprocal %253 {approx = true} : vector<8x1xf32> -> vector<8x1xf32>
    %255 = vector.broadcast %254 : vector<8x1xf32> to vector<8x8xf32>
    %256 = arith.mulf %251, %255 : vector<8x8xf32>
    %257 = vector.extract_strided_slice %222 {offsets = [0, 72], sizes = [8, 8], strides = [1, 1]} : vector<8x96xf32> to vector<8x8xf32>
    %cst_94 = arith.constant dense<0.000000e+00> : vector<8x8xf32>
    %258 = tpu.matmul %256, %257, %cst_94 {dimension_numbers = #tpu.dot_dimension_numbers<[1], [0], [0], [1], [0, 0, 1, 1], [], []>} : vector<8x8xf32>, vector<8x8xf32>, vector<8x8xf32> -> vector<8x8xf32>
    %c520 = arith.constant 520 : index
    %c0_95 = arith.constant 0 : index
    %259 = vector.load %arg2[%c520, %c0_95] : memref<800x128xf32, #tpu.memory_space<vmem>>, vector<8x32xf32>
    %cst_96 = arith.constant dense<0.000000e+00> : vector<8x32xf32>
    %260 = tpu.matmul %258, %259, %cst_96 {dimension_numbers = #tpu.dot_dimension_numbers<[1], [0], [0], [1], [0, 0, 1, 1], [], []>} : vector<8x8xf32>, vector<8x32xf32>, vector<8x32xf32> -> vector<8x32xf32>
    %261 = arith.addf %243, %260 : vector<8x32xf32>
    %262 = vector.extract_strided_slice %222 {offsets = [0, 16], sizes = [8, 8], strides = [1, 1]} : vector<8x96xf32> to vector<8x8xf32>
    %263 = vector.extract_strided_slice %224 {offsets = [16, 0], sizes = [8, 8], strides = [1, 1]} : vector<32x8xf32> to vector<8x8xf32>
    %cst_97 = arith.constant dense<0.000000e+00> : vector<8x8xf32>
    %264 = tpu.matmul %262, %263, %cst_97 {dimension_numbers = #tpu.dot_dimension_numbers<[1], [0], [0], [1], [0, 0, 1, 1], [], []>} : vector<8x8xf32>, vector<8x8xf32>, vector<8x8xf32> -> vector<8x8xf32>
    %cst_98 = arith.constant dense<0xFF800000> : vector<8xf32>
    %265 = vector.multi_reduction <maximumf>, %264, %cst_98 [1] : vector<8x8xf32> to vector<8xf32>
    %266 = vector.shape_cast %265 : vector<8xf32> to vector<8x1xf32>
    %267 = vector.broadcast %266 : vector<8x1xf32> to vector<8x8xf32>
    %268 = arith.subf %264, %267 : vector<8x8xf32>
    %269 = math.exp %268 : vector<8x8xf32>
    %cst_99 = arith.constant dense<0.000000e+00> : vector<8xf32>
    %270 = vector.multi_reduction <add>, %269, %cst_99 [1] : vector<8x8xf32> to vector<8xf32>
    %271 = vector.shape_cast %270 : vector<8xf32> to vector<8x1xf32>
    %272 = tpu.reciprocal %271 {approx = true} : vector<8x1xf32> -> vector<8x1xf32>
    %273 = vector.broadcast %272 : vector<8x1xf32> to vector<8x8xf32>
    %274 = arith.mulf %269, %273 : vector<8x8xf32>
    %275 = vector.extract_strided_slice %222 {offsets = [0, 80], sizes = [8, 8], strides = [1, 1]} : vector<8x96xf32> to vector<8x8xf32>
    %cst_100 = arith.constant dense<0.000000e+00> : vector<8x8xf32>
    %276 = tpu.matmul %274, %275, %cst_100 {dimension_numbers = #tpu.dot_dimension_numbers<[1], [0], [0], [1], [0, 0, 1, 1], [], []>} : vector<8x8xf32>, vector<8x8xf32>, vector<8x8xf32> -> vector<8x8xf32>
    %c528 = arith.constant 528 : index
    %c0_101 = arith.constant 0 : index
    %277 = vector.load %arg2[%c528, %c0_101] : memref<800x128xf32, #tpu.memory_space<vmem>>, vector<8x32xf32>
    %cst_102 = arith.constant dense<0.000000e+00> : vector<8x32xf32>
    %278 = tpu.matmul %276, %277, %cst_102 {dimension_numbers = #tpu.dot_dimension_numbers<[1], [0], [0], [1], [0, 0, 1, 1], [], []>} : vector<8x8xf32>, vector<8x32xf32>, vector<8x32xf32> -> vector<8x32xf32>
    %279 = arith.addf %261, %278 : vector<8x32xf32>
    %280 = vector.extract_strided_slice %222 {offsets = [0, 24], sizes = [8, 8], strides = [1, 1]} : vector<8x96xf32> to vector<8x8xf32>
    %281 = vector.extract_strided_slice %224 {offsets = [24, 0], sizes = [8, 8], strides = [1, 1]} : vector<32x8xf32> to vector<8x8xf32>
    %cst_103 = arith.constant dense<0.000000e+00> : vector<8x8xf32>
    %282 = tpu.matmul %280, %281, %cst_103 {dimension_numbers = #tpu.dot_dimension_numbers<[1], [0], [0], [1], [0, 0, 1, 1], [], []>} : vector<8x8xf32>, vector<8x8xf32>, vector<8x8xf32> -> vector<8x8xf32>
    %cst_104 = arith.constant dense<0xFF800000> : vector<8xf32>
    %283 = vector.multi_reduction <maximumf>, %282, %cst_104 [1] : vector<8x8xf32> to vector<8xf32>
    %284 = vector.shape_cast %283 : vector<8xf32> to vector<8x1xf32>
    %285 = vector.broadcast %284 : vector<8x1xf32> to vector<8x8xf32>
    %286 = arith.subf %282, %285 : vector<8x8xf32>
    %287 = math.exp %286 : vector<8x8xf32>
    %cst_105 = arith.constant dense<0.000000e+00> : vector<8xf32>
    %288 = vector.multi_reduction <add>, %287, %cst_105 [1] : vector<8x8xf32> to vector<8xf32>
    %289 = vector.shape_cast %288 : vector<8xf32> to vector<8x1xf32>
    %290 = tpu.reciprocal %289 {approx = true} : vector<8x1xf32> -> vector<8x1xf32>
    %291 = vector.broadcast %290 : vector<8x1xf32> to vector<8x8xf32>
    %292 = arith.mulf %287, %291 : vector<8x8xf32>
    %293 = vector.extract_strided_slice %222 {offsets = [0, 88], sizes = [8, 8], strides = [1, 1]} : vector<8x96xf32> to vector<8x8xf32>
    %cst_106 = arith.constant dense<0.000000e+00> : vector<8x8xf32>
    %294 = tpu.matmul %292, %293, %cst_106 {dimension_numbers = #tpu.dot_dimension_numbers<[1], [0], [0], [1], [0, 0, 1, 1], [], []>} : vector<8x8xf32>, vector<8x8xf32>, vector<8x8xf32> -> vector<8x8xf32>
    %c536 = arith.constant 536 : index
    %c0_107 = arith.constant 0 : index
    %295 = vector.load %arg2[%c536, %c0_107] : memref<800x128xf32, #tpu.memory_space<vmem>>, vector<8x32xf32>
    %cst_108 = arith.constant dense<0.000000e+00> : vector<8x32xf32>
    %296 = tpu.matmul %294, %295, %cst_108 {dimension_numbers = #tpu.dot_dimension_numbers<[1], [0], [0], [1], [0, 0, 1, 1], [], []>} : vector<8x8xf32>, vector<8x32xf32>, vector<8x32xf32> -> vector<8x32xf32>
    %297 = arith.addf %279, %296 : vector<8x32xf32>
    %298 = arith.addf %193, %297 : vector<8x32xf32>
    %c544 = arith.constant 544 : index
    %c0_109 = arith.constant 0 : index
    %299 = vector.load %arg2[%c544, %c0_109] : memref<800x128xf32, #tpu.memory_space<vmem>>, vector<1x32xf32>
    %300 = vector.broadcast %299 : vector<1x32xf32> to vector<8x32xf32>
    %301 = arith.addf %298, %300 : vector<8x32xf32>
    %c552 = arith.constant 552 : index
    %c0_110 = arith.constant 0 : index
    %302 = vector.load %arg2[%c552, %c0_110] : memref<800x128xf32, #tpu.memory_space<vmem>>, vector<1x32xf32>
    %c560 = arith.constant 560 : index
    %c0_111 = arith.constant 0 : index
    %303 = vector.load %arg2[%c560, %c0_111] : memref<800x128xf32, #tpu.memory_space<vmem>>, vector<1x32xf32>
    %cst_112 = arith.constant dense<0.000000e+00> : vector<8xf32>
    %304 = vector.multi_reduction <add>, %301, %cst_112 [1] : vector<8x32xf32> to vector<8xf32>
    %305 = vector.shape_cast %304 : vector<8xf32> to vector<8x1xf32>
    %cst_113 = arith.constant 3.200000e+01 : f32
    %306 = vector.broadcast %cst_113 : f32 to vector<8x1xf32>
    %307 = arith.divf %305, %306 : vector<8x1xf32>
    %308 = vector.broadcast %307 : vector<8x1xf32> to vector<8x32xf32>
    %309 = arith.subf %301, %308 : vector<8x32xf32>
    %310 = arith.mulf %309, %309 : vector<8x32xf32>
    %cst_114 = arith.constant dense<0.000000e+00> : vector<8xf32>
    %311 = vector.multi_reduction <add>, %310, %cst_114 [1] : vector<8x32xf32> to vector<8xf32>
    %312 = vector.shape_cast %311 : vector<8xf32> to vector<8x1xf32>
    %cst_115 = arith.constant 3.200000e+01 : f32
    %313 = vector.broadcast %cst_115 : f32 to vector<8x1xf32>
    %314 = arith.divf %312, %313 : vector<8x1xf32>
    %315 = vector.broadcast %307 : vector<8x1xf32> to vector<8x32xf32>
    %316 = arith.subf %301, %315 : vector<8x32xf32>
    %cst_116 = arith.constant 9.99999974E-6 : f32
    %317 = vector.broadcast %cst_116 : f32 to vector<8x1xf32>
    %318 = arith.addf %314, %317 : vector<8x1xf32>
    %319 = math.rsqrt %318 : vector<8x1xf32>
    %320 = vector.broadcast %319 : vector<8x1xf32> to vector<8x32xf32>
    %321 = arith.mulf %316, %320 : vector<8x32xf32>
    %322 = vector.broadcast %302 : vector<1x32xf32> to vector<8x32xf32>
    %323 = arith.mulf %321, %322 : vector<8x32xf32>
    %324 = vector.broadcast %303 : vector<1x32xf32> to vector<8x32xf32>
    %325 = arith.addf %323, %324 : vector<8x32xf32>
    %c568 = arith.constant 568 : index
    %c0_117 = arith.constant 0 : index
    %326 = vector.load %arg2[%c568, %c0_117] : memref<800x128xf32, #tpu.memory_space<vmem>>, vector<32x128xf32>
    %cst_118 = arith.constant dense<0.000000e+00> : vector<8x128xf32>
    %327 = tpu.matmul %325, %326, %cst_118 {dimension_numbers = #tpu.dot_dimension_numbers<[1], [0], [0], [1], [0, 0, 1, 1], [], []>} : vector<8x32xf32>, vector<32x128xf32>, vector<8x128xf32> -> vector<8x128xf32>
    %c600 = arith.constant 600 : index
    %c0_119 = arith.constant 0 : index
    %328 = vector.load %arg2[%c600, %c0_119] : memref<800x128xf32, #tpu.memory_space<vmem>>, vector<1x128xf32>
    %329 = vector.broadcast %328 : vector<1x128xf32> to vector<8x128xf32>
    %330 = arith.addf %327, %329 : vector<8x128xf32>
    %cst_120 = arith.constant 5.000000e-01 : f32
    %331 = vector.broadcast %cst_120 : f32 to vector<8x128xf32>
    %332 = arith.mulf %331, %330 : vector<8x128xf32>
    %cst_121 = arith.constant 0.707106769 : f32
    %333 = vector.broadcast %cst_121 : f32 to vector<8x128xf32>
    %334 = arith.mulf %330, %333 : vector<8x128xf32>
    %335 = math.erf %334 : vector<8x128xf32>
    %cst_122 = arith.constant 1.000000e+00 : f32
    %336 = vector.broadcast %cst_122 : f32 to vector<8x128xf32>
    %337 = arith.addf %336, %335 : vector<8x128xf32>
    %338 = arith.mulf %332, %337 : vector<8x128xf32>
    %c608 = arith.constant 608 : index
    %c0_123 = arith.constant 0 : index
    %339 = vector.load %arg2[%c608, %c0_123] : memref<800x128xf32, #tpu.memory_space<vmem>>, vector<128x32xf32>
    %cst_124 = arith.constant dense<0.000000e+00> : vector<8x32xf32>
    %340 = tpu.matmul %338, %339, %cst_124 {dimension_numbers = #tpu.dot_dimension_numbers<[1], [0], [0], [1], [0, 0, 1, 1], [], []>} : vector<8x128xf32>, vector<128x32xf32>, vector<8x32xf32> -> vector<8x32xf32>
    %341 = arith.addf %301, %340 : vector<8x32xf32>
    %c736 = arith.constant 736 : index
    %c0_125 = arith.constant 0 : index
    %342 = vector.load %arg2[%c736, %c0_125] : memref<800x128xf32, #tpu.memory_space<vmem>>, vector<1x32xf32>
    %343 = vector.broadcast %342 : vector<1x32xf32> to vector<8x32xf32>
    %344 = arith.addf %341, %343 : vector<8x32xf32>
    %c744 = arith.constant 744 : index
    %c0_126 = arith.constant 0 : index
    %345 = vector.load %arg2[%c744, %c0_126] : memref<800x128xf32, #tpu.memory_space<vmem>>, vector<1x32xf32>
    %c752 = arith.constant 752 : index
    %c0_127 = arith.constant 0 : index
    %346 = vector.load %arg2[%c752, %c0_127] : memref<800x128xf32, #tpu.memory_space<vmem>>, vector<1x32xf32>
    %cst_128 = arith.constant dense<0.000000e+00> : vector<8xf32>
    %347 = vector.multi_reduction <add>, %344, %cst_128 [1] : vector<8x32xf32> to vector<8xf32>
    %348 = vector.shape_cast %347 : vector<8xf32> to vector<8x1xf32>
    %cst_129 = arith.constant 3.200000e+01 : f32
    %349 = vector.broadcast %cst_129 : f32 to vector<8x1xf32>
    %350 = arith.divf %348, %349 : vector<8x1xf32>
    %351 = vector.broadcast %350 : vector<8x1xf32> to vector<8x32xf32>
    %352 = arith.subf %344, %351 : vector<8x32xf32>
    %353 = arith.mulf %352, %352 : vector<8x32xf32>
    %cst_130 = arith.constant dense<0.000000e+00> : vector<8xf32>
    %354 = vector.multi_reduction <add>, %353, %cst_130 [1] : vector<8x32xf32> to vector<8xf32>
    %355 = vector.shape_cast %354 : vector<8xf32> to vector<8x1xf32>
    %cst_131 = arith.constant 3.200000e+01 : f32
    %356 = vector.broadcast %cst_131 : f32 to vector<8x1xf32>
    %357 = arith.divf %355, %356 : vector<8x1xf32>
    %358 = vector.broadcast %350 : vector<8x1xf32> to vector<8x32xf32>
    %359 = arith.subf %344, %358 : vector<8x32xf32>
    %cst_132 = arith.constant 9.99999974E-6 : f32
    %360 = vector.broadcast %cst_132 : f32 to vector<8x1xf32>
    %361 = arith.addf %357, %360 : vector<8x1xf32>
    %362 = math.rsqrt %361 : vector<8x1xf32>
    %363 = vector.broadcast %362 : vector<8x1xf32> to vector<8x32xf32>
    %364 = arith.mulf %359, %363 : vector<8x32xf32>
    %365 = vector.broadcast %345 : vector<1x32xf32> to vector<8x32xf32>
    %366 = arith.mulf %364, %365 : vector<8x32xf32>
    %367 = vector.broadcast %346 : vector<1x32xf32> to vector<8x32xf32>
    %368 = arith.addf %366, %367 : vector<8x32xf32>
    %cst_133 = arith.constant dense<0.000000e+00> : vector<32xf32>
    %369 = vector.multi_reduction <add>, %368, %cst_133 [0] : vector<8x32xf32> to vector<32xf32>
    %370 = vector.shape_cast %369 : vector<32xf32> to vector<1x32xf32>
    %cst_134 = arith.constant 8.000000e+00 : f32
    %371 = vector.broadcast %cst_134 : f32 to vector<1x32xf32>
    %372 = arith.divf %370, %371 : vector<1x32xf32>
    %c760 = arith.constant 760 : index
    %c0_135 = arith.constant 0 : index
    %373 = vector.load %arg2[%c760, %c0_135] : memref<800x128xf32, #tpu.memory_space<vmem>>, vector<32x2xf32>
    %cst_136 = arith.constant dense<0.000000e+00> : vector<1x2xf32>
    %374 = tpu.matmul %372, %373, %cst_136 {dimension_numbers = #tpu.dot_dimension_numbers<[1], [0], [0], [1], [0, 0, 1, 1], [], []>} : vector<1x32xf32>, vector<32x2xf32>, vector<1x2xf32> -> vector<1x2xf32>
    %c792 = arith.constant 792 : index
    %c0_137 = arith.constant 0 : index
    %375 = vector.load %arg2[%c792, %c0_137] : memref<800x128xf32, #tpu.memory_space<vmem>>, vector<1x2xf32>
    %376 = arith.addf %374, %375 : vector<1x2xf32>
    %c0_138 = arith.constant 0 : index
    %c0_139 = arith.constant 0 : index
    %c0_140 = arith.constant 0 : index
    %377 = vector.load %arg3[%c0_138, %c0_139, %c0_140] : memref<1x1x2xf32, #tpu.memory_space<vmem>>, vector<1x1x2xf32>
    %378 = vector.shape_cast %377 : vector<1x1x2xf32> to vector<1x2xf32>
    %379 = vector.shape_cast %376 : vector<1x2xf32> to vector<1x1x2xf32>
    tpu.vector_store %arg3[%c0_138, %c0_139, %c0_140], %379 {strides = array<i32>} : memref<1x1x2xf32, #tpu.memory_space<vmem>>, vector<1x1x2xf32>,
    return
  }
  func.func @transform_0(%arg0: i32) -> (i32, i32, i32) {
    %c0_i32 = arith.constant 0 : i32
    %c0_i32_0 = arith.constant 0 : i32
    %c0_i32_1 = arith.constant 0 : i32
    return %arg0, %c0_i32, %c0_i32_0 : i32, i32, i32
  }
  func.func @transform_1(%arg0: i32) -> (i32, i32) {
    %c0_i32 = arith.constant 0 : i32
    %c0_i32_0 = arith.constant 0 : i32
    %c0_i32_1 = arith.constant 0 : i32
    return %c0_i32, %c0_i32_0 : i32, i32
  }
  func.func @transform_2(%arg0: i32) -> (i32, i32, i32) {
    %c0_i32 = arith.constant 0 : i32
    %c0_i32_0 = arith.constant 0 : i32
    %c0_i32_1 = arith.constant 0 : i32
    return %arg0, %c0_i32, %c0_i32_0 : i32, i32, i32
  }
}

</mosaic_0001>

<llo_original>
// kernel: modified_whisper_forward.1
$region0: #{modified_whisper_forward.1}
  #allocation0 [shape = 'u32[]', space=smem, size = 0x4, offset = 0x4, fixed_abs, tag = 'smem constant byte address 0x4 - core index']
  #allocation1 [shape = 'u32[144,128]{1,0:T(1,128)}', space=vmem, size = 0x12000, scoped, tag = 'internal scratch']
  %s0 = inlined_call_operand.vmem [shape: f32[2,16,24], index: 0, kind: input, shape index: {}]
  %s1 = inlined_call_operand.vmem [shape: f32[800,128], index: 1, kind: input, shape index: {}]
  %s2 = inlined_call_operand.hbm [shape: f32[2,1,2], index: 2, kind: output, shape index: {}]
  %s3 = sld [smem:[#allocation0]]
  $region41: #{modified_whisper_forward.1} parent=0
    _
  %s5 = ssub.s32 1, %s3
  %s6 = scalar_select 0, %s5, %s3
  $region1: #{modified_whisper_forward.1} parent=0
    #allocation2 [shape = 'u8[1024]{0}', space=vmem, size = 0x400, scoped, tag = 'output window, operand 0']
    #allocation3 [shape = 's32[2]{0}', space=sflag, size = 0x8, scoped, tag = 'scoped memory for modified_whisper_forward.1']
    %7 = vsyncpa [#allocation3], 0
    %s8 = scalar_lea.sflag [#allocation3], 1
    %9 = vsyncpa %s8, 0
    loop: start=0, step=1, limit=4
    $region2: #{modified_whisper_forward.1} parent=1 // loop_pre_header
      _
    $region3: #{modified_whisper_forward.1} parent=1 // loop_header
      %s11 = sphi 0, %s15
      %p12 = scmp.ge.s32.totalorder %s11, 4
      %s21 = sphi 0, %s23
      %s24 = sphi 0, %s21
      %s25 = sphi 0, %s24
      %s41 = sphi 0, %s25
      %s45 = sphi 0, %s45
      %s47 = sphi 0, %s45
      %s48 = sphi 0, %s47
      %s62 = sphi 0, %s48
      %s68 = sphi 0, %s70
      %s71 = sphi 0, %s68
      %s72 = sphi 0, %s71
      %s88 = sphi 0, %s72
    $region4: #{modified_whisper_forward.1} parent=1 // loop_header_branch
      %14 = sbr.rel (%p12) target = $region8
    $region5: #{modified_whisper_forward.1} parent=1 // loop_body
      %s16 = ssub.s32 %s11, 1
      %s17 = ssub.s32 %s11, 2
      %s18 = sadd.s32 %s11, 1
      %s19 = ssub.s32 %s11, %s18
      %p20 = scmp.eq.s32.totalorder %s19, 0
      %s22 = sadd.s32 %s21, 1
      %s23 = scalar_select %p20, %s21, %s22
      %p26 = pneg %p20
      %p27 = scmp.eq.s32.totalorder %s11, 1
      %p28 = por %p26, %p27
      %p29 = scmp.ne.s32.totalorder %s21, %s24
      %p30 = scmp.eq.s32.totalorder %s11, 0
      %p31 = por %p29, %p30
      %p32 = scmp.ne.s32.totalorder %s21, %s24
      %p33 = scmp.eq.s32.totalorder %s16, 1
      %p34 = por %p32, %p33
      %p35 = scmp.ne.s32.totalorder %s24, %s25
      %p36 = scmp.eq.s32.totalorder %s16, 0
      %p37 = por %p35, %p36
      %p38 = scmp.ne.s32.totalorder %s24, %s25
      %p39 = scmp.eq.s32.totalorder %s17, 1
      %p40 = por %p38, %p39
      %p42 = scmp.ne.s32.totalorder %s25, %s41
      %p43 = scmp.eq.s32.totalorder %s17, 0
      %p44 = por %p42, %p43
      %s46 = sadd.s32 %s45, 1
      %p49 = scmp.eq.s32.totalorder %s11, 1
      %p50 = scmp.ne.s32.totalorder %s45, %s47
      %p51 = scmp.eq.s32.totalorder %s11, 0
      %p52 = por %p50, %p51
      %p53 = scmp.ne.s32.totalorder %s45, %s47
      %p54 = scmp.eq.s32.totalorder %s16, 1
      %p55 = por %p53, %p54
      %p56 = scmp.ne.s32.totalorder %s47, %s48
      %p57 = scmp.eq.s32.totalorder %s16, 0
      %p58 = por %p56, %p57
      %p59 = scmp.ne.s32.totalorder %s47, %s48
      %p60 = scmp.eq.s32.totalorder %s17, 1
      %p61 = por %p59, %p60
      %p63 = scmp.ne.s32.totalorder %s48, %s62
      %p64 = scmp.eq.s32.totalorder %s17, 0
      %p65 = por %p63, %p64
      %s66 = ssub.s32 %s11, %s18
      %p67 = scmp.eq.s32.totalorder %s66, 0
      %s69 = sadd.s32 %s68, 1
      %s70 = scalar_select %p67, %s68, %s69
      %p73 = pneg %p67
      %p74 = scmp.eq.s32.totalorder %s11, 1
      %p75 = por %p73, %p74
      %p76 = scmp.ne.s32.totalorder %s68, %s71
      %p77 = scmp.eq.s32.totalorder %s11, 0
      %p78 = por %p76, %p77
      %p79 = scmp.ne.s32.totalorder %s68, %s71
      %p80 = scmp.eq.s32.totalorder %s16, 1
      %p81 = por %p79, %p80
      %p82 = scmp.ne.s32.totalorder %s71, %s72
      %p83 = scmp.eq.s32.totalorder %s16, 0
      %p84 = por %p82, %p83
      %p85 = scmp.ne.s32.totalorder %s71, %s72
      %p86 = scmp.eq.s32.totalorder %s17, 1
      %p87 = por %p85, %p86
      %p89 = scmp.ne.s32.totalorder %s72, %s88
      %p90 = scmp.eq.s32.totalorder %s17, 0
      %p91 = por %p89, %p90
      %p92 = scmp.le.s32.totalorder 1, %s11
      %p93 = scmp.lt.s32.totalorder %s11, 3
      %p94 = pnand %p92, %p93
      %p95 = pneg %p94
      // Predicated region
      $region9: #{modified_whisper_forward.1} parent=5 // pred_check
        _
      $region10: #{modified_whisper_forward.1} parent=5 // pred_check_branch
        %97 = sbr.rel (%p94) target = $region12
      $region11: #{modified_whisper_forward.1} parent=5 // pred_region
        %s98 = ssub.s32 %s11, 1
        // Predicated region
        $region13: #{modified_whisper_forward.1} parent=11 // pred_check
          %p99 = pneg %p58
        $region14: #{modified_whisper_forward.1} parent=11 // pred_check_branch
          %101 = sbr.rel (%p99) target = $region16
        $region15: #{modified_whisper_forward.1} parent=11 // pred_region
          _
        $region16: #{modified_whisper_forward.1} parent=11 // pred_fallthru
          _
      $region12: #{modified_whisper_forward.1} parent=5 // pred_fallthru
        _
      %p102 = scmp.lt.s32.totalorder %s11, 2
      // Predicated region
      $region17: #{modified_whisper_forward.1} parent=5 // pred_check
        %p103 = pneg %p102
      $region18: #{modified_whisper_forward.1} parent=5 // pred_check_branch
        %105 = sbr.rel (%p103) target = $region20
      $region19: #{modified_whisper_forward.1} parent=5 // pred_region
        // Predicated region
        $region21: #{modified_whisper_forward.1} parent=19 // pred_check
          %p106 = pneg %p31
        $region22: #{modified_whisper_forward.1} parent=19 // pred_check_branch
          %108 = sbr.rel (%p106) target = $region24
        $region23: #{modified_whisper_forward.1} parent=19 // pred_region
          %p109 = scmp.lt.s32.totalorder %s11, 1
          %s110 = scalar_select %p109, %s11, 1
          %s111 = smul.addr %s110, 2
          %s112 = smul.addr %s111, 8
          %s113 = scalar_lea.vmem %s0, %s112
        $region24: #{modified_whisper_forward.1} parent=19 // pred_fallthru
          _
      $region20: #{modified_whisper_forward.1} parent=5 // pred_fallthru
        _
      %p114 = scmp.le.s32.totalorder 1, %s11
      %p115 = scmp.lt.s32.totalorder %s11, 3
      %p116 = pnand %p114, %p115
      %p117 = pneg %p116
      // Predicated region
      $region25: #{modified_whisper_forward.1} parent=5 // pred_check
        _
      $region26: #{modified_whisper_forward.1} parent=5 // pred_check_branch
        %119 = sbr.rel (%p116) target = $region28
      $region27: #{modified_whisper_forward.1} parent=5 // pred_region
        %s120 = ssub.s32 %s11, 1
        %p121 = scmp.lt.s32.totalorder %s16, 1
        %s122 = scalar_select %p121, %s16, 1
        %s123 = smul.addr %s122, 2
        %s124 = smul.addr %s123, 8
        %s125 = scalar_lea.vmem %s0, %s124
        %p126 = pneg %p37
        %p127 = pneg %p34
        %p128 = pneg %p58
        %p129 = pneg %p55
        %p130 = pneg %p84
        %p131 = pneg %p81
        %s132 = sand.u32 %s71, 1
        %s133 = scalar_lea.sflag [#allocation3], %s132
        %s134 = sand.u32 %s71, 1
        %s135 = scalar_lea.vmem [#allocation2], %s134
        %p136 = scmp.lt.s32.totalorder %s16, 1
        %s137 = scalar_select %p136, %s16, 1
        %s138 = smul.addr %s137, 2
        %s139 = smul.addr %s138, 8
        %s140 = scalar_lea.vmem %s0, %s139
        %v141 = vld [vmem:[%s140] sm:$0xff]
        %v142 = vld [vmem:[%s140 + $0x8] sm:$0xff]
        %v143 = vld [vmem:[%s1] sm:$0xff]
        %v144 = vld [vmem:[%s1 + $0x8] sm:$0xff]
        %v145 = vld [vmem:[%s1 + $0x10] sm:$0xff]
        %v146 = vld [vmem:[%s1 + $0x18] sm:$0x1]
        %v147 = vlaneseq
        %v148 = vshrl.u32 %v147, 7
        %v149 = vsub.s32 0, %v148
        %v150 = vrot.slane %v146, %v149
        %vm151 = vcmask 195584
        %v153 = vsel %vm151, %v141, 0
        %v156 = vsel %vm151, %v142, 0
        %158 = vmatprep.subr.mxu0 0.0
        %159 = vmatpush1.msra.mxu0 %v143
        %160 = vmatprep.subr.mxu0 0.0
        %161 = vmatpush1.msra.mxu0 %v144
        %162 = vmatprep.subr.mxu0 0.0
        %163 = vmatpush1.msra.mxu0 %v145
        %164 = vmatprep.subr.mxu0 0.0
        %165 = vmatpush1.msra.mxu0 0.0
        %166 = vmatprep.subr.mxu0 0.0
        %167 = vmatpush1.msra.mxu0 0.0
        %168 = vmatprep.subr.mxu0 0.0
        %169 = vmatpush1.msra.mxu0 0.0
        %170 = vmatprep.subr.mxu0 0.0
        %171 = vmatpush1.msra.mxu0 0.0
        %172 = vmatprep.subr.mxu0 0.0
        %173 = vmatpush1.msra.mxu0 0.0
        %174 = vmatprep.subr.mxu0 0.0
        %175 = vmatpush1.msra.mxu0 0.0
        %176 = vmatprep.subr.mxu0 0.0
        %177 = vmatpush1.msra.mxu0 0.0
        %178 = vmatprep.subr.mxu0 0.0
        %179 = vmatpush1.msra.mxu0 0.0
        %180 = vmatprep.subr.mxu0 0.0
        %181 = vmatpush1.msra.mxu0 0.0
        %182 = vmatprep.subr.mxu0 0.0
        %183 = vmatpush1.msra.mxu0 0.0
        %184 = vmatprep.subr.mxu0 0.0
        %185 = vmatpush1.msra.mxu0 0.0
        %186 = vmatprep.subr.mxu0 0.0
        %187 = vmatpush1.msra.mxu0 0.0
        %188 = vmatprep.subr.mxu0 0.0
        %189 = vmatpush1.msra.mxu0 0.0
        %190 = vmatprep.subr.mxu0 0.0
        %191 = vmatpush1.msra.mxu0 0.0
        %192 = vmatprep.subr.mxu0 0.0
        %193 = vmatpush1.msra.mxu0 0.0
        %194 = vmatprep.subr.mxu0 0.0
        %195 = vmatpush1.msra.mxu0 0.0
        %196 = vmatprep.subr.mxu0 0.0
        %197 = vmatpush1.msra.mxu0 0.0
        %198 = vmatprep.subr.mxu0 0.0
        %199 = vmatpush1.msra.mxu0 0.0
        %200 = vmatprep.subr.mxu0 0.0
        %201 = vmatpush1.msra.mxu0 0.0
        %202 = vmatprep.subr.mxu0 0.0
        %203 = vmatpush1.msra.mxu0 0.0
        %204 = vmatprep.subr.mxu0 0.0
        %205 = vmatpush1.msra.mxu0 0.0
        %206 = vmatprep.subr.mxu0 0.0
        %207 = vmatpush1.msra.mxu0 0.0
        %208 = vmatprep.subr.mxu0 0.0
        %209 = vmatpush1.msra.mxu0 0.0
        %210 = vmatprep.subr.mxu0 0.0
        %211 = vmatpush1.msra.mxu0 0.0
        %212 = vmatprep.subr.mxu0 0.0
        %213 = vmatpush1.msra.mxu0 0.0
        %214 = vmatprep.subr.mxu0 0.0
        %215 = vmatpush1.msra.mxu0 0.0
        %216 = vmatprep.subr.mxu0 0.0
        %217 = vmatpush1.msra.mxu0 0.0
        %218 = vmatprep.subr.mxu0 0.0
        %219 = vmatpush1.msra.mxu0 0.0
        %220 = vmatprep.subr.mxu0 0.0
        %221 = vmatpush1.msra.mxu0 0.0
        %222 = vmatprep.mubr.f32.mxu0 0.0
        %223 = vmatmul.mubr.f32.gmra.mrb[0].mxu0 %v153
        %v224 = vpop.f32.mrb[0].mxu0
        %v225 = vadd.f32 %v150, %v224
        %v226 = vpop.f32.mrb[0].mxu0
        %227 = vmatprep.mubr.f32.mxu0 0.0
        %228 = vmatmul.mubr.f32.gmra.mrb[0].mxu0 %v156
        %v229 = vpop.f32.mrb[0].mxu0
        %v230 = vadd.f32 %v150, %v229
        %v231 = vpop.f32.mrb[0].mxu0
        %232 = vdwg.mxu0
        %v233 = vmul.f32 %v225, 0.5
        %v234 = vmul.f32 %v230, 0.5
        %v235 = vmul.f32 %v225, 0.70710677
        %v236 = vmul.f32 %v230, 0.70710677
        %v237 = verf.f32.pop %v235
        %v238 = verf.f32.pop %v236
        %v239 = vadd.f32 %v237, 1.0
        %v240 = vadd.f32 %v238, 1.0
        %v241 = vmul.f32 %v233, %v239
        %v242 = vmul.f32 %v234, %v240
        %v243 = vld [vmem:[%s1 + $0x20] sm:$0xff]
        %v244 = vld [vmem:[%s1 + $0x28] sm:$0xff]
        %v245 = vld [vmem:[%s1 + $0x30] sm:$0xff]
        %vm246 = vcmask 130048
        %v248 = vsel %vm246, %v243, 0
        %v251 = vsel %vm246, %v244, 0
        %v254 = vsel %vm246, %v245, 0
        %256 = vmatprep.subr.mxu0 0.0
        %257 = vmatpush1.msra.mxu0 %v241
        %258 = vmatprep.subr.mxu0 0.0
        %259 = vmatpush1.msra.mxu0 %v242
        %260 = vmatprep.subr.mxu0 0.0
        %261 = vmatpush1.msra.mxu0 0.0
        %262 = vmatprep.subr.mxu0 0.0
        %263 = vmatpush1.msra.mxu0 0.0
        %264 = vmatprep.subr.mxu0 0.0
        %265 = vmatpush1.msra.mxu0 0.0
        %266 = vmatprep.subr.mxu0 0.0
        %267 = vmatpush1.msra.mxu0 0.0
        %268 = vmatprep.subr.mxu0 0.0
        %269 = vmatpush1.msra.mxu0 0.0
        %270 = vmatprep.subr.mxu0 0.0
        %271 = vmatpush1.msra.mxu0 0.0
        %272 = vmatprep.subr.mxu0 0.0
        %273 = vmatpush1.msra.mxu0 0.0
        %274 = vmatprep.subr.mxu0 0.0
        %275 = vmatpush1.msra.mxu0 0.0
        %276 = vmatprep.subr.mxu0 0.0
        %277 = vmatpush1.msra.mxu0 0.0
        %278 = vmatprep.subr.mxu0 0.0
        %279 = vmatpush1.msra.mxu0 0.0
        %280 = vmatprep.subr.mxu0 0.0
        %281 = vmatpush1.msra.mxu0 0.0
        %282 = vmatprep.subr.mxu0 0.0
        %283 = vmatpush1.msra.mxu0 0.0
        %284 = vmatprep.subr.mxu0 0.0
        %285 = vmatpush1.msra.mxu0 0.0
        %286 = vmatprep.subr.mxu0 0.0
        %287 = vmatpush1.msra.mxu0 0.0
        %288 = vmatprep.subr.mxu0 0.0
        %289 = vmatpush1.msra.mxu0 0.0
        %290 = vmatprep.subr.mxu0 0.0
        %291 = vmatpush1.msra.mxu0 0.0
        %292 = vmatprep.subr.mxu0 0.0
        %293 = vmatpush1.msra.mxu0 0.0
        %294 = vmatprep.subr.mxu0 0.0
        %295 = vmatpush1.msra.mxu0 0.0
        %296 = vmatprep.subr.mxu0 0.0
        %297 = vmatpush1.msra.mxu0 0.0
        %298 = vmatprep.subr.mxu0 0.0
        %299 = vmatpush1.msra.mxu0 0.0
        %300 = vmatprep.subr.mxu0 0.0
        %301 = vmatpush1.msra.mxu0 0.0
        %302 = vmatprep.subr.mxu0 0.0
        %303 = vmatpush1.msra.mxu0 0.0
        %304 = vmatprep.subr.mxu0 0.0
        %305 = vmatpush1.msra.mxu0 0.0
        %306 = vmatprep.subr.mxu0 0.0
        %307 = vmatpush1.msra.mxu0 0.0
        %308 = vmatprep.subr.mxu0 0.0
        %309 = vmatpush1.msra.mxu0 0.0
        %310 = vmatprep.subr.mxu0 0.0
        %311 = vmatpush1.msra.mxu0 0.0
        %312 = vmatprep.subr.mxu0 0.0
        %313 = vmatpush1.msra.mxu0 0.0
        %314 = vmatprep.subr.mxu0 0.0
        %315 = vmatpush1.msra.mxu0 0.0
        %316 = vmatprep.subr.mxu0 0.0
        %317 = vmatpush1.msra.mxu0 0.0
        %318 = vmatprep.subr.mxu0 0.0
        %319 = vmatpush1.msra.mxu0 0.0
        %320 = vmatprep.mubr.f32.mxu0 0.0
        %321 = vmatmul.mubr.f32.gmra.mrb[0].mxu0 %v248
        %v322 = vpop.f32.mrb[0].mxu0
        %v323 = vadd.f32 0.0, %v322
        %v324 = vpop.f32.mrb[0].mxu0
        %325 = vmatprep.mubr.f32.mxu0 0.0
        %326 = vmatmul.mubr.f32.gmra.mrb[0].mxu0 %v251
        %v327 = vpop.f32.mrb[0].mxu0
        %v328 = vadd.f32 0.0, %v327
        %v329 = vpop.f32.mrb[0].mxu0
        %330 = vmatprep.mubr.f32.mxu0 0.0
        %331 = vmatmul.mubr.f32.gmra.mrb[0].mxu0 %v254
        %v332 = vpop.f32.mrb[0].mxu0
        %v333 = vadd.f32 0.0, %v332
        %v334 = vpop.f32.mrb[0].mxu0
        %335 = vdwg.mxu0
        %v336 = vld [vmem:[%s1 + $0x38] sm:$0xff]
        %v337 = vld [vmem:[%s1 + $0x40] sm:$0xff]
        %v338 = vld [vmem:[%s1 + $0x48] sm:$0xff]
        %v339 = vld [vmem:[%s1 + $0x50] sm:$0xff]
        %v340 = vld [vmem:[%s1 + $0x58] sm:$0xff]
        %v341 = vld [vmem:[%s1 + $0x60] sm:$0xff]
        %v342 = vld [vmem:[%s1 + $0x68] sm:$0xff]
        %v343 = vld [vmem:[%s1 + $0x70] sm:$0xff]
        %vm344 = vcmask 261120
        %v346 = vsel %vm344, %v328, 0
        %348 = vmatprep.subr.mxu0 0.0
        %349 = vmatpush1.msra.mxu0 %v340
        %350 = vmatprep.subr.mxu0 0.0
        %351 = vmatpush1.msra.mxu0 %v341
        %352 = vmatprep.subr.mxu0 0.0
        %353 = vmatpush1.msra.mxu0 %v342
        %354 = vmatprep.subr.mxu0 0.0
        %355 = vmatpush1.msra.mxu0 %v343
        %356 = vmatprep.subr.mxu0 0.0
        %357 = vmatpush1.msra.mxu0 0.0
        %358 = vmatprep.subr.mxu0 0.0
        %359 = vmatpush1.msra.mxu0 0.0
        %360 = vmatprep.subr.mxu0 0.0
        %361 = vmatpush1.msra.mxu0 0.0
        %362 = vmatprep.subr.mxu0 0.0
        %363 = vmatpush1.msra.mxu0 0.0
        %364 = vmatprep.subr.mxu0 0.0
        %365 = vmatpush1.msra.mxu0 0.0
        %366 = vmatprep.subr.mxu0 0.0
        %367 = vmatpush1.msra.mxu0 0.0
        %368 = vmatprep.subr.mxu0 0.0
        %369 = vmatpush1.msra.mxu0 0.0
        %370 = vmatprep.subr.mxu0 0.0
        %371 = vmatpush1.msra.mxu0 0.0
        %372 = vmatprep.subr.mxu0 0.0
        %373 = vmatpush1.msra.mxu0 0.0
        %374 = vmatprep.subr.mxu0 0.0
        %375 = vmatpush1.msra.mxu0 0.0
        %376 = vmatprep.subr.mxu0 0.0
        %377 = vmatpush1.msra.mxu0 0.0
        %378 = vmatprep.subr.mxu0 0.0
        %379 = vmatpush1.msra.mxu0 0.0
        %380 = vmatprep.subr.mxu0 0.0
        %381 = vmatpush1.msra.mxu0 0.0
        %382 = vmatprep.subr.mxu0 0.0
        %383 = vmatpush1.msra.mxu0 0.0
        %384 = vmatprep.subr.mxu0 0.0
        %385 = vmatpush1.msra.mxu0 0.0
        %386 = vmatprep.subr.mxu0 0.0
        %387 = vmatpush1.msra.mxu0 0.0
        %388 = vmatprep.subr.mxu0 0.0
        %389 = vmatpush1.msra.mxu0 0.0
        %390 = vmatprep.subr.mxu0 0.0
        %391 = vmatpush1.msra.mxu0 0.0
        %392 = vmatprep.subr.mxu0 0.0
        %393 = vmatpush1.msra.mxu0 0.0
        %394 = vmatprep.subr.mxu0 0.0
        %395 = vmatpush1.msra.mxu0 0.0
        %396 = vmatprep.subr.mxu0 0.0
        %397 = vmatpush1.msra.mxu0 0.0
        %398 = vmatprep.subr.mxu0 0.0
        %399 = vmatpush1.msra.mxu0 0.0
        %400 = vmatprep.subr.mxu0 0.0
        %401 = vmatpush1.msra.mxu0 0.0
        %402 = vmatprep.subr.mxu0 0.0
        %403 = vmatpush1.msra.mxu0 0.0
        %404 = vmatprep.subr.mxu0 0.0
        %405 = vmatpush1.msra.mxu0 0.0
        %406 = vmatprep.subr.mxu0 0.0
        %407 = vmatpush1.msra.mxu0 0.0
        %408 = vmatprep.subr.mxu0 0.0
        %409 = vmatpush1.msra.mxu0 0.0
        %410 = vmatprep.subr.mxu0 0.0
        %411 = vmatpush1.msra.mxu0 0.0
        %412 = vmatprep.mubr.f32.mxu0 0.0
        %413 = vmatmul.mubr.f32.gmra.mrb[0].mxu0 %v346
        %v414 = vpop.f32.mrb[0].mxu0
        %v415 = vadd.f32 0.0, %v414
        %v416 = vpop.f32.mrb[0].mxu0
        %417 = vdwg.mxu0
        %v419 = vsel %vm344, %v323, 0
        %421 = vmatprep.subr.mxu0 0.0
        %422 = vmatpush1.msra.mxu0 %v336
        %423 = vmatprep.subr.mxu0 0.0
        %424 = vmatpush1.msra.mxu0 %v337
        %425 = vmatprep.subr.mxu0 0.0
        %426 = vmatpush1.msra.mxu0 %v338
        %427 = vmatprep.subr.mxu0 0.0
        %428 = vmatpush1.msra.mxu0 %v339
        %429 = vmatprep.subr.mxu0 0.0
        %430 = vmatpush1.msra.mxu0 0.0
        %431 = vmatprep.subr.mxu0 0.0
        %432 = vmatpush1.msra.mxu0 0.0
        %433 = vmatprep.subr.mxu0 0.0
        %434 = vmatpush1.msra.mxu0 0.0
        %435 = vmatprep.subr.mxu0 0.0
        %436 = vmatpush1.msra.mxu0 0.0
        %437 = vmatprep.subr.mxu0 0.0
        %438 = vmatpush1.msra.mxu0 0.0
        %439 = vmatprep.subr.mxu0 0.0
        %440 = vmatpush1.msra.mxu0 0.0
        %441 = vmatprep.subr.mxu0 0.0
        %442 = vmatpush1.msra.mxu0 0.0
        %443 = vmatprep.subr.mxu0 0.0
        %444 = vmatpush1.msra.mxu0 0.0
        %445 = vmatprep.subr.mxu0 0.0
        %446 = vmatpush1.msra.mxu0 0.0
        %447 = vmatprep.subr.mxu0 0.0
        %448 = vmatpush1.msra.mxu0 0.0
        %449 = vmatprep.subr.mxu0 0.0
        %450 = vmatpush1.msra.mxu0 0.0
        %451 = vmatprep.subr.mxu0 0.0
        %452 = vmatpush1.msra.mxu0 0.0
        %453 = vmatprep.subr.mxu0 0.0
        %454 = vmatpush1.msra.mxu0 0.0
        %455 = vmatprep.subr.mxu0 0.0
        %456 = vmatpush1.msra.mxu0 0.0
        %457 = vmatprep.subr.mxu0 0.0
        %458 = vmatpush1.msra.mxu0 0.0
        %459 = vmatprep.subr.mxu0 0.0
        %460 = vmatpush1.msra.mxu0 0.0
        %461 = vmatprep.subr.mxu0 0.0
        %462 = vmatpush1.msra.mxu0 0.0
        %463 = vmatprep.subr.mxu0 0.0
        %464 = vmatpush1.msra.mxu0 0.0
        %465 = vmatprep.subr.mxu0 0.0
        %466 = vmatpush1.msra.mxu0 0.0
        %467 = vmatprep.subr.mxu0 0.0
        %468 = vmatpush1.msra.mxu0 0.0
        %469 = vmatprep.subr.mxu0 0.0
        %470 = vmatpush1.msra.mxu0 0.0
        %471 = vmatprep.subr.mxu0 0.0
        %472 = vmatpush1.msra.mxu0 0.0
        %473 = vmatprep.subr.mxu0 0.0
        %474 = vmatpush1.msra.mxu0 0.0
        %475 = vmatprep.subr.mxu0 0.0
        %476 = vmatpush1.msra.mxu0 0.0
        %477 = vmatprep.subr.mxu0 0.0
        %478 = vmatpush1.msra.mxu0 0.0
        %479 = vmatprep.subr.mxu0 0.0
        %480 = vmatpush1.msra.mxu0 0.0
        %481 = vmatprep.subr.mxu0 0.0
        %482 = vmatpush1.msra.mxu0 0.0
        %483 = vmatprep.subr.mxu0 0.0
        %484 = vmatpush1.msra.mxu0 0.0
        %485 = vmatprep.mubr.f32.mxu0 0.0
        %486 = vmatmul.mubr.f32.gmra.mrb[0].mxu0 %v419
        %v487 = vpop.f32.mrb[0].mxu0
        %v488 = vadd.f32 %v415, %v487
        %v489 = vpop.f32.mrb[0].mxu0
        %490 = vdwg.mxu0
        %v491 = vld [vmem:[%s1 + $0x78] sm:$0xff]
        %v492 = vld [vmem:[%s1 + $0x80] sm:$0xff]
        %v493 = vld [vmem:[%s1 + $0x88] sm:$0xff]
        %v494 = vld [vmem:[%s1 + $0x90] sm:$0xff]
        %v496 = vsel %vm344, %v333, 0
        %498 = vmatprep.subr.mxu0 0.0
        %499 = vmatpush1.msra.mxu0 %v491
        %500 = vmatprep.subr.mxu0 0.0
        %501 = vmatpush1.msra.mxu0 %v492
        %502 = vmatprep.subr.mxu0 0.0
        %503 = vmatpush1.msra.mxu0 %v493
        %504 = vmatprep.subr.mxu0 0.0
        %505 = vmatpush1.msra.mxu0 %v494
        %506 = vmatprep.subr.mxu0 0.0
        %507 = vmatpush1.msra.mxu0 0.0
        %508 = vmatprep.subr.mxu0 0.0
        %509 = vmatpush1.msra.mxu0 0.0
        %510 = vmatprep.subr.mxu0 0.0
        %511 = vmatpush1.msra.mxu0 0.0
        %512 = vmatprep.subr.mxu0 0.0
        %513 = vmatpush1.msra.mxu0 0.0
        %514 = vmatprep.subr.mxu0 0.0
        %515 = vmatpush1.msra.mxu0 0.0
        %516 = vmatprep.subr.mxu0 0.0
        %517 = vmatpush1.msra.mxu0 0.0
        %518 = vmatprep.subr.mxu0 0.0
        %519 = vmatpush1.msra.mxu0 0.0
        %520 = vmatprep.subr.mxu0 0.0
        %521 = vmatpush1.msra.mxu0 0.0
        %522 = vmatprep.subr.mxu0 0.0
        %523 = vmatpush1.msra.mxu0 0.0
        %524 = vmatprep.subr.mxu0 0.0
        %525 = vmatpush1.msra.mxu0 0.0
        %526 = vmatprep.subr.mxu0 0.0
        %527 = vmatpush1.msra.mxu0 0.0
        %528 = vmatprep.subr.mxu0 0.0
        %529 = vmatpush1.msra.mxu0 0.0
        %530 = vmatprep.subr.mxu0 0.0
        %531 = vmatpush1.msra.mxu0 0.0
        %532 = vmatprep.subr.mxu0 0.0
        %533 = vmatpush1.msra.mxu0 0.0
        %534 = vmatprep.subr.mxu0 0.0
        %535 = vmatpush1.msra.mxu0 0.0
        %536 = vmatprep.subr.mxu0 0.0
        %537 = vmatpush1.msra.mxu0 0.0
        %538 = vmatprep.subr.mxu0 0.0
        %539 = vmatpush1.msra.mxu0 0.0
        %540 = vmatprep.subr.mxu0 0.0
        %541 = vmatpush1.msra.mxu0 0.0
        %542 = vmatprep.subr.mxu0 0.0
        %543 = vmatpush1.msra.mxu0 0.0
        %544 = vmatprep.subr.mxu0 0.0
        %545 = vmatpush1.msra.mxu0 0.0
        %546 = vmatprep.subr.mxu0 0.0
        %547 = vmatpush1.msra.mxu0 0.0
        %548 = vmatprep.subr.mxu0 0.0
        %549 = vmatpush1.msra.mxu0 0.0
        %550 = vmatprep.subr.mxu0 0.0
        %551 = vmatpush1.msra.mxu0 0.0
        %552 = vmatprep.subr.mxu0 0.0
        %553 = vmatpush1.msra.mxu0 0.0
        %554 = vmatprep.subr.mxu0 0.0
        %555 = vmatpush1.msra.mxu0 0.0
        %556 = vmatprep.subr.mxu0 0.0
        %557 = vmatpush1.msra.mxu0 0.0
        %558 = vmatprep.subr.mxu0 0.0
        %559 = vmatpush1.msra.mxu0 0.0
        %560 = vmatprep.subr.mxu0 0.0
        %561 = vmatpush1.msra.mxu0 0.0
        %562 = vmatprep.mubr.f32.mxu0 0.0
        %563 = vmatmul.mubr.f32.gmra.mrb[0].mxu0 %v496
        %v564 = vpop.f32.mrb[0].mxu0
        %v565 = vadd.f32 0.0, %v564
        %v566 = vpop.f32.mrb[0].mxu0
        %567 = vdwg.mxu0
        %v568 = vadd.f32 %v488, %v565
        %v569 = vld [vmem:[%s1 + $0x98] sm:$0x1]
        %v570 = vlaneseq
        %v571 = vshrl.u32 %v570, 7
        %v572 = vsub.s32 0, %v571
        %v573 = vrot.slane %v569, %v572
        %v574 = vadd.f32 %v568, %v573
        %v575 = vmul.f32 %v574, 0.5
        %v576 = vmul.f32 %v574, 0.70710677
        %v577 = verf.f32.pop %v576
        %v578 = vadd.f32 %v577, 1.0
        %v579 = vmul.f32 %v575, %v578
        %v580 = vld [vmem:[%s1 + $0xa0] sm:$0xff]
        %v581 = vadd.f32 %v579, %v580
        %v582 = vld [vmem:[%s1 + $0xa8] sm:$0x1]
        %v583 = vld [vmem:[%s1 + $0xb0] sm:$0x1]
        %v584 = vsel %vm344, %v581, 0.0
        %585 = vadd.xlane.f32.xlu0 %v584
        %v586 = vpop.xlane.xlu0 %585
        %v587 = vrcp.pop 32.0
        %v588 = vmul.f32 %v586, %v587
        %v589 = vsub.f32 %v581, %v588
        %v590 = vmul.f32 %v589, %v589
        %v591 = vsel %vm344, %v590, 0.0
        %592 = vadd.xlane.f32.xlu0 %v591
        %v593 = vpop.xlane.xlu0 %592
        %v594 = vmul.f32 %v593, %v587
        %v595 = vadd.f32 %v594, 1e-05
        %v596 = vrsqrt.pop %v595
        %v597 = vmul.f32 %v589, %v596
        %v598 = vlaneseq
        %v599 = vshrl.u32 %v598, 7
        %v600 = vsub.s32 0, %v599
        %v601 = vrot.slane %v582, %v600
        %v602 = vmul.f32 %v597, %v601
        %v603 = vlaneseq
        %v604 = vshrl.u32 %v603, 7
        %v605 = vsub.s32 0, %v604
        %v606 = vrot.slane %v583, %v605
        %v607 = vadd.f32 %v602, %v606
        %v608 = vld [vmem:[%s1 + $0xb8] sm:$0xff]
        %v609 = vld [vmem:[%s1 + $0xc0] sm:$0xff]
        %v610 = vld [vmem:[%s1 + $0xc8] sm:$0xff]
        %v611 = vld [vmem:[%s1 + $0xd0] sm:$0xff]
        %v612 = vld [vmem:[%s1 + $0xd8] sm:$0x1]
        %v613 = vlaneseq
        %v614 = vshrl.u32 %v613, 7
        %v615 = vsub.s32 0, %v614
        %v616 = vrot.slane %v612, %v615
        %v618 = vsel %vm344, %v607, 0
        %620 = vmatprep.subr.mxu0 0.0
        %621 = vmatpush1.msra.mxu0 %v608
        %622 = vmatprep.subr.mxu0 0.0
        %623 = vmatpush1.msra.mxu0 %v609
        %624 = vmatprep.subr.mxu0 0.0
        %625 = vmatpush1.msra.mxu0 %v610
        %626 = vmatprep.subr.mxu0 0.0
        %627 = vmatpush1.msra.mxu0 %v611
        %628 = vmatprep.subr.mxu0 0.0
        %629 = vmatpush1.msra.mxu0 0.0
        %630 = vmatprep.subr.mxu0 0.0
        %631 = vmatpush1.msra.mxu0 0.0
        %632 = vmatprep.subr.mxu0 0.0
        %633 = vmatpush1.msra.mxu0 0.0
        %634 = vmatprep.subr.mxu0 0.0
        %635 = vmatpush1.msra.mxu0 0.0
        %636 = vmatprep.subr.mxu0 0.0
        %637 = vmatpush1.msra.mxu0 0.0
        %638 = vmatprep.subr.mxu0 0.0
        %639 = vmatpush1.msra.mxu0 0.0
        %640 = vmatprep.subr.mxu0 0.0
        %641 = vmatpush1.msra.mxu0 0.0
        %642 = vmatprep.subr.mxu0 0.0
        %643 = vmatpush1.msra.mxu0 0.0
        %644 = vmatprep.subr.mxu0 0.0
        %645 = vmatpush1.msra.mxu0 0.0
        %646 = vmatprep.subr.mxu0 0.0
        %647 = vmatpush1.msra.mxu0 0.0
        %648 = vmatprep.subr.mxu0 0.0
        %649 = vmatpush1.msra.mxu0 0.0
        %650 = vmatprep.subr.mxu0 0.0
        %651 = vmatpush1.msra.mxu0 0.0
        %652 = vmatprep.subr.mxu0 0.0
        %653 = vmatpush1.msra.mxu0 0.0
        %654 = vmatprep.subr.mxu0 0.0
        %655 = vmatpush1.msra.mxu0 0.0
        %656 = vmatprep.subr.mxu0 0.0
        %657 = vmatpush1.msra.mxu0 0.0
        %658 = vmatprep.subr.mxu0 0.0
        %659 = vmatpush1.msra.mxu0 0.0
        %660 = vmatprep.subr.mxu0 0.0
        %661 = vmatpush1.msra.mxu0 0.0
        %662 = vmatprep.subr.mxu0 0.0
        %663 = vmatpush1.msra.mxu0 0.0
        %664 = vmatprep.subr.mxu0 0.0
        %665 = vmatpush1.msra.mxu0 0.0
        %666 = vmatprep.subr.mxu0 0.0
        %667 = vmatpush1.msra.mxu0 0.0
        %668 = vmatprep.subr.mxu0 0.0
        %669 = vmatpush1.msra.mxu0 0.0
        %670 = vmatprep.subr.mxu0 0.0
        %671 = vmatpush1.msra.mxu0 0.0
        %672 = vmatprep.subr.mxu0 0.0
        %673 = vmatpush1.msra.mxu0 0.0
        %674 = vmatprep.subr.mxu0 0.0
        %675 = vmatpush1.msra.mxu0 0.0
        %676 = vmatprep.subr.mxu0 0.0
        %677 = vmatpush1.msra.mxu0 0.0
        %678 = vmatprep.subr.mxu0 0.0
        %679 = vmatpush1.msra.mxu0 0.0
        %680 = vmatprep.subr.mxu0 0.0
        %681 = vmatpush1.msra.mxu0 0.0
        %682 = vmatprep.subr.mxu0 0.0
        %683 = vmatpush1.msra.mxu0 0.0
        %684 = vmatprep.mubr.f32.mxu0 0.0
        %685 = vmatmul.mubr.f32.gmra.mrb[0].mxu0 %v618
        %v686 = vpop.f32.mrb[0].mxu0
        %v687 = vadd.f32 %v616, %v686
        %v688 = vpop.f32.mrb[0].mxu0
        %689 = vdwg.mxu0
        %691 = vrot.lane.b32.xlu0 %v687, 96
        %v692 = vpop.permute.xlu0 %691
        %vm693 = vcmask 64512
        %v694 = vsel %vm693, %v687, 0
        %v696 = vsel %vm693, %v692, 0
        %698 = vmatprep.subr.mxu0 0.0
        %699 = vmatpush1.xpose.msra.mxu0 %v696
        %700 = vmatprep.subr.mxu0 0.0
        %701 = vmatpush1.xpose.msra.mxu0 0.0
        %702 = vmatprep.subr.mxu0 0.0
        %703 = vmatpush1.xpose.msra.mxu0 0.0
        %704 = vmatprep.subr.mxu0 0.0
        %705 = vmatpush1.xpose.msra.mxu0 0.0
        %706 = vmatprep.subr.mxu0 0.0
        %707 = vmatpush1.xpose.msra.mxu0 0.0
        %708 = vmatprep.subr.mxu0 0.0
        %709 = vmatpush1.xpose.msra.mxu0 0.0
        %710 = vmatprep.subr.mxu0 0.0
        %711 = vmatpush1.xpose.msra.mxu0 0.0
        %712 = vmatprep.subr.mxu0 0.0
        %713 = vmatpush1.xpose.msra.mxu0 0.0
        %714 = vmatprep.subr.mxu0 0.0
        %715 = vmatpush1.xpose.msra.mxu0 0.0
        %716 = vmatprep.subr.mxu0 0.0
        %717 = vmatpush1.xpose.msra.mxu0 0.0
        %718 = vmatprep.subr.mxu0 0.0
        %719 = vmatpush1.xpose.msra.mxu0 0.0
        %720 = vmatprep.subr.mxu0 0.0
        %721 = vmatpush1.xpose.msra.mxu0 0.0
        %722 = vmatprep.subr.mxu0 0.0
        %723 = vmatpush1.xpose.msra.mxu0 0.0
        %724 = vmatprep.subr.mxu0 0.0
        %725 = vmatpush1.xpose.msra.mxu0 0.0
        %726 = vmatprep.subr.mxu0 0.0
        %727 = vmatpush1.xpose.msra.mxu0 0.0
        %728 = vmatprep.subr.mxu0 0.0
        %729 = vmatpush1.xpose.msra.mxu0 0.0
        %730 = vmatprep.subr.mxu0 0.0
        %731 = vmatpush1.xpose.msra.mxu0 0.0
        %732 = vmatprep.subr.mxu0 0.0
        %733 = vmatpush1.xpose.msra.mxu0 0.0
        %734 = vmatprep.subr.mxu0 0.0
        %735 = vmatpush1.xpose.msra.mxu0 0.0
        %736 = vmatprep.subr.mxu0 0.0
        %737 = vmatpush1.xpose.msra.mxu0 0.0
        %738 = vmatprep.subr.mxu0 0.0
        %739 = vmatpush1.xpose.msra.mxu0 0.0
        %740 = vmatprep.subr.mxu0 0.0
        %741 = vmatpush1.xpose.msra.mxu0 0.0
        %742 = vmatprep.subr.mxu0 0.0
        %743 = vmatpush1.xpose.msra.mxu0 0.0
        %744 = vmatprep.subr.mxu0 0.0
        %745 = vmatpush1.xpose.msra.mxu0 0.0
        %746 = vmatprep.subr.mxu0 0.0
        %747 = vmatpush1.xpose.msra.mxu0 0.0
        %748 = vmatprep.subr.mxu0 0.0
        %749 = vmatpush1.xpose.msra.mxu0 0.0
        %750 = vmatprep.subr.mxu0 0.0
        %751 = vmatpush1.xpose.msra.mxu0 0.0
        %752 = vmatprep.subr.mxu0 0.0
        %753 = vmatpush1.xpose.msra.mxu0 0.0
        %754 = vmatprep.subr.mxu0 0.0
        %755 = vmatpush1.xpose.msra.mxu0 0.0
        %756 = vmatprep.subr.mxu0 0.0
        %757 = vmatpush1.xpose.msra.mxu0 0.0
        %758 = vmatprep.subr.mxu0 0.0
        %759 = vmatpush1.xpose.msra.mxu0 0.0
        %760 = vmatprep.subr.mxu0 0.0
        %761 = vmatpush1.xpose.msra.mxu0 0.0
        %762 = vmatprep.mubr.f32.mxu0 0.0
        %763 = vmatmul.mubr.f32.gmra.mrb[0].mxu0 %v694
        %v764 = vpop.f32.mrb[0].mxu0
        %v765 = vadd.f32 0.0, %v764
        %v766 = vpop.f32.mrb[0].mxu0
        %767 = vdwg.mxu0
        %v768 = vsel %vm693, %v765, -inf
        %769 = vmax.xlane.f32.xlu0 %v768
        %v770 = vpop.xlane.xlu0 %769
        %v771 = vsub.f32 %v765, %v770
        %v772 = vmul.f32 %v771, 1.442695
        %v773 = vpow.pop %v772
        %v774 = vsel %vm693, %v773, 0.0
        %775 = vadd.xlane.f32.xlu0 %v774
        %v776 = vpop.xlane.xlu0 %775
        %v777 = vrcp.pop %v776
        %v778 = vmul.f32 %v773, %v777
        %779 = vrot.lane.b32.xlu0 %v687, 64
        %v780 = vpop.permute.xlu0 %779
        %v783 = vsel %vm693, %v778, 0
        %785 = vmatprep.subr.mxu0 0.0
        %786 = vmatpush1.msra.mxu0 %v780
        %787 = vmatprep.subr.mxu0 0.0
        %788 = vmatpush1.msra.mxu0 0.0
        %789 = vmatprep.subr.mxu0 0.0
        %790 = vmatpush1.msra.mxu0 0.0
        %791 = vmatprep.subr.mxu0 0.0
        %792 = vmatpush1.msra.mxu0 0.0
        %793 = vmatprep.subr.mxu0 0.0
        %794 = vmatpush1.msra.mxu0 0.0
        %795 = vmatprep.subr.mxu0 0.0
        %796 = vmatpush1.msra.mxu0 0.0
        %797 = vmatprep.subr.mxu0 0.0
        %798 = vmatpush1.msra.mxu0 0.0
        %799 = vmatprep.subr.mxu0 0.0
        %800 = vmatpush1.msra.mxu0 0.0
        %801 = vmatprep.subr.mxu0 0.0
        %802 = vmatpush1.msra.mxu0 0.0
        %803 = vmatprep.subr.mxu0 0.0
        %804 = vmatpush1.msra.mxu0 0.0
        %805 = vmatprep.subr.mxu0 0.0
        %806 = vmatpush1.msra.mxu0 0.0
        %807 = vmatprep.subr.mxu0 0.0
        %808 = vmatpush1.msra.mxu0 0.0
        %809 = vmatprep.subr.mxu0 0.0
        %810 = vmatpush1.msra.mxu0 0.0
        %811 = vmatprep.subr.mxu0 0.0
        %812 = vmatpush1.msra.mxu0 0.0
        %813 = vmatprep.subr.mxu0 0.0
        %814 = vmatpush1.msra.mxu0 0.0
        %815 = vmatprep.subr.mxu0 0.0
        %816 = vmatpush1.msra.mxu0 0.0
        %817 = vmatprep.subr.mxu0 0.0
        %818 = vmatpush1.msra.mxu0 0.0
        %819 = vmatprep.subr.mxu0 0.0
        %820 = vmatpush1.msra.mxu0 0.0
        %821 = vmatprep.subr.mxu0 0.0
        %822 = vmatpush1.msra.mxu0 0.0
        %823 = vmatprep.subr.mxu0 0.0
        %824 = vmatpush1.msra.mxu0 0.0
        %825 = vmatprep.subr.mxu0 0.0
        %826 = vmatpush1.msra.mxu0 0.0
        %827 = vmatprep.subr.mxu0 0.0
        %828 = vmatpush1.msra.mxu0 0.0
        %829 = vmatprep.subr.mxu0 0.0
        %830 = vmatpush1.msra.mxu0 0.0
        %831 = vmatprep.subr.mxu0 0.0
        %832 = vmatpush1.msra.mxu0 0.0
        %833 = vmatprep.subr.mxu0 0.0
        %834 = vmatpush1.msra.mxu0 0.0
        %835 = vmatprep.subr.mxu0 0.0
        %836 = vmatpush1.msra.mxu0 0.0
        %837 = vmatprep.subr.mxu0 0.0
        %838 = vmatpush1.msra.mxu0 0.0
        %839 = vmatprep.subr.mxu0 0.0
        %840 = vmatpush1.msra.mxu0 0.0
        %841 = vmatprep.subr.mxu0 0.0
        %842 = vmatpush1.msra.mxu0 0.0
        %843 = vmatprep.subr.mxu0 0.0
        %844 = vmatpush1.msra.mxu0 0.0
        %845 = vmatprep.subr.mxu0 0.0
        %846 = vmatpush1.msra.mxu0 0.0
        %847 = vmatprep.subr.mxu0 0.0
        %848 = vmatpush1.msra.mxu0 0.0
        %849 = vmatprep.mubr.f32.mxu0 0.0
        %850 = vmatmul.mubr.f32.gmra.mrb[0].mxu0 %v783
        %v851 = vpop.f32.mrb[0].mxu0
        %v852 = vadd.f32 0.0, %v851
        %v853 = vpop.f32.mrb[0].mxu0
        %854 = vdwg.mxu0
        %v855 = vld [vmem:[%s1 + $0xe0] sm:$0xff]
        %856 = vrot.lane.b32.xlu0 %v687, 120
        %v857 = vpop.permute.xlu0 %856
        %858 = vrot.lane.b32.xlu0 %v687, 88
        %v859 = vpop.permute.xlu0 %858
        %v860 = vsel %vm693, %v857, 0
        %v862 = vsel %vm693, %v859, 0
        %864 = vmatprep.subr.mxu0 0.0
        %865 = vmatpush1.xpose.msra.mxu0 %v862
        %866 = vmatprep.subr.mxu0 0.0
        %867 = vmatpush1.xpose.msra.mxu0 0.0
        %868 = vmatprep.subr.mxu0 0.0
        %869 = vmatpush1.xpose.msra.mxu0 0.0
        %870 = vmatprep.subr.mxu0 0.0
        %871 = vmatpush1.xpose.msra.mxu0 0.0
        %872 = vmatprep.subr.mxu0 0.0
        %873 = vmatpush1.xpose.msra.mxu0 0.0
        %874 = vmatprep.subr.mxu0 0.0
        %875 = vmatpush1.xpose.msra.mxu0 0.0
        %876 = vmatprep.subr.mxu0 0.0
        %877 = vmatpush1.xpose.msra.mxu0 0.0
        %878 = vmatprep.subr.mxu0 0.0
        %879 = vmatpush1.xpose.msra.mxu0 0.0
        %880 = vmatprep.subr.mxu0 0.0
        %881 = vmatpush1.xpose.msra.mxu0 0.0
        %882 = vmatprep.subr.mxu0 0.0
        %883 = vmatpush1.xpose.msra.mxu0 0.0
        %884 = vmatprep.subr.mxu0 0.0
        %885 = vmatpush1.xpose.msra.mxu0 0.0
        %886 = vmatprep.subr.mxu0 0.0
        %887 = vmatpush1.xpose.msra.mxu0 0.0
        %888 = vmatprep.subr.mxu0 0.0
        %889 = vmatpush1.xpose.msra.mxu0 0.0
        %890 = vmatprep.subr.mxu0 0.0
        %891 = vmatpush1.xpose.msra.mxu0 0.0
        %892 = vmatprep.subr.mxu0 0.0
        %893 = vmatpush1.xpose.msra.mxu0 0.0
        %894 = vmatprep.subr.mxu0 0.0
        %895 = vmatpush1.xpose.msra.mxu0 0.0
        %896 = vmatprep.subr.mxu0 0.0
        %897 = vmatpush1.xpose.msra.mxu0 0.0
        %898 = vmatprep.subr.mxu0 0.0
        %899 = vmatpush1.xpose.msra.mxu0 0.0
        %900 = vmatprep.subr.mxu0 0.0
        %901 = vmatpush1.xpose.msra.mxu0 0.0
        %902 = vmatprep.subr.mxu0 0.0
        %903 = vmatpush1.xpose.msra.mxu0 0.0
        %904 = vmatprep.subr.mxu0 0.0
        %905 = vmatpush1.xpose.msra.mxu0 0.0
        %906 = vmatprep.subr.mxu0 0.0
        %907 = vmatpush1.xpose.msra.mxu0 0.0
        %908 = vmatprep.subr.mxu0 0.0
        %909 = vmatpush1.xpose.msra.mxu0 0.0
        %910 = vmatprep.subr.mxu0 0.0
        %911 = vmatpush1.xpose.msra.mxu0 0.0
        %912 = vmatprep.subr.mxu0 0.0
        %913 = vmatpush1.xpose.msra.mxu0 0.0
        %914 = vmatprep.subr.mxu0 0.0
        %915 = vmatpush1.xpose.msra.mxu0 0.0
        %916 = vmatprep.subr.mxu0 0.0
        %917 = vmatpush1.xpose.msra.mxu0 0.0
        %918 = vmatprep.subr.mxu0 0.0
        %919 = vmatpush1.xpose.msra.mxu0 0.0
        %920 = vmatprep.subr.mxu0 0.0
        %921 = vmatpush1.xpose.msra.mxu0 0.0
        %922 = vmatprep.subr.mxu0 0.0
        %923 = vmatpush1.xpose.msra.mxu0 0.0
        %924 = vmatprep.subr.mxu0 0.0
        %925 = vmatpush1.xpose.msra.mxu0 0.0
        %926 = vmatprep.subr.mxu0 0.0
        %927 = vmatpush1.xpose.msra.mxu0 0.0
        %928 = vmatprep.mubr.f32.mxu0 0.0
        %929 = vmatmul.mubr.f32.gmra.mrb[0].mxu0 %v860
        %v930 = vpop.f32.mrb[0].mxu0
        %v931 = vadd.f32 0.0, %v930
        %v932 = vpop.f32.mrb[0].mxu0
        %933 = vdwg.mxu0
        %v934 = vsel %vm693, %v931, -inf
        %935 = vmax.xlane.f32.xlu0 %v934
        %v936 = vpop.xlane.xlu0 %935
        %v937 = vsub.f32 %v931, %v936
        %v938 = vmul.f32 %v937, 1.442695
        %v939 = vpow.pop %v938
        %v940 = vsel %vm693, %v939, 0.0
        %941 = vadd.xlane.f32.xlu0 %v940
        %v942 = vpop.xlane.xlu0 %941
        %v943 = vrcp.pop %v942
        %v944 = vmul.f32 %v939, %v943
        %945 = vrot.lane.b32.xlu0 %v687, 56
        %v946 = vpop.permute.xlu0 %945
        %v949 = vsel %vm693, %v944, 0
        %951 = vmatprep.subr.mxu0 0.0
        %952 = vmatpush1.msra.mxu0 %v946
        %953 = vmatprep.subr.mxu0 0.0
        %954 = vmatpush1.msra.mxu0 0.0
        %955 = vmatprep.subr.mxu0 0.0
        %956 = vmatpush1.msra.mxu0 0.0
        %957 = vmatprep.subr.mxu0 0.0
        %958 = vmatpush1.msra.mxu0 0.0
        %959 = vmatprep.subr.mxu0 0.0
        %960 = vmatpush1.msra.mxu0 0.0
        %961 = vmatprep.subr.mxu0 0.0
        %962 = vmatpush1.msra.mxu0 0.0
        %963 = vmatprep.subr.mxu0 0.0
        %964 = vmatpush1.msra.mxu0 0.0
        %965 = vmatprep.subr.mxu0 0.0
        %966 = vmatpush1.msra.mxu0 0.0
        %967 = vmatprep.subr.mxu0 0.0
        %968 = vmatpush1.msra.mxu0 0.0
        %969 = vmatprep.subr.mxu0 0.0
        %970 = vmatpush1.msra.mxu0 0.0
        %971 = vmatprep.subr.mxu0 0.0
        %972 = vmatpush1.msra.mxu0 0.0
        %973 = vmatprep.subr.mxu0 0.0
        %974 = vmatpush1.msra.mxu0 0.0
        %975 = vmatprep.subr.mxu0 0.0
        %976 = vmatpush1.msra.mxu0 0.0
        %977 = vmatprep.subr.mxu0 0.0
        %978 = vmatpush1.msra.mxu0 0.0
        %979 = vmatprep.subr.mxu0 0.0
        %980 = vmatpush1.msra.mxu0 0.0
        %981 = vmatprep.subr.mxu0 0.0
        %982 = vmatpush1.msra.mxu0 0.0
        %983 = vmatprep.subr.mxu0 0.0
        %984 = vmatpush1.msra.mxu0 0.0
        %985 = vmatprep.subr.mxu0 0.0
        %986 = vmatpush1.msra.mxu0 0.0
        %987 = vmatprep.subr.mxu0 0.0
        %988 = vmatpush1.msra.mxu0 0.0
        %989 = vmatprep.subr.mxu0 0.0
        %990 = vmatpush1.msra.mxu0 0.0
        %991 = vmatprep.subr.mxu0 0.0
        %992 = vmatpush1.msra.mxu0 0.0
        %993 = vmatprep.subr.mxu0 0.0
        %994 = vmatpush1.msra.mxu0 0.0
        %995 = vmatprep.subr.mxu0 0.0
        %996 = vmatpush1.msra.mxu0 0.0
        %997 = vmatprep.subr.mxu0 0.0
        %998 = vmatpush1.msra.mxu0 0.0
        %999 = vmatprep.subr.mxu0 0.0
        %1000 = vmatpush1.msra.mxu0 0.0
        %1001 = vmatprep.subr.mxu0 0.0
        %1002 = vmatpush1.msra.mxu0 0.0
        %1003 = vmatprep.subr.mxu0 0.0
        %1004 = vmatpush1.msra.mxu0 0.0
        %1005 = vmatprep.subr.mxu0 0.0
        %1006 = vmatpush1.msra.mxu0 0.0
        %1007 = vmatprep.subr.mxu0 0.0
        %1008 = vmatpush1.msra.mxu0 0.0
        %1009 = vmatprep.subr.mxu0 0.0
        %1010 = vmatpush1.msra.mxu0 0.0
        %1011 = vmatprep.subr.mxu0 0.0
        %1012 = vmatpush1.msra.mxu0 0.0
        %1013 = vmatprep.subr.mxu0 0.0
        %1014 = vmatpush1.msra.mxu0 0.0
        %1015 = vmatprep.mubr.f32.mxu0 0.0
        %1016 = vmatmul.mubr.f32.gmra.mrb[0].mxu0 %v949
        %v1017 = vpop.f32.mrb[0].mxu0
        %v1018 = vadd.f32 0.0, %v1017
        %v1019 = vpop.f32.mrb[0].mxu0
        %1020 = vdwg.mxu0
        %v1021 = vld [vmem:[%s1 + $0xe8] sm:$0xff]
        %v1023 = vsel %vm693, %v1018, 0
        %1025 = vmatprep.subr.mxu0 0.0
        %1026 = vmatpush1.msra.mxu0 %v1021
        %1027 = vmatprep.subr.mxu0 0.0
        %1028 = vmatpush1.msra.mxu0 0.0
        %1029 = vmatprep.subr.mxu0 0.0
        %1030 = vmatpush1.msra.mxu0 0.0
        %1031 = vmatprep.subr.mxu0 0.0
        %1032 = vmatpush1.msra.mxu0 0.0
        %1033 = vmatprep.subr.mxu0 0.0
        %1034 = vmatpush1.msra.mxu0 0.0
        %1035 = vmatprep.subr.mxu0 0.0
        %1036 = vmatpush1.msra.mxu0 0.0
        %1037 = vmatprep.subr.mxu0 0.0
        %1038 = vmatpush1.msra.mxu0 0.0
        %1039 = vmatprep.subr.mxu0 0.0
        %1040 = vmatpush1.msra.mxu0 0.0
        %1041 = vmatprep.subr.mxu0 0.0
        %1042 = vmatpush1.msra.mxu0 0.0
        %1043 = vmatprep.subr.mxu0 0.0
        %1044 = vmatpush1.msra.mxu0 0.0
        %1045 = vmatprep.subr.mxu0 0.0
        %1046 = vmatpush1.msra.mxu0 0.0
        %1047 = vmatprep.subr.mxu0 0.0
        %1048 = vmatpush1.msra.mxu0 0.0
        %1049 = vmatprep.subr.mxu0 0.0
        %1050 = vmatpush1.msra.mxu0 0.0
        %1051 = vmatprep.subr.mxu0 0.0
        %1052 = vmatpush1.msra.mxu0 0.0
        %1053 = vmatprep.subr.mxu0 0.0
        %1054 = vmatpush1.msra.mxu0 0.0
        %1055 = vmatprep.subr.mxu0 0.0
        %1056 = vmatpush1.msra.mxu0 0.0
        %1057 = vmatprep.subr.mxu0 0.0
        %1058 = vmatpush1.msra.mxu0 0.0
        %1059 = vmatprep.subr.mxu0 0.0
        %1060 = vmatpush1.msra.mxu0 0.0
        %1061 = vmatprep.subr.mxu0 0.0
        %1062 = vmatpush1.msra.mxu0 0.0
        %1063 = vmatprep.subr.mxu0 0.0
        %1064 = vmatpush1.msra.mxu0 0.0
        %1065 = vmatprep.subr.mxu0 0.0
        %1066 = vmatpush1.msra.mxu0 0.0
        %1067 = vmatprep.subr.mxu0 0.0
        %1068 = vmatpush1.msra.mxu0 0.0
        %1069 = vmatprep.subr.mxu0 0.0
        %1070 = vmatpush1.msra.mxu0 0.0
        %1071 = vmatprep.subr.mxu0 0.0
        %1072 = vmatpush1.msra.mxu0 0.0
        %1073 = vmatprep.subr.mxu0 0.0
        %1074 = vmatpush1.msra.mxu0 0.0
        %1075 = vmatprep.subr.mxu0 0.0
        %1076 = vmatpush1.msra.mxu0 0.0
        %1077 = vmatprep.subr.mxu0 0.0
        %1078 = vmatpush1.msra.mxu0 0.0
        %1079 = vmatprep.subr.mxu0 0.0
        %1080 = vmatpush1.msra.mxu0 0.0
        %1081 = vmatprep.subr.mxu0 0.0
        %1082 = vmatpush1.msra.mxu0 0.0
        %1083 = vmatprep.subr.mxu0 0.0
        %1084 = vmatpush1.msra.mxu0 0.0
        %1085 = vmatprep.subr.mxu0 0.0
        %1086 = vmatpush1.msra.mxu0 0.0
        %1087 = vmatprep.subr.mxu0 0.0
        %1088 = vmatpush1.msra.mxu0 0.0
        %1089 = vmatprep.mubr.f32.mxu0 0.0
        %1090 = vmatmul.mubr.f32.gmra.mrb[0].mxu0 %v1023
        %v1091 = vpop.f32.mrb[0].mxu0
        %v1092 = vadd.f32 0.0, %v1091
        %v1093 = vpop.f32.mrb[0].mxu0
        %1094 = vdwg.mxu0
        %v1096 = vsel %vm693, %v852, 0
        %1098 = vmatprep.subr.mxu0 0.0
        %1099 = vmatpush1.msra.mxu0 %v855
        %1100 = vmatprep.subr.mxu0 0.0
        %1101 = vmatpush1.msra.mxu0 0.0
        %1102 = vmatprep.subr.mxu0 0.0
        %1103 = vmatpush1.msra.mxu0 0.0
        %1104 = vmatprep.subr.mxu0 0.0
        %1105 = vmatpush1.msra.mxu0 0.0
        %1106 = vmatprep.subr.mxu0 0.0
        %1107 = vmatpush1.msra.mxu0 0.0
        %1108 = vmatprep.subr.mxu0 0.0
        %1109 = vmatpush1.msra.mxu0 0.0
        %1110 = vmatprep.subr.mxu0 0.0
        %1111 = vmatpush1.msra.mxu0 0.0
        %1112 = vmatprep.subr.mxu0 0.0
        %1113 = vmatpush1.msra.mxu0 0.0
        %1114 = vmatprep.subr.mxu0 0.0
        %1115 = vmatpush1.msra.mxu0 0.0
        %1116 = vmatprep.subr.mxu0 0.0
        %1117 = vmatpush1.msra.mxu0 0.0
        %1118 = vmatprep.subr.mxu0 0.0
        %1119 = vmatpush1.msra.mxu0 0.0
        %1120 = vmatprep.subr.mxu0 0.0
        %1121 = vmatpush1.msra.mxu0 0.0
        %1122 = vmatprep.subr.mxu0 0.0
        %1123 = vmatpush1.msra.mxu0 0.0
        %1124 = vmatprep.subr.mxu0 0.0
        %1125 = vmatpush1.msra.mxu0 0.0
        %1126 = vmatprep.subr.mxu0 0.0
        %1127 = vmatpush1.msra.mxu0 0.0
        %1128 = vmatprep.subr.mxu0 0.0
        %1129 = vmatpush1.msra.mxu0 0.0
        %1130 = vmatprep.subr.mxu0 0.0
        %1131 = vmatpush1.msra.mxu0 0.0
        %1132 = vmatprep.subr.mxu0 0.0
        %1133 = vmatpush1.msra.mxu0 0.0
        %1134 = vmatprep.subr.mxu0 0.0
        %1135 = vmatpush1.msra.mxu0 0.0
        %1136 = vmatprep.subr.mxu0 0.0
        %1137 = vmatpush1.msra.mxu0 0.0
        %1138 = vmatprep.subr.mxu0 0.0
        %1139 = vmatpush1.msra.mxu0 0.0
        %1140 = vmatprep.subr.mxu0 0.0
        %1141 = vmatpush1.msra.mxu0 0.0
        %1142 = vmatprep.subr.mxu0 0.0
        %1143 = vmatpush1.msra.mxu0 0.0
        %1144 = vmatprep.subr.mxu0 0.0
        %1145 = vmatpush1.msra.mxu0 0.0
        %1146 = vmatprep.subr.mxu0 0.0
        %1147 = vmatpush1.msra.mxu0 0.0
        %1148 = vmatprep.subr.mxu0 0.0
        %1149 = vmatpush1.msra.mxu0 0.0
        %1150 = vmatprep.subr.mxu0 0.0
        %1151 = vmatpush1.msra.mxu0 0.0
        %1152 = vmatprep.subr.mxu0 0.0
        %1153 = vmatpush1.msra.mxu0 0.0
        %1154 = vmatprep.subr.mxu0 0.0
        %1155 = vmatpush1.msra.mxu0 0.0
        %1156 = vmatprep.subr.mxu0 0.0
        %1157 = vmatpush1.msra.mxu0 0.0
        %1158 = vmatprep.subr.mxu0 0.0
        %1159 = vmatpush1.msra.mxu0 0.0
        %1160 = vmatprep.subr.mxu0 0.0
        %1161 = vmatpush1.msra.mxu0 0.0
        %1162 = vmatprep.mubr.f32.mxu0 0.0
        %1163 = vmatmul.mubr.f32.gmra.mrb[0].mxu0 %v1096
        %v1164 = vpop.f32.mrb[0].mxu0
        %v1165 = vadd.f32 %v1092, %v1164
        %v1166 = vpop.f32.mrb[0].mxu0
        %1167 = vdwg.mxu0
        %1168 = vrot.lane.b32.xlu0 %v687, 112
        %v1169 = vpop.permute.xlu0 %1168
        %1170 = vrot.lane.b32.xlu0 %v687, 80
        %v1171 = vpop.permute.xlu0 %1170
        %v1172 = vsel %vm693, %v1169, 0
        %v1174 = vsel %vm693, %v1171, 0
        %1176 = vmatprep.subr.mxu0 0.0
        %1177 = vmatpush1.xpose.msra.mxu0 %v1174
        %1178 = vmatprep.subr.mxu0 0.0
        %1179 = vmatpush1.xpose.msra.mxu0 0.0
        %1180 = vmatprep.subr.mxu0 0.0
        %1181 = vmatpush1.xpose.msra.mxu0 0.0
        %1182 = vmatprep.subr.mxu0 0.0
        %1183 = vmatpush1.xpose.msra.mxu0 0.0
        %1184 = vmatprep.subr.mxu0 0.0
        %1185 = vmatpush1.xpose.msra.mxu0 0.0
        %1186 = vmatprep.subr.mxu0 0.0
        %1187 = vmatpush1.xpose.msra.mxu0 0.0
        %1188 = vmatprep.subr.mxu0 0.0
        %1189 = vmatpush1.xpose.msra.mxu0 0.0
        %1190 = vmatprep.subr.mxu0 0.0
        %1191 = vmatpush1.xpose.msra.mxu0 0.0
        %1192 = vmatprep.subr.mxu0 0.0
        %1193 = vmatpush1.xpose.msra.mxu0 0.0
        %1194 = vmatprep.subr.mxu0 0.0
        %1195 = vmatpush1.xpose.msra.mxu0 0.0
        %1196 = vmatprep.subr.mxu0 0.0
        %1197 = vmatpush1.xpose.msra.mxu0 0.0
        %1198 = vmatprep.subr.mxu0 0.0
        %1199 = vmatpush1.xpose.msra.mxu0 0.0
        %1200 = vmatprep.subr.mxu0 0.0
        %1201 = vmatpush1.xpose.msra.mxu0 0.0
        %1202 = vmatprep.subr.mxu0 0.0
        %1203 = vmatpush1.xpose.msra.mxu0 0.0
        %1204 = vmatprep.subr.mxu0 0.0
        %1205 = vmatpush1.xpose.msra.mxu0 0.0
        %1206 = vmatprep.subr.mxu0 0.0
        %1207 = vmatpush1.xpose.msra.mxu0 0.0
        %1208 = vmatprep.subr.mxu0 0.0
        %1209 = vmatpush1.xpose.msra.mxu0 0.0
        %1210 = vmatprep.subr.mxu0 0.0
        %1211 = vmatpush1.xpose.msra.mxu0 0.0
        %1212 = vmatprep.subr.mxu0 0.0
        %1213 = vmatpush1.xpose.msra.mxu0 0.0
        %1214 = vmatprep.subr.mxu0 0.0
        %1215 = vmatpush1.xpose.msra.mxu0 0.0
        %1216 = vmatprep.subr.mxu0 0.0
        %1217 = vmatpush1.xpose.msra.mxu0 0.0
        %1218 = vmatprep.subr.mxu0 0.0
        %1219 = vmatpush1.xpose.msra.mxu0 0.0
        %1220 = vmatprep.subr.mxu0 0.0
        %1221 = vmatpush1.xpose.msra.mxu0 0.0
        %1222 = vmatprep.subr.mxu0 0.0
        %1223 = vmatpush1.xpose.msra.mxu0 0.0
        %1224 = vmatprep.subr.mxu0 0.0
        %1225 = vmatpush1.xpose.msra.mxu0 0.0
        %1226 = vmatprep.subr.mxu0 0.0
        %1227 = vmatpush1.xpose.msra.mxu0 0.0
        %1228 = vmatprep.subr.mxu0 0.0
        %1229 = vmatpush1.xpose.msra.mxu0 0.0
        %1230 = vmatprep.subr.mxu0 0.0
        %1231 = vmatpush1.xpose.msra.mxu0 0.0
        %1232 = vmatprep.subr.mxu0 0.0
        %1233 = vmatpush1.xpose.msra.mxu0 0.0
        %1234 = vmatprep.subr.mxu0 0.0
        %1235 = vmatpush1.xpose.msra.mxu0 0.0
        %1236 = vmatprep.subr.mxu0 0.0
        %1237 = vmatpush1.xpose.msra.mxu0 0.0
        %1238 = vmatprep.subr.mxu0 0.0
        %1239 = vmatpush1.xpose.msra.mxu0 0.0
        %1240 = vmatprep.mubr.f32.mxu0 0.0
        %1241 = vmatmul.mubr.f32.gmra.mrb[0].mxu0 %v1172
        %v1242 = vpop.f32.mrb[0].mxu0
        %v1243 = vadd.f32 0.0, %v1242
        %v1244 = vpop.f32.mrb[0].mxu0
        %1245 = vdwg.mxu0
        %v1246 = vsel %vm693, %v1243, -inf
        %1247 = vmax.xlane.f32.xlu0 %v1246
        %v1248 = vpop.xlane.xlu0 %1247
        %v1249 = vsub.f32 %v1243, %v1248
        %v1250 = vmul.f32 %v1249, 1.442695
        %v1251 = vpow.pop %v1250
        %v1252 = vsel %vm693, %v1251, 0.0
        %1253 = vadd.xlane.f32.xlu0 %v1252
        %v1254 = vpop.xlane.xlu0 %1253
        %v1255 = vrcp.pop %v1254
        %v1256 = vmul.f32 %v1251, %v1255
        %1257 = vrot.lane.b32.xlu0 %v687, 48
        %v1258 = vpop.permute.xlu0 %1257
        %v1261 = vsel %vm693, %v1256, 0
        %1263 = vmatprep.subr.mxu0 0.0
        %1264 = vmatpush1.msra.mxu0 %v1258
        %1265 = vmatprep.subr.mxu0 0.0
        %1266 = vmatpush1.msra.mxu0 0.0
        %1267 = vmatprep.subr.mxu0 0.0
        %1268 = vmatpush1.msra.mxu0 0.0
        %1269 = vmatprep.subr.mxu0 0.0
        %1270 = vmatpush1.msra.mxu0 0.0
        %1271 = vmatprep.subr.mxu0 0.0
        %1272 = vmatpush1.msra.mxu0 0.0
        %1273 = vmatprep.subr.mxu0 0.0
        %1274 = vmatpush1.msra.mxu0 0.0
        %1275 = vmatprep.subr.mxu0 0.0
        %1276 = vmatpush1.msra.mxu0 0.0
        %1277 = vmatprep.subr.mxu0 0.0
        %1278 = vmatpush1.msra.mxu0 0.0
        %1279 = vmatprep.subr.mxu0 0.0
        %1280 = vmatpush1.msra.mxu0 0.0
        %1281 = vmatprep.subr.mxu0 0.0
        %1282 = vmatpush1.msra.mxu0 0.0
        %1283 = vmatprep.subr.mxu0 0.0
        %1284 = vmatpush1.msra.mxu0 0.0
        %1285 = vmatprep.subr.mxu0 0.0
        %1286 = vmatpush1.msra.mxu0 0.0
        %1287 = vmatprep.subr.mxu0 0.0
        %1288 = vmatpush1.msra.mxu0 0.0
        %1289 = vmatprep.subr.mxu0 0.0
        %1290 = vmatpush1.msra.mxu0 0.0
        %1291 = vmatprep.subr.mxu0 0.0
        %1292 = vmatpush1.msra.mxu0 0.0
        %1293 = vmatprep.subr.mxu0 0.0
        %1294 = vmatpush1.msra.mxu0 0.0
        %1295 = vmatprep.subr.mxu0 0.0
        %1296 = vmatpush1.msra.mxu0 0.0
        %1297 = vmatprep.subr.mxu0 0.0
        %1298 = vmatpush1.msra.mxu0 0.0
        %1299 = vmatprep.subr.mxu0 0.0
        %1300 = vmatpush1.msra.mxu0 0.0
        %1301 = vmatprep.subr.mxu0 0.0
        %1302 = vmatpush1.msra.mxu0 0.0
        %1303 = vmatprep.subr.mxu0 0.0
        %1304 = vmatpush1.msra.mxu0 0.0
        %1305 = vmatprep.subr.mxu0 0.0
        %1306 = vmatpush1.msra.mxu0 0.0
        %1307 = vmatprep.subr.mxu0 0.0
        %1308 = vmatpush1.msra.mxu0 0.0
        %1309 = vmatprep.subr.mxu0 0.0
        %1310 = vmatpush1.msra.mxu0 0.0
        %1311 = vmatprep.subr.mxu0 0.0
        %1312 = vmatpush1.msra.mxu0 0.0
        %1313 = vmatprep.subr.mxu0 0.0
        %1314 = vmatpush1.msra.mxu0 0.0
        %1315 = vmatprep.subr.mxu0 0.0
        %1316 = vmatpush1.msra.mxu0 0.0
        %1317 = vmatprep.subr.mxu0 0.0
        %1318 = vmatpush1.msra.mxu0 0.0
        %1319 = vmatprep.subr.mxu0 0.0
        %1320 = vmatpush1.msra.mxu0 0.0
        %1321 = vmatprep.subr.mxu0 0.0
        %1322 = vmatpush1.msra.mxu0 0.0
        %1323 = vmatprep.subr.mxu0 0.0
        %1324 = vmatpush1.msra.mxu0 0.0
        %1325 = vmatprep.subr.mxu0 0.0
        %1326 = vmatpush1.msra.mxu0 0.0
        %1327 = vmatprep.mubr.f32.mxu0 0.0
        %1328 = vmatmul.mubr.f32.gmra.mrb[0].mxu0 %v1261
        %v1329 = vpop.f32.mrb[0].mxu0
        %v1330 = vadd.f32 0.0, %v1329
        %v1331 = vpop.f32.mrb[0].mxu0
        %1332 = vdwg.mxu0
        %v1333 = vld [vmem:[%s1 + $0xf0] sm:$0xff]
        %v1335 = vsel %vm693, %v1330, 0
        %1337 = vmatprep.subr.mxu0 0.0
        %1338 = vmatpush1.msra.mxu0 %v1333
        %1339 = vmatprep.subr.mxu0 0.0
        %1340 = vmatpush1.msra.mxu0 0.0
        %1341 = vmatprep.subr.mxu0 0.0
        %1342 = vmatpush1.msra.mxu0 0.0
        %1343 = vmatprep.subr.mxu0 0.0
        %1344 = vmatpush1.msra.mxu0 0.0
        %1345 = vmatprep.subr.mxu0 0.0
        %1346 = vmatpush1.msra.mxu0 0.0
        %1347 = vmatprep.subr.mxu0 0.0
        %1348 = vmatpush1.msra.mxu0 0.0
        %1349 = vmatprep.subr.mxu0 0.0
        %1350 = vmatpush1.msra.mxu0 0.0
        %1351 = vmatprep.subr.mxu0 0.0
        %1352 = vmatpush1.msra.mxu0 0.0
        %1353 = vmatprep.subr.mxu0 0.0
        %1354 = vmatpush1.msra.mxu0 0.0
        %1355 = vmatprep.subr.mxu0 0.0
        %1356 = vmatpush1.msra.mxu0 0.0
        %1357 = vmatprep.subr.mxu0 0.0
        %1358 = vmatpush1.msra.mxu0 0.0
        %1359 = vmatprep.subr.mxu0 0.0
        %1360 = vmatpush1.msra.mxu0 0.0
        %1361 = vmatprep.subr.mxu0 0.0
        %1362 = vmatpush1.msra.mxu0 0.0
        %1363 = vmatprep.subr.mxu0 0.0
        %1364 = vmatpush1.msra.mxu0 0.0
        %1365 = vmatprep.subr.mxu0 0.0
        %1366 = vmatpush1.msra.mxu0 0.0
        %1367 = vmatprep.subr.mxu0 0.0
        %1368 = vmatpush1.msra.mxu0 0.0
        %1369 = vmatprep.subr.mxu0 0.0
        %1370 = vmatpush1.msra.mxu0 0.0
        %1371 = vmatprep.subr.mxu0 0.0
        %1372 = vmatpush1.msra.mxu0 0.0
        %1373 = vmatprep.subr.mxu0 0.0
        %1374 = vmatpush1.msra.mxu0 0.0
        %1375 = vmatprep.subr.mxu0 0.0
        %1376 = vmatpush1.msra.mxu0 0.0
        %1377 = vmatprep.subr.mxu0 0.0
        %1378 = vmatpush1.msra.mxu0 0.0
        %1379 = vmatprep.subr.mxu0 0.0
        %1380 = vmatpush1.msra.mxu0 0.0
        %1381 = vmatprep.subr.mxu0 0.0
        %1382 = vmatpush1.msra.mxu0 0.0
        %1383 = vmatprep.subr.mxu0 0.0
        %1384 = vmatpush1.msra.mxu0 0.0
        %1385 = vmatprep.subr.mxu0 0.0
        %1386 = vmatpush1.msra.mxu0 0.0
        %1387 = vmatprep.subr.mxu0 0.0
        %1388 = vmatpush1.msra.mxu0 0.0
        %1389 = vmatprep.subr.mxu0 0.0
        %1390 = vmatpush1.msra.mxu0 0.0
        %1391 = vmatprep.subr.mxu0 0.0
        %1392 = vmatpush1.msra.mxu0 0.0
        %1393 = vmatprep.subr.mxu0 0.0
        %1394 = vmatpush1.msra.mxu0 0.0
        %1395 = vmatprep.subr.mxu0 0.0
        %1396 = vmatpush1.msra.mxu0 0.0
        %1397 = vmatprep.subr.mxu0 0.0
        %1398 = vmatpush1.msra.mxu0 0.0
        %1399 = vmatprep.subr.mxu0 0.0
        %1400 = vmatpush1.msra.mxu0 0.0
        %1401 = vmatprep.mubr.f32.mxu0 0.0
        %1402 = vmatmul.mubr.f32.gmra.mrb[0].mxu0 %v1335
        %v1403 = vpop.f32.mrb[0].mxu0
        %v1404 = vadd.f32 0.0, %v1403
        %v1405 = vpop.f32.mrb[0].mxu0
        %1406 = vdwg.mxu0
        %v1407 = vadd.f32 %v1165, %v1404
        %1408 = vrot.lane.b32.xlu0 %v687, 104
        %v1409 = vpop.permute.xlu0 %1408
        %1410 = vrot.lane.b32.xlu0 %v687, 72
        %v1411 = vpop.permute.xlu0 %1410
        %v1412 = vsel %vm693, %v1409, 0
        %v1414 = vsel %vm693, %v1411, 0
        %1416 = vmatprep.subr.mxu0 0.0
        %1417 = vmatpush1.xpose.msra.mxu0 %v1414
        %1418 = vmatprep.subr.mxu0 0.0
        %1419 = vmatpush1.xpose.msra.mxu0 0.0
        %1420 = vmatprep.subr.mxu0 0.0
        %1421 = vmatpush1.xpose.msra.mxu0 0.0
        %1422 = vmatprep.subr.mxu0 0.0
        %1423 = vmatpush1.xpose.msra.mxu0 0.0
        %1424 = vmatprep.subr.mxu0 0.0
        %1425 = vmatpush1.xpose.msra.mxu0 0.0
        %1426 = vmatprep.subr.mxu0 0.0
        %1427 = vmatpush1.xpose.msra.mxu0 0.0
        %1428 = vmatprep.subr.mxu0 0.0
        %1429 = vmatpush1.xpose.msra.mxu0 0.0
        %1430 = vmatprep.subr.mxu0 0.0
        %1431 = vmatpush1.xpose.msra.mxu0 0.0
        %1432 = vmatprep.subr.mxu0 0.0
        %1433 = vmatpush1.xpose.msra.mxu0 0.0
        %1434 = vmatprep.subr.mxu0 0.0
        %1435 = vmatpush1.xpose.msra.mxu0 0.0
        %1436 = vmatprep.subr.mxu0 0.0
        %1437 = vmatpush1.xpose.msra.mxu0 0.0
        %1438 = vmatprep.subr.mxu0 0.0
        %1439 = vmatpush1.xpose.msra.mxu0 0.0
        %1440 = vmatprep.subr.mxu0 0.0
        %1441 = vmatpush1.xpose.msra.mxu0 0.0
        %1442 = vmatprep.subr.mxu0 0.0
        %1443 = vmatpush1.xpose.msra.mxu0 0.0
        %1444 = vmatprep.subr.mxu0 0.0
        %1445 = vmatpush1.xpose.msra.mxu0 0.0
        %1446 = vmatprep.subr.mxu0 0.0
        %1447 = vmatpush1.xpose.msra.mxu0 0.0
        %1448 = vmatprep.subr.mxu0 0.0
        %1449 = vmatpush1.xpose.msra.mxu0 0.0
        %1450 = vmatprep.subr.mxu0 0.0
        %1451 = vmatpush1.xpose.msra.mxu0 0.0
        %1452 = vmatprep.subr.mxu0 0.0
        %1453 = vmatpush1.xpose.msra.mxu0 0.0
        %1454 = vmatprep.subr.mxu0 0.0
        %1455 = vmatpush1.xpose.msra.mxu0 0.0
        %1456 = vmatprep.subr.mxu0 0.0
        %1457 = vmatpush1.xpose.msra.mxu0 0.0
        %1458 = vmatprep.subr.mxu0 0.0
        %1459 = vmatpush1.xpose.msra.mxu0 0.0
        %1460 = vmatprep.subr.mxu0 0.0
        %1461 = vmatpush1.xpose.msra.mxu0 0.0
        %1462 = vmatprep.subr.mxu0 0.0
        %1463 = vmatpush1.xpose.msra.mxu0 0.0
        %1464 = vmatprep.subr.mxu0 0.0
        %1465 = vmatpush1.xpose.msra.mxu0 0.0
        %1466 = vmatprep.subr.mxu0 0.0
        %1467 = vmatpush1.xpose.msra.mxu0 0.0
        %1468 = vmatprep.subr.mxu0 0.0
        %1469 = vmatpush1.xpose.msra.mxu0 0.0
        %1470 = vmatprep.subr.mxu0 0.0
        %1471 = vmatpush1.xpose.msra.mxu0 0.0
        %1472 = vmatprep.subr.mxu0 0.0
        %1473 = vmatpush1.xpose.msra.mxu0 0.0
        %1474 = vmatprep.subr.mxu0 0.0
        %1475 = vmatpush1.xpose.msra.mxu0 0.0
        %1476 = vmatprep.subr.mxu0 0.0
        %1477 = vmatpush1.xpose.msra.mxu0 0.0
        %1478 = vmatprep.subr.mxu0 0.0
        %1479 = vmatpush1.xpose.msra.mxu0 0.0
        %1480 = vmatprep.mubr.f32.mxu0 0.0
        %1481 = vmatmul.mubr.f32.gmra.mrb[0].mxu0 %v1412
        %v1482 = vpop.f32.mrb[0].mxu0
        %v1483 = vadd.f32 0.0, %v1482
        %v1484 = vpop.f32.mrb[0].mxu0
        %1485 = vdwg.mxu0
        %v1486 = vsel %vm693, %v1483, -inf
        %1487 = vmax.xlane.f32.xlu0 %v1486
        %v1488 = vpop.xlane.xlu0 %1487
        %v1489 = vsub.f32 %v1483, %v1488
        %v1490 = vmul.f32 %v1489, 1.442695
        %v1491 = vpow.pop %v1490
        %v1492 = vsel %vm693, %v1491, 0.0
        %1493 = vadd.xlane.f32.xlu0 %v1492
        %v1494 = vpop.xlane.xlu0 %1493
        %v1495 = vrcp.pop %v1494
        %v1496 = vmul.f32 %v1491, %v1495
        %1497 = vrot.lane.b32.xlu0 %v687, 40
        %v1498 = vpop.permute.xlu0 %1497
        %v1501 = vsel %vm693, %v1496, 0
        %1503 = vmatprep.subr.mxu0 0.0
        %1504 = vmatpush1.msra.mxu0 %v1498
        %1505 = vmatprep.subr.mxu0 0.0
        %1506 = vmatpush1.msra.mxu0 0.0
        %1507 = vmatprep.subr.mxu0 0.0
        %1508 = vmatpush1.msra.mxu0 0.0
        %1509 = vmatprep.subr.mxu0 0.0
        %1510 = vmatpush1.msra.mxu0 0.0
        %1511 = vmatprep.subr.mxu0 0.0
        %1512 = vmatpush1.msra.mxu0 0.0
        %1513 = vmatprep.subr.mxu0 0.0
        %1514 = vmatpush1.msra.mxu0 0.0
        %1515 = vmatprep.subr.mxu0 0.0
        %1516 = vmatpush1.msra.mxu0 0.0
        %1517 = vmatprep.subr.mxu0 0.0
        %1518 = vmatpush1.msra.mxu0 0.0
        %1519 = vmatprep.subr.mxu0 0.0
        %1520 = vmatpush1.msra.mxu0 0.0
        %1521 = vmatprep.subr.mxu0 0.0
        %1522 = vmatpush1.msra.mxu0 0.0
        %1523 = vmatprep.subr.mxu0 0.0
        %1524 = vmatpush1.msra.mxu0 0.0
        %1525 = vmatprep.subr.mxu0 0.0
        %1526 = vmatpush1.msra.mxu0 0.0
        %1527 = vmatprep.subr.mxu0 0.0
        %1528 = vmatpush1.msra.mxu0 0.0
        %1529 = vmatprep.subr.mxu0 0.0
        %1530 = vmatpush1.msra.mxu0 0.0
        %1531 = vmatprep.subr.mxu0 0.0
        %1532 = vmatpush1.msra.mxu0 0.0
        %1533 = vmatprep.subr.mxu0 0.0
        %1534 = vmatpush1.msra.mxu0 0.0
        %1535 = vmatprep.subr.mxu0 0.0
        %1536 = vmatpush1.msra.mxu0 0.0
        %1537 = vmatprep.subr.mxu0 0.0
        %1538 = vmatpush1.msra.mxu0 0.0
        %1539 = vmatprep.subr.mxu0 0.0
        %1540 = vmatpush1.msra.mxu0 0.0
        %1541 = vmatprep.subr.mxu0 0.0
        %1542 = vmatpush1.msra.mxu0 0.0
        %1543 = vmatprep.subr.mxu0 0.0
        %1544 = vmatpush1.msra.mxu0 0.0
        %1545 = vmatprep.subr.mxu0 0.0
        %1546 = vmatpush1.msra.mxu0 0.0
        %1547 = vmatprep.subr.mxu0 0.0
        %1548 = vmatpush1.msra.mxu0 0.0
        %1549 = vmatprep.subr.mxu0 0.0
        %1550 = vmatpush1.msra.mxu0 0.0
        %1551 = vmatprep.subr.mxu0 0.0
        %1552 = vmatpush1.msra.mxu0 0.0
        %1553 = vmatprep.subr.mxu0 0.0
        %1554 = vmatpush1.msra.mxu0 0.0
        %1555 = vmatprep.subr.mxu0 0.0
        %1556 = vmatpush1.msra.mxu0 0.0
        %1557 = vmatprep.subr.mxu0 0.0
        %1558 = vmatpush1.msra.mxu0 0.0
        %1559 = vmatprep.subr.mxu0 0.0
        %1560 = vmatpush1.msra.mxu0 0.0
        %1561 = vmatprep.subr.mxu0 0.0
        %1562 = vmatpush1.msra.mxu0 0.0
        %1563 = vmatprep.subr.mxu0 0.0
        %1564 = vmatpush1.msra.mxu0 0.0
        %1565 = vmatprep.subr.mxu0 0.0
        %1566 = vmatpush1.msra.mxu0 0.0
        %1567 = vmatprep.mubr.f32.mxu0 0.0
        %1568 = vmatmul.mubr.f32.gmra.mrb[0].mxu0 %v1501
        %v1569 = vpop.f32.mrb[0].mxu0
        %v1570 = vadd.f32 0.0, %v1569
        %v1571 = vpop.f32.mrb[0].mxu0
        %1572 = vdwg.mxu0
        %v1573 = vld [vmem:[%s1 + $0xf8] sm:$0xff]
        %v1575 = vsel %vm693, %v1570, 0
        %1577 = vmatprep.subr.mxu0 0.0
        %1578 = vmatpush1.msra.mxu0 %v1573
        %1579 = vmatprep.subr.mxu0 0.0
        %1580 = vmatpush1.msra.mxu0 0.0
        %1581 = vmatprep.subr.mxu0 0.0
        %1582 = vmatpush1.msra.mxu0 0.0
        %1583 = vmatprep.subr.mxu0 0.0
        %1584 = vmatpush1.msra.mxu0 0.0
        %1585 = vmatprep.subr.mxu0 0.0
        %1586 = vmatpush1.msra.mxu0 0.0
        %1587 = vmatprep.subr.mxu0 0.0
        %1588 = vmatpush1.msra.mxu0 0.0
        %1589 = vmatprep.subr.mxu0 0.0
        %1590 = vmatpush1.msra.mxu0 0.0
        %1591 = vmatprep.subr.mxu0 0.0
        %1592 = vmatpush1.msra.mxu0 0.0
        %1593 = vmatprep.subr.mxu0 0.0
        %1594 = vmatpush1.msra.mxu0 0.0
        %1595 = vmatprep.subr.mxu0 0.0
        %1596 = vmatpush1.msra.mxu0 0.0
        %1597 = vmatprep.subr.mxu0 0.0
        %1598 = vmatpush1.msra.mxu0 0.0
        %1599 = vmatprep.subr.mxu0 0.0
        %1600 = vmatpush1.msra.mxu0 0.0
        %1601 = vmatprep.subr.mxu0 0.0
        %1602 = vmatpush1.msra.mxu0 0.0
        %1603 = vmatprep.subr.mxu0 0.0
        %1604 = vmatpush1.msra.mxu0 0.0
        %1605 = vmatprep.subr.mxu0 0.0
        %1606 = vmatpush1.msra.mxu0 0.0
        %1607 = vmatprep.subr.mxu0 0.0
        %1608 = vmatpush1.msra.mxu0 0.0
        %1609 = vmatprep.subr.mxu0 0.0
        %1610 = vmatpush1.msra.mxu0 0.0
        %1611 = vmatprep.subr.mxu0 0.0
        %1612 = vmatpush1.msra.mxu0 0.0
        %1613 = vmatprep.subr.mxu0 0.0
        %1614 = vmatpush1.msra.mxu0 0.0
        %1615 = vmatprep.subr.mxu0 0.0
        %1616 = vmatpush1.msra.mxu0 0.0
        %1617 = vmatprep.subr.mxu0 0.0
        %1618 = vmatpush1.msra.mxu0 0.0
        %1619 = vmatprep.subr.mxu0 0.0
        %1620 = vmatpush1.msra.mxu0 0.0
        %1621 = vmatprep.subr.mxu0 0.0
        %1622 = vmatpush1.msra.mxu0 0.0
        %1623 = vmatprep.subr.mxu0 0.0
        %1624 = vmatpush1.msra.mxu0 0.0
        %1625 = vmatprep.subr.mxu0 0.0
        %1626 = vmatpush1.msra.mxu0 0.0
        %1627 = vmatprep.subr.mxu0 0.0
        %1628 = vmatpush1.msra.mxu0 0.0
        %1629 = vmatprep.subr.mxu0 0.0
        %1630 = vmatpush1.msra.mxu0 0.0
        %1631 = vmatprep.subr.mxu0 0.0
        %1632 = vmatpush1.msra.mxu0 0.0
        %1633 = vmatprep.subr.mxu0 0.0
        %1634 = vmatpush1.msra.mxu0 0.0
        %1635 = vmatprep.subr.mxu0 0.0
        %1636 = vmatpush1.msra.mxu0 0.0
        %1637 = vmatprep.subr.mxu0 0.0
        %1638 = vmatpush1.msra.mxu0 0.0
        %1639 = vmatprep.subr.mxu0 0.0
        %1640 = vmatpush1.msra.mxu0 0.0
        %1641 = vmatprep.mubr.f32.mxu0 0.0
        %1642 = vmatmul.mubr.f32.gmra.mrb[0].mxu0 %v1575
        %v1643 = vpop.f32.mrb[0].mxu0
        %v1644 = vadd.f32 0.0, %v1643
        %v1645 = vpop.f32.mrb[0].mxu0
        %1646 = vdwg.mxu0
        %v1647 = vadd.f32 %v1407, %v1644
        %v1648 = vadd.f32 %v581, %v1647
        %v1649 = vld [vmem:[%s1 + $0x100] sm:$0x1]
        %v1650 = vlaneseq
        %v1651 = vshrl.u32 %v1650, 7
        %v1652 = vsub.s32 0, %v1651
        %v1653 = vrot.slane %v1649, %v1652
        %v1654 = vadd.f32 %v1648, %v1653
        %v1655 = vld [vmem:[%s1 + $0x108] sm:$0x1]
        %v1656 = vld [vmem:[%s1 + $0x110] sm:$0x1]
        %v1657 = vsel %vm344, %v1654, 0.0
        %1658 = vadd.xlane.f32.xlu0 %v1657
        %v1659 = vpop.xlane.xlu0 %1658
        %v1660 = vmul.f32 %v1659, %v587
        %v1661 = vsub.f32 %v1654, %v1660
        %v1662 = vmul.f32 %v1661, %v1661
        %v1663 = vsel %vm344, %v1662, 0.0
        %1664 = vadd.xlane.f32.xlu0 %v1663
        %v1665 = vpop.xlane.xlu0 %1664
        %v1666 = vmul.f32 %v1665, %v587
        %v1667 = vadd.f32 %v1666, 1e-05
        %v1668 = vrsqrt.pop %v1667
        %v1669 = vmul.f32 %v1661, %v1668
        %v1670 = vlaneseq
        %v1671 = vshrl.u32 %v1670, 7
        %v1672 = vsub.s32 0, %v1671
        %v1673 = vrot.slane %v1655, %v1672
        %v1674 = vmul.f32 %v1669, %v1673
        %v1675 = vlaneseq
        %v1676 = vshrl.u32 %v1675, 7
        %v1677 = vsub.s32 0, %v1676
        %v1678 = vrot.slane %v1656, %v1677
        %v1679 = vadd.f32 %v1674, %v1678
        %v1680 = vld [vmem:[%s1 + $0x118] sm:$0xff]
        %v1681 = vld [vmem:[%s1 + $0x120] sm:$0xff]
        %v1682 = vld [vmem:[%s1 + $0x128] sm:$0xff]
        %v1683 = vld [vmem:[%s1 + $0x130] sm:$0xff]
        %v1684 = vld [vmem:[%s1 + $0x138] sm:$0x1]
        %v1685 = vlaneseq
        %v1686 = vshrl.u32 %v1685, 7
        %v1687 = vsub.s32 0, %v1686
        %v1688 = vrot.slane %v1684, %v1687
        %v1690 = vsel %vm344, %v1679, 0
        %1692 = vmatprep.subr.mxu0 0.0
        %1693 = vmatpush1.msra.mxu0 %v1680
        %1694 = vmatprep.subr.mxu0 0.0
        %1695 = vmatpush1.msra.mxu0 %v1681
        %1696 = vmatprep.subr.mxu0 0.0
        %1697 = vmatpush1.msra.mxu0 %v1682
        %1698 = vmatprep.subr.mxu0 0.0
        %1699 = vmatpush1.msra.mxu0 %v1683
        %1700 = vmatprep.subr.mxu0 0.0
        %1701 = vmatpush1.msra.mxu0 0.0
        %1702 = vmatprep.subr.mxu0 0.0
        %1703 = vmatpush1.msra.mxu0 0.0
        %1704 = vmatprep.subr.mxu0 0.0
        %1705 = vmatpush1.msra.mxu0 0.0
        %1706 = vmatprep.subr.mxu0 0.0
        %1707 = vmatpush1.msra.mxu0 0.0
        %1708 = vmatprep.subr.mxu0 0.0
        %1709 = vmatpush1.msra.mxu0 0.0
        %1710 = vmatprep.subr.mxu0 0.0
        %1711 = vmatpush1.msra.mxu0 0.0
        %1712 = vmatprep.subr.mxu0 0.0
        %1713 = vmatpush1.msra.mxu0 0.0
        %1714 = vmatprep.subr.mxu0 0.0
        %1715 = vmatpush1.msra.mxu0 0.0
        %1716 = vmatprep.subr.mxu0 0.0
        %1717 = vmatpush1.msra.mxu0 0.0
        %1718 = vmatprep.subr.mxu0 0.0
        %1719 = vmatpush1.msra.mxu0 0.0
        %1720 = vmatprep.subr.mxu0 0.0
        %1721 = vmatpush1.msra.mxu0 0.0
        %1722 = vmatprep.subr.mxu0 0.0
        %1723 = vmatpush1.msra.mxu0 0.0
        %1724 = vmatprep.subr.mxu0 0.0
        %1725 = vmatpush1.msra.mxu0 0.0
        %1726 = vmatprep.subr.mxu0 0.0
        %1727 = vmatpush1.msra.mxu0 0.0
        %1728 = vmatprep.subr.mxu0 0.0
        %1729 = vmatpush1.msra.mxu0 0.0
        %1730 = vmatprep.subr.mxu0 0.0
        %1731 = vmatpush1.msra.mxu0 0.0
        %1732 = vmatprep.subr.mxu0 0.0
        %1733 = vmatpush1.msra.mxu0 0.0
        %1734 = vmatprep.subr.mxu0 0.0
        %1735 = vmatpush1.msra.mxu0 0.0
        %1736 = vmatprep.subr.mxu0 0.0
        %1737 = vmatpush1.msra.mxu0 0.0
        %1738 = vmatprep.subr.mxu0 0.0
        %1739 = vmatpush1.msra.mxu0 0.0
        %1740 = vmatprep.subr.mxu0 0.0
        %1741 = vmatpush1.msra.mxu0 0.0
        %1742 = vmatprep.subr.mxu0 0.0
        %1743 = vmatpush1.msra.mxu0 0.0
        %1744 = vmatprep.subr.mxu0 0.0
        %1745 = vmatpush1.msra.mxu0 0.0
        %1746 = vmatprep.subr.mxu0 0.0
        %1747 = vmatpush1.msra.mxu0 0.0
        %1748 = vmatprep.subr.mxu0 0.0
        %1749 = vmatpush1.msra.mxu0 0.0
        %1750 = vmatprep.subr.mxu0 0.0
        %1751 = vmatpush1.msra.mxu0 0.0
        %1752 = vmatprep.subr.mxu0 0.0
        %1753 = vmatpush1.msra.mxu0 0.0
        %1754 = vmatprep.subr.mxu0 0.0
        %1755 = vmatpush1.msra.mxu0 0.0
        %1756 = vmatprep.mubr.f32.mxu0 0.0
        %1757 = vmatmul.mubr.f32.gmra.mrb[0].mxu0 %v1690
        %v1758 = vpop.f32.mrb[0].mxu0
        %v1759 = vadd.f32 %v1688, %v1758
        %v1760 = vpop.f32.mrb[0].mxu0
        %1761 = vdwg.mxu0
        %v1762 = vmul.f32 %v1759, 0.5
        %v1763 = vmul.f32 %v1759, 0.70710677
        %v1764 = verf.f32.pop %v1763
        %v1765 = vadd.f32 %v1764, 1.0
        %v1766 = vmul.f32 %v1762, %v1765
        %v1767 = vld [vmem:[%s1 + $0x140] sm:$0xff]
        %v1768 = vld [vmem:[%s1 + $0x148] sm:$0xff]
        %v1769 = vld [vmem:[%s1 + $0x150] sm:$0xff]
        %v1770 = vld [vmem:[%s1 + $0x158] sm:$0xff]
        %v1771 = vld [vmem:[%s1 + $0x160] sm:$0xff]
        %v1772 = vld [vmem:[%s1 + $0x168] sm:$0xff]
        %v1773 = vld [vmem:[%s1 + $0x170] sm:$0xff]
        %v1774 = vld [vmem:[%s1 + $0x178] sm:$0xff]
        %v1775 = vld [vmem:[%s1 + $0x180] sm:$0xff]
        %v1776 = vld [vmem:[%s1 + $0x188] sm:$0xff]
        %v1777 = vld [vmem:[%s1 + $0x190] sm:$0xff]
        %v1778 = vld [vmem:[%s1 + $0x198] sm:$0xff]
        %v1779 = vld [vmem:[%s1 + $0x1a0] sm:$0xff]
        %v1780 = vld [vmem:[%s1 + $0x1a8] sm:$0xff]
        %v1781 = vld [vmem:[%s1 + $0x1b0] sm:$0xff]
        %v1782 = vld [vmem:[%s1 + $0x1b8] sm:$0xff]
        %1783 = vmatprep.subr.mxu0 0.0
        %1784 = vmatpush1.msra.mxu0 %v1767
        %1785 = vmatprep.subr.mxu0 0.0
        %1786 = vmatpush1.msra.mxu0 %v1768
        %1787 = vmatprep.subr.mxu0 0.0
        %1788 = vmatpush1.msra.mxu0 %v1769
        %1789 = vmatprep.subr.mxu0 0.0
        %1790 = vmatpush1.msra.mxu0 %v1770
        %1791 = vmatprep.subr.mxu0 0.0
        %1792 = vmatpush1.msra.mxu0 %v1771
        %1793 = vmatprep.subr.mxu0 0.0
        %1794 = vmatpush1.msra.mxu0 %v1772
        %1795 = vmatprep.subr.mxu0 0.0
        %1796 = vmatpush1.msra.mxu0 %v1773
        %1797 = vmatprep.subr.mxu0 0.0
        %1798 = vmatpush1.msra.mxu0 %v1774
        %1799 = vmatprep.subr.mxu0 0.0
        %1800 = vmatpush1.msra.mxu0 %v1775
        %1801 = vmatprep.subr.mxu0 0.0
        %1802 = vmatpush1.msra.mxu0 %v1776
        %1803 = vmatprep.subr.mxu0 0.0
        %1804 = vmatpush1.msra.mxu0 %v1777
        %1805 = vmatprep.subr.mxu0 0.0
        %1806 = vmatpush1.msra.mxu0 %v1778
        %1807 = vmatprep.subr.mxu0 0.0
        %1808 = vmatpush1.msra.mxu0 %v1779
        %1809 = vmatprep.subr.mxu0 0.0
        %1810 = vmatpush1.msra.mxu0 %v1780
        %1811 = vmatprep.subr.mxu0 0.0
        %1812 = vmatpush1.msra.mxu0 %v1781
        %1813 = vmatprep.subr.mxu0 0.0
        %1814 = vmatpush1.msra.mxu0 %v1782
        %1815 = vmatprep.subr.mxu0 0.0
        %1816 = vmatpush1.msra.mxu0 0.0
        %1817 = vmatprep.subr.mxu0 0.0
        %1818 = vmatpush1.msra.mxu0 0.0
        %1819 = vmatprep.subr.mxu0 0.0
        %1820 = vmatpush1.msra.mxu0 0.0
        %1821 = vmatprep.subr.mxu0 0.0
        %1822 = vmatpush1.msra.mxu0 0.0
        %1823 = vmatprep.subr.mxu0 0.0
        %1824 = vmatpush1.msra.mxu0 0.0
        %1825 = vmatprep.subr.mxu0 0.0
        %1826 = vmatpush1.msra.mxu0 0.0
        %1827 = vmatprep.subr.mxu0 0.0
        %1828 = vmatpush1.msra.mxu0 0.0
        %1829 = vmatprep.subr.mxu0 0.0
        %1830 = vmatpush1.msra.mxu0 0.0
        %1831 = vmatprep.subr.mxu0 0.0
        %1832 = vmatpush1.msra.mxu0 0.0
        %1833 = vmatprep.subr.mxu0 0.0
        %1834 = vmatpush1.msra.mxu0 0.0
        %1835 = vmatprep.subr.mxu0 0.0
        %1836 = vmatpush1.msra.mxu0 0.0
        %1837 = vmatprep.subr.mxu0 0.0
        %1838 = vmatpush1.msra.mxu0 0.0
        %1839 = vmatprep.subr.mxu0 0.0
        %1840 = vmatpush1.msra.mxu0 0.0
        %1841 = vmatprep.subr.mxu0 0.0
        %1842 = vmatpush1.msra.mxu0 0.0
        %1843 = vmatprep.subr.mxu0 0.0
        %1844 = vmatpush1.msra.mxu0 0.0
        %1845 = vmatprep.subr.mxu0 0.0
        %1846 = vmatpush1.msra.mxu0 0.0
        %1847 = vmatprep.mubr.f32.mxu0 0.0
        %1848 = vmatmul.mubr.f32.gmra.mrb[0].mxu0 %v1766
        %v1849 = vpop.f32.mrb[0].mxu0
        %v1850 = vadd.f32 0.0, %v1849
        %v1851 = vpop.f32.mrb[0].mxu0
        %1852 = vdwg.mxu0
        %v1853 = vadd.f32 %v1654, %v1850
        %v1854 = vld [vmem:[%s1 + $0x1c0] sm:$0x1]
        %v1855 = vlaneseq
        %v1856 = vshrl.u32 %v1855, 7
        %v1857 = vsub.s32 0, %v1856
        %v1858 = vrot.slane %v1854, %v1857
        %v1859 = vadd.f32 %v1853, %v1858
        %v1860 = vld [vmem:[%s1 + $0x1c8] sm:$0x1]
        %v1861 = vld [vmem:[%s1 + $0x1d0] sm:$0x1]
        %v1862 = vsel %vm344, %v1859, 0.0
        %1863 = vadd.xlane.f32.xlu0 %v1862
        %v1864 = vpop.xlane.xlu0 %1863
        %v1865 = vmul.f32 %v1864, %v587
        %v1866 = vsub.f32 %v1859, %v1865
        %v1867 = vmul.f32 %v1866, %v1866
        %v1868 = vsel %vm344, %v1867, 0.0
        %1869 = vadd.xlane.f32.xlu0 %v1868
        %v1870 = vpop.xlane.xlu0 %1869
        %v1871 = vmul.f32 %v1870, %v587
        %v1872 = vadd.f32 %v1871, 1e-05
        %v1873 = vrsqrt.pop %v1872
        %v1874 = vmul.f32 %v1866, %v1873
        %v1875 = vlaneseq
        %v1876 = vshrl.u32 %v1875, 7
        %v1877 = vsub.s32 0, %v1876
        %v1878 = vrot.slane %v1860, %v1877
        %v1879 = vmul.f32 %v1874, %v1878
        %v1880 = vlaneseq
        %v1881 = vshrl.u32 %v1880, 7
        %v1882 = vsub.s32 0, %v1881
        %v1883 = vrot.slane %v1861, %v1882
        %v1884 = vadd.f32 %v1879, %v1883
        %v1885 = vld [vmem:[%s1 + $0x1d8] sm:$0xff]
        %v1886 = vld [vmem:[%s1 + $0x1e0] sm:$0xff]
        %v1887 = vld [vmem:[%s1 + $0x1e8] sm:$0xff]
        %v1888 = vld [vmem:[%s1 + $0x1f0] sm:$0xff]
        %v1889 = vld [vmem:[%s1 + $0x1f8] sm:$0x1]
        %v1890 = vlaneseq
        %v1891 = vshrl.u32 %v1890, 7
        %v1892 = vsub.s32 0, %v1891
        %v1893 = vrot.slane %v1889, %v1892
        %v1895 = vsel %vm344, %v1884, 0
        %1897 = vmatprep.subr.mxu0 0.0
        %1898 = vmatpush1.msra.mxu0 %v1885
        %1899 = vmatprep.subr.mxu0 0.0
        %1900 = vmatpush1.msra.mxu0 %v1886
        %1901 = vmatprep.subr.mxu0 0.0
        %1902 = vmatpush1.msra.mxu0 %v1887
        %1903 = vmatprep.subr.mxu0 0.0
        %1904 = vmatpush1.msra.mxu0 %v1888
        %1905 = vmatprep.subr.mxu0 0.0
        %1906 = vmatpush1.msra.mxu0 0.0
        %1907 = vmatprep.subr.mxu0 0.0
        %1908 = vmatpush1.msra.mxu0 0.0
        %1909 = vmatprep.subr.mxu0 0.0
        %1910 = vmatpush1.msra.mxu0 0.0
        %1911 = vmatprep.subr.mxu0 0.0
        %1912 = vmatpush1.msra.mxu0 0.0
        %1913 = vmatprep.subr.mxu0 0.0
        %1914 = vmatpush1.msra.mxu0 0.0
        %1915 = vmatprep.subr.mxu0 0.0
        %1916 = vmatpush1.msra.mxu0 0.0
        %1917 = vmatprep.subr.mxu0 0.0
        %1918 = vmatpush1.msra.mxu0 0.0
        %1919 = vmatprep.subr.mxu0 0.0
        %1920 = vmatpush1.msra.mxu0 0.0
        %1921 = vmatprep.subr.mxu0 0.0
        %1922 = vmatpush1.msra.mxu0 0.0
        %1923 = vmatprep.subr.mxu0 0.0
        %1924 = vmatpush1.msra.mxu0 0.0
        %1925 = vmatprep.subr.mxu0 0.0
        %1926 = vmatpush1.msra.mxu0 0.0
        %1927 = vmatprep.subr.mxu0 0.0
        %1928 = vmatpush1.msra.mxu0 0.0
        %1929 = vmatprep.subr.mxu0 0.0
        %1930 = vmatpush1.msra.mxu0 0.0
        %1931 = vmatprep.subr.mxu0 0.0
        %1932 = vmatpush1.msra.mxu0 0.0
        %1933 = vmatprep.subr.mxu0 0.0
        %1934 = vmatpush1.msra.mxu0 0.0
        %1935 = vmatprep.subr.mxu0 0.0
        %1936 = vmatpush1.msra.mxu0 0.0
        %1937 = vmatprep.subr.mxu0 0.0
        %1938 = vmatpush1.msra.mxu0 0.0
        %1939 = vmatprep.subr.mxu0 0.0
        %1940 = vmatpush1.msra.mxu0 0.0
        %1941 = vmatprep.subr.mxu0 0.0
        %1942 = vmatpush1.msra.mxu0 0.0
        %1943 = vmatprep.subr.mxu0 0.0
        %1944 = vmatpush1.msra.mxu0 0.0
        %1945 = vmatprep.subr.mxu0 0.0
        %1946 = vmatpush1.msra.mxu0 0.0
        %1947 = vmatprep.subr.mxu0 0.0
        %1948 = vmatpush1.msra.mxu0 0.0
        %1949 = vmatprep.subr.mxu0 0.0
        %1950 = vmatpush1.msra.mxu0 0.0
        %1951 = vmatprep.subr.mxu0 0.0
        %1952 = vmatpush1.msra.mxu0 0.0
        %1953 = vmatprep.subr.mxu0 0.0
        %1954 = vmatpush1.msra.mxu0 0.0
        %1955 = vmatprep.subr.mxu0 0.0
        %1956 = vmatpush1.msra.mxu0 0.0
        %1957 = vmatprep.subr.mxu0 0.0
        %1958 = vmatpush1.msra.mxu0 0.0
        %1959 = vmatprep.subr.mxu0 0.0
        %1960 = vmatpush1.msra.mxu0 0.0
        %1961 = vmatprep.mubr.f32.mxu0 0.0
        %1962 = vmatmul.mubr.f32.gmra.mrb[0].mxu0 %v1895
        %v1963 = vpop.f32.mrb[0].mxu0
        %v1964 = vadd.f32 %v1893, %v1963
        %v1965 = vpop.f32.mrb[0].mxu0
        %1966 = vdwg.mxu0
        %1968 = vrot.lane.b32.xlu0 %v1964, 96
        %v1969 = vpop.permute.xlu0 %1968
        %v1970 = vsel %vm693, %v1964, 0
        %v1972 = vsel %vm693, %v1969, 0
        %1974 = vmatprep.subr.mxu0 0.0
        %1975 = vmatpush1.xpose.msra.mxu0 %v1972
        %1976 = vmatprep.subr.mxu0 0.0
        %1977 = vmatpush1.xpose.msra.mxu0 0.0
        %1978 = vmatprep.subr.mxu0 0.0
        %1979 = vmatpush1.xpose.msra.mxu0 0.0
        %1980 = vmatprep.subr.mxu0 0.0
        %1981 = vmatpush1.xpose.msra.mxu0 0.0
        %1982 = vmatprep.subr.mxu0 0.0
        %1983 = vmatpush1.xpose.msra.mxu0 0.0
        %1984 = vmatprep.subr.mxu0 0.0
        %1985 = vmatpush1.xpose.msra.mxu0 0.0
        %1986 = vmatprep.subr.mxu0 0.0
        %1987 = vmatpush1.xpose.msra.mxu0 0.0
        %1988 = vmatprep.subr.mxu0 0.0
        %1989 = vmatpush1.xpose.msra.mxu0 0.0
        %1990 = vmatprep.subr.mxu0 0.0
        %1991 = vmatpush1.xpose.msra.mxu0 0.0
        %1992 = vmatprep.subr.mxu0 0.0
        %1993 = vmatpush1.xpose.msra.mxu0 0.0
        %1994 = vmatprep.subr.mxu0 0.0
        %1995 = vmatpush1.xpose.msra.mxu0 0.0
        %1996 = vmatprep.subr.mxu0 0.0
        %1997 = vmatpush1.xpose.msra.mxu0 0.0
        %1998 = vmatprep.subr.mxu0 0.0
        %1999 = vmatpush1.xpose.msra.mxu0 0.0
        %2000 = vmatprep.subr.mxu0 0.0
        %2001 = vmatpush1.xpose.msra.mxu0 0.0
        %2002 = vmatprep.subr.mxu0 0.0
        %2003 = vmatpush1.xpose.msra.mxu0 0.0
        %2004 = vmatprep.subr.mxu0 0.0
        %2005 = vmatpush1.xpose.msra.mxu0 0.0
        %2006 = vmatprep.subr.mxu0 0.0
        %2007 = vmatpush1.xpose.msra.mxu0 0.0
        %2008 = vmatprep.subr.mxu0 0.0
        %2009 = vmatpush1.xpose.msra.mxu0 0.0
        %2010 = vmatprep.subr.mxu0 0.0
        %2011 = vmatpush1.xpose.msra.mxu0 0.0
        %2012 = vmatprep.subr.mxu0 0.0
        %2013 = vmatpush1.xpose.msra.mxu0 0.0
        %2014 = vmatprep.subr.mxu0 0.0
        %2015 = vmatpush1.xpose.msra.mxu0 0.0
        %2016 = vmatprep.subr.mxu0 0.0
        %2017 = vmatpush1.xpose.msra.mxu0 0.0
        %2018 = vmatprep.subr.mxu0 0.0
        %2019 = vmatpush1.xpose.msra.mxu0 0.0
        %2020 = vmatprep.subr.mxu0 0.0
        %2021 = vmatpush1.xpose.msra.mxu0 0.0
        %2022 = vmatprep.subr.mxu0 0.0
        %2023 = vmatpush1.xpose.msra.mxu0 0.0
        %2024 = vmatprep.subr.mxu0 0.0
        %2025 = vmatpush1.xpose.msra.mxu0 0.0
        %2026 = vmatprep.subr.mxu0 0.0
        %2027 = vmatpush1.xpose.msra.mxu0 0.0
        %2028 = vmatprep.subr.mxu0 0.0
        %2029 = vmatpush1.xpose.msra.mxu0 0.0
        %2030 = vmatprep.subr.mxu0 0.0
        %2031 = vmatpush1.xpose.msra.mxu0 0.0
        %2032 = vmatprep.subr.mxu0 0.0
        %2033 = vmatpush1.xpose.msra.mxu0 0.0
        %2034 = vmatprep.subr.mxu0 0.0
        %2035 = vmatpush1.xpose.msra.mxu0 0.0
        %2036 = vmatprep.subr.mxu0 0.0
        %2037 = vmatpush1.xpose.msra.mxu0 0.0
        %2038 = vmatprep.mubr.f32.mxu0 0.0
        %2039 = vmatmul.mubr.f32.gmra.mrb[0].mxu0 %v1970
        %v2040 = vpop.f32.mrb[0].mxu0
        %v2041 = vadd.f32 0.0, %v2040
        %v2042 = vpop.f32.mrb[0].mxu0
        %2043 = vdwg.mxu0
        %v2044 = vsel %vm693, %v2041, -inf
        %2045 = vmax.xlane.f32.xlu0 %v2044
        %v2046 = vpop.xlane.xlu0 %2045
        %v2047 = vsub.f32 %v2041, %v2046
        %v2048 = vmul.f32 %v2047, 1.442695
        %v2049 = vpow.pop %v2048
        %v2050 = vsel %vm693, %v2049, 0.0
        %2051 = vadd.xlane.f32.xlu0 %v2050
        %v2052 = vpop.xlane.xlu0 %2051
        %v2053 = vrcp.pop %v2052
        %v2054 = vmul.f32 %v2049, %v2053
        %2055 = vrot.lane.b32.xlu0 %v1964, 64
        %v2056 = vpop.permute.xlu0 %2055
        %v2059 = vsel %vm693, %v2054, 0
        %2061 = vmatprep.subr.mxu0 0.0
        %2062 = vmatpush1.msra.mxu0 %v2056
        %2063 = vmatprep.subr.mxu0 0.0
        %2064 = vmatpush1.msra.mxu0 0.0
        %2065 = vmatprep.subr.mxu0 0.0
        %2066 = vmatpush1.msra.mxu0 0.0
        %2067 = vmatprep.subr.mxu0 0.0
        %2068 = vmatpush1.msra.mxu0 0.0
        %2069 = vmatprep.subr.mxu0 0.0
        %2070 = vmatpush1.msra.mxu0 0.0
        %2071 = vmatprep.subr.mxu0 0.0
        %2072 = vmatpush1.msra.mxu0 0.0
        %2073 = vmatprep.subr.mxu0 0.0
        %2074 = vmatpush1.msra.mxu0 0.0
        %2075 = vmatprep.subr.mxu0 0.0
        %2076 = vmatpush1.msra.mxu0 0.0
        %2077 = vmatprep.subr.mxu0 0.0
        %2078 = vmatpush1.msra.mxu0 0.0
        %2079 = vmatprep.subr.mxu0 0.0
        %2080 = vmatpush1.msra.mxu0 0.0
        %2081 = vmatprep.subr.mxu0 0.0
        %2082 = vmatpush1.msra.mxu0 0.0
        %2083 = vmatprep.subr.mxu0 0.0
        %2084 = vmatpush1.msra.mxu0 0.0
        %2085 = vmatprep.subr.mxu0 0.0
        %2086 = vmatpush1.msra.mxu0 0.0
        %2087 = vmatprep.subr.mxu0 0.0
        %2088 = vmatpush1.msra.mxu0 0.0
        %2089 = vmatprep.subr.mxu0 0.0
        %2090 = vmatpush1.msra.mxu0 0.0
        %2091 = vmatprep.subr.mxu0 0.0
        %2092 = vmatpush1.msra.mxu0 0.0
        %2093 = vmatprep.subr.mxu0 0.0
        %2094 = vmatpush1.msra.mxu0 0.0
        %2095 = vmatprep.subr.mxu0 0.0
        %2096 = vmatpush1.msra.mxu0 0.0
        %2097 = vmatprep.subr.mxu0 0.0
        %2098 = vmatpush1.msra.mxu0 0.0
        %2099 = vmatprep.subr.mxu0 0.0
        %2100 = vmatpush1.msra.mxu0 0.0
        %2101 = vmatprep.subr.mxu0 0.0
        %2102 = vmatpush1.msra.mxu0 0.0
        %2103 = vmatprep.subr.mxu0 0.0
        %2104 = vmatpush1.msra.mxu0 0.0
        %2105 = vmatprep.subr.mxu0 0.0
        %2106 = vmatpush1.msra.mxu0 0.0
        %2107 = vmatprep.subr.mxu0 0.0
        %2108 = vmatpush1.msra.mxu0 0.0
        %2109 = vmatprep.subr.mxu0 0.0
        %2110 = vmatpush1.msra.mxu0 0.0
        %2111 = vmatprep.subr.mxu0 0.0
        %2112 = vmatpush1.msra.mxu0 0.0
        %2113 = vmatprep.subr.mxu0 0.0
        %2114 = vmatpush1.msra.mxu0 0.0
        %2115 = vmatprep.subr.mxu0 0.0
        %2116 = vmatpush1.msra.mxu0 0.0
        %2117 = vmatprep.subr.mxu0 0.0
        %2118 = vmatpush1.msra.mxu0 0.0
        %2119 = vmatprep.subr.mxu0 0.0
        %2120 = vmatpush1.msra.mxu0 0.0
        %2121 = vmatprep.subr.mxu0 0.0
        %2122 = vmatpush1.msra.mxu0 0.0
        %2123 = vmatprep.subr.mxu0 0.0
        %2124 = vmatpush1.msra.mxu0 0.0
        %2125 = vmatprep.mubr.f32.mxu0 0.0
        %2126 = vmatmul.mubr.f32.gmra.mrb[0].mxu0 %v2059
        %v2127 = vpop.f32.mrb[0].mxu0
        %v2128 = vadd.f32 0.0, %v2127
        %v2129 = vpop.f32.mrb[0].mxu0
        %2130 = vdwg.mxu0
        %v2131 = vld [vmem:[%s1 + $0x200] sm:$0xff]
        %2132 = vrot.lane.b32.xlu0 %v1964, 120
        %v2133 = vpop.permute.xlu0 %2132
        %2134 = vrot.lane.b32.xlu0 %v1964, 88
        %v2135 = vpop.permute.xlu0 %2134
        %v2136 = vsel %vm693, %v2133, 0
        %v2138 = vsel %vm693, %v2135, 0
        %2140 = vmatprep.subr.mxu0 0.0
        %2141 = vmatpush1.xpose.msra.mxu0 %v2138
        %2142 = vmatprep.subr.mxu0 0.0
        %2143 = vmatpush1.xpose.msra.mxu0 0.0
        %2144 = vmatprep.subr.mxu0 0.0
        %2145 = vmatpush1.xpose.msra.mxu0 0.0
        %2146 = vmatprep.subr.mxu0 0.0
        %2147 = vmatpush1.xpose.msra.mxu0 0.0
        %2148 = vmatprep.subr.mxu0 0.0
        %2149 = vmatpush1.xpose.msra.mxu0 0.0
        %2150 = vmatprep.subr.mxu0 0.0
        %2151 = vmatpush1.xpose.msra.mxu0 0.0
        %2152 = vmatprep.subr.mxu0 0.0
        %2153 = vmatpush1.xpose.msra.mxu0 0.0
        %2154 = vmatprep.subr.mxu0 0.0
        %2155 = vmatpush1.xpose.msra.mxu0 0.0
        %2156 = vmatprep.subr.mxu0 0.0
        %2157 = vmatpush1.xpose.msra.mxu0 0.0
        %2158 = vmatprep.subr.mxu0 0.0
        %2159 = vmatpush1.xpose.msra.mxu0 0.0
        %2160 = vmatprep.subr.mxu0 0.0
        %2161 = vmatpush1.xpose.msra.mxu0 0.0
        %2162 = vmatprep.subr.mxu0 0.0
        %2163 = vmatpush1.xpose.msra.mxu0 0.0
        %2164 = vmatprep.subr.mxu0 0.0
        %2165 = vmatpush1.xpose.msra.mxu0 0.0
        %2166 = vmatprep.subr.mxu0 0.0
        %2167 = vmatpush1.xpose.msra.mxu0 0.0
        %2168 = vmatprep.subr.mxu0 0.0
        %2169 = vmatpush1.xpose.msra.mxu0 0.0
        %2170 = vmatprep.subr.mxu0 0.0
        %2171 = vmatpush1.xpose.msra.mxu0 0.0
        %2172 = vmatprep.subr.mxu0 0.0
        %2173 = vmatpush1.xpose.msra.mxu0 0.0
        %2174 = vmatprep.subr.mxu0 0.0
        %2175 = vmatpush1.xpose.msra.mxu0 0.0
        %2176 = vmatprep.subr.mxu0 0.0
        %2177 = vmatpush1.xpose.msra.mxu0 0.0
        %2178 = vmatprep.subr.mxu0 0.0
        %2179 = vmatpush1.xpose.msra.mxu0 0.0
        %2180 = vmatprep.subr.mxu0 0.0
        %2181 = vmatpush1.xpose.msra.mxu0 0.0
        %2182 = vmatprep.subr.mxu0 0.0
        %2183 = vmatpush1.xpose.msra.mxu0 0.0
        %2184 = vmatprep.subr.mxu0 0.0
        %2185 = vmatpush1.xpose.msra.mxu0 0.0
        %2186 = vmatprep.subr.mxu0 0.0
        %2187 = vmatpush1.xpose.msra.mxu0 0.0
        %2188 = vmatprep.subr.mxu0 0.0
        %2189 = vmatpush1.xpose.msra.mxu0 0.0
        %2190 = vmatprep.subr.mxu0 0.0
        %2191 = vmatpush1.xpose.msra.mxu0 0.0
        %2192 = vmatprep.subr.mxu0 0.0
        %2193 = vmatpush1.xpose.msra.mxu0 0.0
        %2194 = vmatprep.subr.mxu0 0.0
        %2195 = vmatpush1.xpose.msra.mxu0 0.0
        %2196 = vmatprep.subr.mxu0 0.0
        %2197 = vmatpush1.xpose.msra.mxu0 0.0
        %2198 = vmatprep.subr.mxu0 0.0
        %2199 = vmatpush1.xpose.msra.mxu0 0.0
        %2200 = vmatprep.subr.mxu0 0.0
        %2201 = vmatpush1.xpose.msra.mxu0 0.0
        %2202 = vmatprep.subr.mxu0 0.0
        %2203 = vmatpush1.xpose.msra.mxu0 0.0
        %2204 = vmatprep.mubr.f32.mxu0 0.0
        %2205 = vmatmul.mubr.f32.gmra.mrb[0].mxu0 %v2136
        %v2206 = vpop.f32.mrb[0].mxu0
        %v2207 = vadd.f32 0.0, %v2206
        %v2208 = vpop.f32.mrb[0].mxu0
        %2209 = vdwg.mxu0
        %v2210 = vsel %vm693, %v2207, -inf
        %2211 = vmax.xlane.f32.xlu0 %v2210
        %v2212 = vpop.xlane.xlu0 %2211
        %v2213 = vsub.f32 %v2207, %v2212
        %v2214 = vmul.f32 %v2213, 1.442695
        %v2215 = vpow.pop %v2214
        %v2216 = vsel %vm693, %v2215, 0.0
        %2217 = vadd.xlane.f32.xlu0 %v2216
        %v2218 = vpop.xlane.xlu0 %2217
        %v2219 = vrcp.pop %v2218
        %v2220 = vmul.f32 %v2215, %v2219
        %2221 = vrot.lane.b32.xlu0 %v1964, 56
        %v2222 = vpop.permute.xlu0 %2221
        %v2225 = vsel %vm693, %v2220, 0
        %2227 = vmatprep.subr.mxu0 0.0
        %2228 = vmatpush1.msra.mxu0 %v2222
        %2229 = vmatprep.subr.mxu0 0.0
        %2230 = vmatpush1.msra.mxu0 0.0
        %2231 = vmatprep.subr.mxu0 0.0
        %2232 = vmatpush1.msra.mxu0 0.0
        %2233 = vmatprep.subr.mxu0 0.0
        %2234 = vmatpush1.msra.mxu0 0.0
        %2235 = vmatprep.subr.mxu0 0.0
        %2236 = vmatpush1.msra.mxu0 0.0
        %2237 = vmatprep.subr.mxu0 0.0
        %2238 = vmatpush1.msra.mxu0 0.0
        %2239 = vmatprep.subr.mxu0 0.0
        %2240 = vmatpush1.msra.mxu0 0.0
        %2241 = vmatprep.subr.mxu0 0.0
        %2242 = vmatpush1.msra.mxu0 0.0
        %2243 = vmatprep.subr.mxu0 0.0
        %2244 = vmatpush1.msra.mxu0 0.0
        %2245 = vmatprep.subr.mxu0 0.0
        %2246 = vmatpush1.msra.mxu0 0.0
        %2247 = vmatprep.subr.mxu0 0.0
        %2248 = vmatpush1.msra.mxu0 0.0
        %2249 = vmatprep.subr.mxu0 0.0
        %2250 = vmatpush1.msra.mxu0 0.0
        %2251 = vmatprep.subr.mxu0 0.0
        %2252 = vmatpush1.msra.mxu0 0.0
        %2253 = vmatprep.subr.mxu0 0.0
        %2254 = vmatpush1.msra.mxu0 0.0
        %2255 = vmatprep.subr.mxu0 0.0
        %2256 = vmatpush1.msra.mxu0 0.0
        %2257 = vmatprep.subr.mxu0 0.0
        %2258 = vmatpush1.msra.mxu0 0.0
        %2259 = vmatprep.subr.mxu0 0.0
        %2260 = vmatpush1.msra.mxu0 0.0
        %2261 = vmatprep.subr.mxu0 0.0
        %2262 = vmatpush1.msra.mxu0 0.0
        %2263 = vmatprep.subr.mxu0 0.0
        %2264 = vmatpush1.msra.mxu0 0.0
        %2265 = vmatprep.subr.mxu0 0.0
        %2266 = vmatpush1.msra.mxu0 0.0
        %2267 = vmatprep.subr.mxu0 0.0
        %2268 = vmatpush1.msra.mxu0 0.0
        %2269 = vmatprep.subr.mxu0 0.0
        %2270 = vmatpush1.msra.mxu0 0.0
        %2271 = vmatprep.subr.mxu0 0.0
        %2272 = vmatpush1.msra.mxu0 0.0
        %2273 = vmatprep.subr.mxu0 0.0
        %2274 = vmatpush1.msra.mxu0 0.0
        %2275 = vmatprep.subr.mxu0 0.0
        %2276 = vmatpush1.msra.mxu0 0.0
        %2277 = vmatprep.subr.mxu0 0.0
        %2278 = vmatpush1.msra.mxu0 0.0
        %2279 = vmatprep.subr.mxu0 0.0
        %2280 = vmatpush1.msra.mxu0 0.0
        %2281 = vmatprep.subr.mxu0 0.0
        %2282 = vmatpush1.msra.mxu0 0.0
        %2283 = vmatprep.subr.mxu0 0.0
        %2284 = vmatpush1.msra.mxu0 0.0
        %2285 = vmatprep.subr.mxu0 0.0
        %2286 = vmatpush1.msra.mxu0 0.0
        %2287 = vmatprep.subr.mxu0 0.0
        %2288 = vmatpush1.msra.mxu0 0.0
        %2289 = vmatprep.subr.mxu0 0.0
        %2290 = vmatpush1.msra.mxu0 0.0
        %2291 = vmatprep.mubr.f32.mxu0 0.0
        %2292 = vmatmul.mubr.f32.gmra.mrb[0].mxu0 %v2225
        %v2293 = vpop.f32.mrb[0].mxu0
        %v2294 = vadd.f32 0.0, %v2293
        %v2295 = vpop.f32.mrb[0].mxu0
        %2296 = vdwg.mxu0
        %v2297 = vld [vmem:[%s1 + $0x208] sm:$0xff]
        %v2299 = vsel %vm693, %v2294, 0
        %2301 = vmatprep.subr.mxu0 0.0
        %2302 = vmatpush1.msra.mxu0 %v2297
        %2303 = vmatprep.subr.mxu0 0.0
        %2304 = vmatpush1.msra.mxu0 0.0
        %2305 = vmatprep.subr.mxu0 0.0
        %2306 = vmatpush1.msra.mxu0 0.0
        %2307 = vmatprep.subr.mxu0 0.0
        %2308 = vmatpush1.msra.mxu0 0.0
        %2309 = vmatprep.subr.mxu0 0.0
        %2310 = vmatpush1.msra.mxu0 0.0
        %2311 = vmatprep.subr.mxu0 0.0
        %2312 = vmatpush1.msra.mxu0 0.0
        %2313 = vmatprep.subr.mxu0 0.0
        %2314 = vmatpush1.msra.mxu0 0.0
        %2315 = vmatprep.subr.mxu0 0.0
        %2316 = vmatpush1.msra.mxu0 0.0
        %2317 = vmatprep.subr.mxu0 0.0
        %2318 = vmatpush1.msra.mxu0 0.0
        %2319 = vmatprep.subr.mxu0 0.0
        %2320 = vmatpush1.msra.mxu0 0.0
        %2321 = vmatprep.subr.mxu0 0.0
        %2322 = vmatpush1.msra.mxu0 0.0
        %2323 = vmatprep.subr.mxu0 0.0
        %2324 = vmatpush1.msra.mxu0 0.0
        %2325 = vmatprep.subr.mxu0 0.0
        %2326 = vmatpush1.msra.mxu0 0.0
        %2327 = vmatprep.subr.mxu0 0.0
        %2328 = vmatpush1.msra.mxu0 0.0
        %2329 = vmatprep.subr.mxu0 0.0
        %2330 = vmatpush1.msra.mxu0 0.0
        %2331 = vmatprep.subr.mxu0 0.0
        %2332 = vmatpush1.msra.mxu0 0.0
        %2333 = vmatprep.subr.mxu0 0.0
        %2334 = vmatpush1.msra.mxu0 0.0
        %2335 = vmatprep.subr.mxu0 0.0
        %2336 = vmatpush1.msra.mxu0 0.0
        %2337 = vmatprep.subr.mxu0 0.0
        %2338 = vmatpush1.msra.mxu0 0.0
        %2339 = vmatprep.subr.mxu0 0.0
        %2340 = vmatpush1.msra.mxu0 0.0
        %2341 = vmatprep.subr.mxu0 0.0
        %2342 = vmatpush1.msra.mxu0 0.0
        %2343 = vmatprep.subr.mxu0 0.0
        %2344 = vmatpush1.msra.mxu0 0.0
        %2345 = vmatprep.subr.mxu0 0.0
        %2346 = vmatpush1.msra.mxu0 0.0
        %2347 = vmatprep.subr.mxu0 0.0
        %2348 = vmatpush1.msra.mxu0 0.0
        %2349 = vmatprep.subr.mxu0 0.0
        %2350 = vmatpush1.msra.mxu0 0.0
        %2351 = vmatprep.subr.mxu0 0.0
        %2352 = vmatpush1.msra.mxu0 0.0
        %2353 = vmatprep.subr.mxu0 0.0
        %2354 = vmatpush1.msra.mxu0 0.0
        %2355 = vmatprep.subr.mxu0 0.0
        %2356 = vmatpush1.msra.mxu0 0.0
        %2357 = vmatprep.subr.mxu0 0.0
        %2358 = vmatpush1.msra.mxu0 0.0
        %2359 = vmatprep.subr.mxu0 0.0
        %2360 = vmatpush1.msra.mxu0 0.0
        %2361 = vmatprep.subr.mxu0 0.0
        %2362 = vmatpush1.msra.mxu0 0.0
        %2363 = vmatprep.subr.mxu0 0.0
        %2364 = vmatpush1.msra.mxu0 0.0
        %2365 = vmatprep.mubr.f32.mxu0 0.0
        %2366 = vmatmul.mubr.f32.gmra.mrb[0].mxu0 %v2299
        %v2367 = vpop.f32.mrb[0].mxu0
        %v2368 = vadd.f32 0.0, %v2367
        %v2369 = vpop.f32.mrb[0].mxu0
        %2370 = vdwg.mxu0
        %v2372 = vsel %vm693, %v2128, 0
        %2374 = vmatprep.subr.mxu0 0.0
        %2375 = vmatpush1.msra.mxu0 %v2131
        %2376 = vmatprep.subr.mxu0 0.0
        %2377 = vmatpush1.msra.mxu0 0.0
        %2378 = vmatprep.subr.mxu0 0.0
        %2379 = vmatpush1.msra.mxu0 0.0
        %2380 = vmatprep.subr.mxu0 0.0
        %2381 = vmatpush1.msra.mxu0 0.0
        %2382 = vmatprep.subr.mxu0 0.0
        %2383 = vmatpush1.msra.mxu0 0.0
        %2384 = vmatprep.subr.mxu0 0.0
        %2385 = vmatpush1.msra.mxu0 0.0
        %2386 = vmatprep.subr.mxu0 0.0
        %2387 = vmatpush1.msra.mxu0 0.0
        %2388 = vmatprep.subr.mxu0 0.0
        %2389 = vmatpush1.msra.mxu0 0.0
        %2390 = vmatprep.subr.mxu0 0.0
        %2391 = vmatpush1.msra.mxu0 0.0
        %2392 = vmatprep.subr.mxu0 0.0
        %2393 = vmatpush1.msra.mxu0 0.0
        %2394 = vmatprep.subr.mxu0 0.0
        %2395 = vmatpush1.msra.mxu0 0.0
        %2396 = vmatprep.subr.mxu0 0.0
        %2397 = vmatpush1.msra.mxu0 0.0
        %2398 = vmatprep.subr.mxu0 0.0
        %2399 = vmatpush1.msra.mxu0 0.0
        %2400 = vmatprep.subr.mxu0 0.0
        %2401 = vmatpush1.msra.mxu0 0.0
        %2402 = vmatprep.subr.mxu0 0.0
        %2403 = vmatpush1.msra.mxu0 0.0
        %2404 = vmatprep.subr.mxu0 0.0
        %2405 = vmatpush1.msra.mxu0 0.0
        %2406 = vmatprep.subr.mxu0 0.0
        %2407 = vmatpush1.msra.mxu0 0.0
        %2408 = vmatprep.subr.mxu0 0.0
        %2409 = vmatpush1.msra.mxu0 0.0
        %2410 = vmatprep.subr.mxu0 0.0
        %2411 = vmatpush1.msra.mxu0 0.0
        %2412 = vmatprep.subr.mxu0 0.0
        %2413 = vmatpush1.msra.mxu0 0.0
        %2414 = vmatprep.subr.mxu0 0.0
        %2415 = vmatpush1.msra.mxu0 0.0
        %2416 = vmatprep.subr.mxu0 0.0
        %2417 = vmatpush1.msra.mxu0 0.0
        %2418 = vmatprep.subr.mxu0 0.0
        %2419 = vmatpush1.msra.mxu0 0.0
        %2420 = vmatprep.subr.mxu0 0.0
        %2421 = vmatpush1.msra.mxu0 0.0
        %2422 = vmatprep.subr.mxu0 0.0
        %2423 = vmatpush1.msra.mxu0 0.0
        %2424 = vmatprep.subr.mxu0 0.0
        %2425 = vmatpush1.msra.mxu0 0.0
        %2426 = vmatprep.subr.mxu0 0.0
        %2427 = vmatpush1.msra.mxu0 0.0
        %2428 = vmatprep.subr.mxu0 0.0
        %2429 = vmatpush1.msra.mxu0 0.0
        %2430 = vmatprep.subr.mxu0 0.0
        %2431 = vmatpush1.msra.mxu0 0.0
        %2432 = vmatprep.subr.mxu0 0.0
        %2433 = vmatpush1.msra.mxu0 0.0
        %2434 = vmatprep.subr.mxu0 0.0
        %2435 = vmatpush1.msra.mxu0 0.0
        %2436 = vmatprep.subr.mxu0 0.0
        %2437 = vmatpush1.msra.mxu0 0.0
        %2438 = vmatprep.mubr.f32.mxu0 0.0
        %2439 = vmatmul.mubr.f32.gmra.mrb[0].mxu0 %v2372
        %v2440 = vpop.f32.mrb[0].mxu0
        %v2441 = vadd.f32 %v2368, %v2440
        %v2442 = vpop.f32.mrb[0].mxu0
        %2443 = vdwg.mxu0
        %2444 = vrot.lane.b32.xlu0 %v1964, 112
        %v2445 = vpop.permute.xlu0 %2444
        %2446 = vrot.lane.b32.xlu0 %v1964, 80
        %v2447 = vpop.permute.xlu0 %2446
        %v2448 = vsel %vm693, %v2445, 0
        %v2450 = vsel %vm693, %v2447, 0
        %2452 = vmatprep.subr.mxu0 0.0
        %2453 = vmatpush1.xpose.msra.mxu0 %v2450
        %2454 = vmatprep.subr.mxu0 0.0
        %2455 = vmatpush1.xpose.msra.mxu0 0.0
        %2456 = vmatprep.subr.mxu0 0.0
        %2457 = vmatpush1.xpose.msra.mxu0 0.0
        %2458 = vmatprep.subr.mxu0 0.0
        %2459 = vmatpush1.xpose.msra.mxu0 0.0
        %2460 = vmatprep.subr.mxu0 0.0
        %2461 = vmatpush1.xpose.msra.mxu0 0.0
        %2462 = vmatprep.subr.mxu0 0.0
        %2463 = vmatpush1.xpose.msra.mxu0 0.0
        %2464 = vmatprep.subr.mxu0 0.0
        %2465 = vmatpush1.xpose.msra.mxu0 0.0
        %2466 = vmatprep.subr.mxu0 0.0
        %2467 = vmatpush1.xpose.msra.mxu0 0.0
        %2468 = vmatprep.subr.mxu0 0.0
        %2469 = vmatpush1.xpose.msra.mxu0 0.0
        %2470 = vmatprep.subr.mxu0 0.0
        %2471 = vmatpush1.xpose.msra.mxu0 0.0
        %2472 = vmatprep.subr.mxu0 0.0
        %2473 = vmatpush1.xpose.msra.mxu0 0.0
        %2474 = vmatprep.subr.mxu0 0.0
        %2475 = vmatpush1.xpose.msra.mxu0 0.0
        %2476 = vmatprep.subr.mxu0 0.0
        %2477 = vmatpush1.xpose.msra.mxu0 0.0
        %2478 = vmatprep.subr.mxu0 0.0
        %2479 = vmatpush1.xpose.msra.mxu0 0.0
        %2480 = vmatprep.subr.mxu0 0.0
        %2481 = vmatpush1.xpose.msra.mxu0 0.0
        %2482 = vmatprep.subr.mxu0 0.0
        %2483 = vmatpush1.xpose.msra.mxu0 0.0
        %2484 = vmatprep.subr.mxu0 0.0
        %2485 = vmatpush1.xpose.msra.mxu0 0.0
        %2486 = vmatprep.subr.mxu0 0.0
        %2487 = vmatpush1.xpose.msra.mxu0 0.0
        %2488 = vmatprep.subr.mxu0 0.0
        %2489 = vmatpush1.xpose.msra.mxu0 0.0
        %2490 = vmatprep.subr.mxu0 0.0
        %2491 = vmatpush1.xpose.msra.mxu0 0.0
        %2492 = vmatprep.subr.mxu0 0.0
        %2493 = vmatpush1.xpose.msra.mxu0 0.0
        %2494 = vmatprep.subr.mxu0 0.0
        %2495 = vmatpush1.xpose.msra.mxu0 0.0
        %2496 = vmatprep.subr.mxu0 0.0
        %2497 = vmatpush1.xpose.msra.mxu0 0.0
        %2498 = vmatprep.subr.mxu0 0.0
        %2499 = vmatpush1.xpose.msra.mxu0 0.0
        %2500 = vmatprep.subr.mxu0 0.0
        %2501 = vmatpush1.xpose.msra.mxu0 0.0
        %2502 = vmatprep.subr.mxu0 0.0
        %2503 = vmatpush1.xpose.msra.mxu0 0.0
        %2504 = vmatprep.subr.mxu0 0.0
        %2505 = vmatpush1.xpose.msra.mxu0 0.0
        %2506 = vmatprep.subr.mxu0 0.0
        %2507 = vmatpush1.xpose.msra.mxu0 0.0
        %2508 = vmatprep.subr.mxu0 0.0
        %2509 = vmatpush1.xpose.msra.mxu0 0.0
        %2510 = vmatprep.subr.mxu0 0.0
        %2511 = vmatpush1.xpose.msra.mxu0 0.0
        %2512 = vmatprep.subr.mxu0 0.0
        %2513 = vmatpush1.xpose.msra.mxu0 0.0
        %2514 = vmatprep.subr.mxu0 0.0
        %2515 = vmatpush1.xpose.msra.mxu0 0.0
        %2516 = vmatprep.mubr.f32.mxu0 0.0
        %2517 = vmatmul.mubr.f32.gmra.mrb[0].mxu0 %v2448
        %v2518 = vpop.f32.mrb[0].mxu0
        %v2519 = vadd.f32 0.0, %v2518
        %v2520 = vpop.f32.mrb[0].mxu0
        %2521 = vdwg.mxu0
        %v2522 = vsel %vm693, %v2519, -inf
        %2523 = vmax.xlane.f32.xlu0 %v2522
        %v2524 = vpop.xlane.xlu0 %2523
        %v2525 = vsub.f32 %v2519, %v2524
        %v2526 = vmul.f32 %v2525, 1.442695
        %v2527 = vpow.pop %v2526
        %v2528 = vsel %vm693, %v2527, 0.0
        %2529 = vadd.xlane.f32.xlu0 %v2528
        %v2530 = vpop.xlane.xlu0 %2529
        %v2531 = vrcp.pop %v2530
        %v2532 = vmul.f32 %v2527, %v2531
        %2533 = vrot.lane.b32.xlu0 %v1964, 48
        %v2534 = vpop.permute.xlu0 %2533
        %v2537 = vsel %vm693, %v2532, 0
        %2539 = vmatprep.subr.mxu0 0.0
        %2540 = vmatpush1.msra.mxu0 %v2534
        %2541 = vmatprep.subr.mxu0 0.0
        %2542 = vmatpush1.msra.mxu0 0.0
        %2543 = vmatprep.subr.mxu0 0.0
        %2544 = vmatpush1.msra.mxu0 0.0
        %2545 = vmatprep.subr.mxu0 0.0
        %2546 = vmatpush1.msra.mxu0 0.0
        %2547 = vmatprep.subr.mxu0 0.0
        %2548 = vmatpush1.msra.mxu0 0.0
        %2549 = vmatprep.subr.mxu0 0.0
        %2550 = vmatpush1.msra.mxu0 0.0
        %2551 = vmatprep.subr.mxu0 0.0
        %2552 = vmatpush1.msra.mxu0 0.0
        %2553 = vmatprep.subr.mxu0 0.0
        %2554 = vmatpush1.msra.mxu0 0.0
        %2555 = vmatprep.subr.mxu0 0.0
        %2556 = vmatpush1.msra.mxu0 0.0
        %2557 = vmatprep.subr.mxu0 0.0
        %2558 = vmatpush1.msra.mxu0 0.0
        %2559 = vmatprep.subr.mxu0 0.0
        %2560 = vmatpush1.msra.mxu0 0.0
        %2561 = vmatprep.subr.mxu0 0.0
        %2562 = vmatpush1.msra.mxu0 0.0
        %2563 = vmatprep.subr.mxu0 0.0
        %2564 = vmatpush1.msra.mxu0 0.0
        %2565 = vmatprep.subr.mxu0 0.0
        %2566 = vmatpush1.msra.mxu0 0.0
        %2567 = vmatprep.subr.mxu0 0.0
        %2568 = vmatpush1.msra.mxu0 0.0
        %2569 = vmatprep.subr.mxu0 0.0
        %2570 = vmatpush1.msra.mxu0 0.0
        %2571 = vmatprep.subr.mxu0 0.0
        %2572 = vmatpush1.msra.mxu0 0.0
        %2573 = vmatprep.subr.mxu0 0.0
        %2574 = vmatpush1.msra.mxu0 0.0
        %2575 = vmatprep.subr.mxu0 0.0
        %2576 = vmatpush1.msra.mxu0 0.0
        %2577 = vmatprep.subr.mxu0 0.0
        %2578 = vmatpush1.msra.mxu0 0.0
        %2579 = vmatprep.subr.mxu0 0.0
        %2580 = vmatpush1.msra.mxu0 0.0
        %2581 = vmatprep.subr.mxu0 0.0
        %2582 = vmatpush1.msra.mxu0 0.0
        %2583 = vmatprep.subr.mxu0 0.0
        %2584 = vmatpush1.msra.mxu0 0.0
        %2585 = vmatprep.subr.mxu0 0.0
        %2586 = vmatpush1.msra.mxu0 0.0
        %2587 = vmatprep.subr.mxu0 0.0
        %2588 = vmatpush1.msra.mxu0 0.0
        %2589 = vmatprep.subr.mxu0 0.0
        %2590 = vmatpush1.msra.mxu0 0.0
        %2591 = vmatprep.subr.mxu0 0.0
        %2592 = vmatpush1.msra.mxu0 0.0
        %2593 = vmatprep.subr.mxu0 0.0
        %2594 = vmatpush1.msra.mxu0 0.0
        %2595 = vmatprep.subr.mxu0 0.0
        %2596 = vmatpush1.msra.mxu0 0.0
        %2597 = vmatprep.subr.mxu0 0.0
        %2598 = vmatpush1.msra.mxu0 0.0
        %2599 = vmatprep.subr.mxu0 0.0
        %2600 = vmatpush1.msra.mxu0 0.0
        %2601 = vmatprep.subr.mxu0 0.0
        %2602 = vmatpush1.msra.mxu0 0.0
        %2603 = vmatprep.mubr.f32.mxu0 0.0
        %2604 = vmatmul.mubr.f32.gmra.mrb[0].mxu0 %v2537
        %v2605 = vpop.f32.mrb[0].mxu0
        %v2606 = vadd.f32 0.0, %v2605
        %v2607 = vpop.f32.mrb[0].mxu0
        %2608 = vdwg.mxu0
        %v2609 = vld [vmem:[%s1 + $0x210] sm:$0xff]
        %v2611 = vsel %vm693, %v2606, 0
        %2613 = vmatprep.subr.mxu0 0.0
        %2614 = vmatpush1.msra.mxu0 %v2609
        %2615 = vmatprep.subr.mxu0 0.0
        %2616 = vmatpush1.msra.mxu0 0.0
        %2617 = vmatprep.subr.mxu0 0.0
        %2618 = vmatpush1.msra.mxu0 0.0
        %2619 = vmatprep.subr.mxu0 0.0
        %2620 = vmatpush1.msra.mxu0 0.0
        %2621 = vmatprep.subr.mxu0 0.0
        %2622 = vmatpush1.msra.mxu0 0.0
        %2623 = vmatprep.subr.mxu0 0.0
        %2624 = vmatpush1.msra.mxu0 0.0
        %2625 = vmatprep.subr.mxu0 0.0
        %2626 = vmatpush1.msra.mxu0 0.0
        %2627 = vmatprep.subr.mxu0 0.0
        %2628 = vmatpush1.msra.mxu0 0.0
        %2629 = vmatprep.subr.mxu0 0.0
        %2630 = vmatpush1.msra.mxu0 0.0
        %2631 = vmatprep.subr.mxu0 0.0
        %2632 = vmatpush1.msra.mxu0 0.0
        %2633 = vmatprep.subr.mxu0 0.0
        %2634 = vmatpush1.msra.mxu0 0.0
        %2635 = vmatprep.subr.mxu0 0.0
        %2636 = vmatpush1.msra.mxu0 0.0
        %2637 = vmatprep.subr.mxu0 0.0
        %2638 = vmatpush1.msra.mxu0 0.0
        %2639 = vmatprep.subr.mxu0 0.0
        %2640 = vmatpush1.msra.mxu0 0.0
        %2641 = vmatprep.subr.mxu0 0.0
        %2642 = vmatpush1.msra.mxu0 0.0
        %2643 = vmatprep.subr.mxu0 0.0
        %2644 = vmatpush1.msra.mxu0 0.0
        %2645 = vmatprep.subr.mxu0 0.0
        %2646 = vmatpush1.msra.mxu0 0.0
        %2647 = vmatprep.subr.mxu0 0.0
        %2648 = vmatpush1.msra.mxu0 0.0
        %2649 = vmatprep.subr.mxu0 0.0
        %2650 = vmatpush1.msra.mxu0 0.0
        %2651 = vmatprep.subr.mxu0 0.0
        %2652 = vmatpush1.msra.mxu0 0.0
        %2653 = vmatprep.subr.mxu0 0.0
        %2654 = vmatpush1.msra.mxu0 0.0
        %2655 = vmatprep.subr.mxu0 0.0
        %2656 = vmatpush1.msra.mxu0 0.0
        %2657 = vmatprep.subr.mxu0 0.0
        %2658 = vmatpush1.msra.mxu0 0.0
        %2659 = vmatprep.subr.mxu0 0.0
        %2660 = vmatpush1.msra.mxu0 0.0
        %2661 = vmatprep.subr.mxu0 0.0
        %2662 = vmatpush1.msra.mxu0 0.0
        %2663 = vmatprep.subr.mxu0 0.0
        %2664 = vmatpush1.msra.mxu0 0.0
        %2665 = vmatprep.subr.mxu0 0.0
        %2666 = vmatpush1.msra.mxu0 0.0
        %2667 = vmatprep.subr.mxu0 0.0
        %2668 = vmatpush1.msra.mxu0 0.0
        %2669 = vmatprep.subr.mxu0 0.0
        %2670 = vmatpush1.msra.mxu0 0.0
        %2671 = vmatprep.subr.mxu0 0.0
        %2672 = vmatpush1.msra.mxu0 0.0
        %2673 = vmatprep.subr.mxu0 0.0
        %2674 = vmatpush1.msra.mxu0 0.0
        %2675 = vmatprep.subr.mxu0 0.0
        %2676 = vmatpush1.msra.mxu0 0.0
        %2677 = vmatprep.mubr.f32.mxu0 0.0
        %2678 = vmatmul.mubr.f32.gmra.mrb[0].mxu0 %v2611
        %v2679 = vpop.f32.mrb[0].mxu0
        %v2680 = vadd.f32 0.0, %v2679
        %v2681 = vpop.f32.mrb[0].mxu0
        %2682 = vdwg.mxu0
        %v2683 = vadd.f32 %v2441, %v2680
        %2684 = vrot.lane.b32.xlu0 %v1964, 104
        %v2685 = vpop.permute.xlu0 %2684
        %2686 = vrot.lane.b32.xlu0 %v1964, 72
        %v2687 = vpop.permute.xlu0 %2686
        %v2688 = vsel %vm693, %v2685, 0
        %v2690 = vsel %vm693, %v2687, 0
        %2692 = vmatprep.subr.mxu0 0.0
        %2693 = vmatpush1.xpose.msra.mxu0 %v2690
        %2694 = vmatprep.subr.mxu0 0.0
        %2695 = vmatpush1.xpose.msra.mxu0 0.0
        %2696 = vmatprep.subr.mxu0 0.0
        %2697 = vmatpush1.xpose.msra.mxu0 0.0
        %2698 = vmatprep.subr.mxu0 0.0
        %2699 = vmatpush1.xpose.msra.mxu0 0.0
        %2700 = vmatprep.subr.mxu0 0.0
        %2701 = vmatpush1.xpose.msra.mxu0 0.0
        %2702 = vmatprep.subr.mxu0 0.0
        %2703 = vmatpush1.xpose.msra.mxu0 0.0
        %2704 = vmatprep.subr.mxu0 0.0
        %2705 = vmatpush1.xpose.msra.mxu0 0.0
        %2706 = vmatprep.subr.mxu0 0.0
        %2707 = vmatpush1.xpose.msra.mxu0 0.0
        %2708 = vmatprep.subr.mxu0 0.0
        %2709 = vmatpush1.xpose.msra.mxu0 0.0
        %2710 = vmatprep.subr.mxu0 0.0
        %2711 = vmatpush1.xpose.msra.mxu0 0.0
        %2712 = vmatprep.subr.mxu0 0.0
        %2713 = vmatpush1.xpose.msra.mxu0 0.0
        %2714 = vmatprep.subr.mxu0 0.0
        %2715 = vmatpush1.xpose.msra.mxu0 0.0
        %2716 = vmatprep.subr.mxu0 0.0
        %2717 = vmatpush1.xpose.msra.mxu0 0.0
        %2718 = vmatprep.subr.mxu0 0.0
        %2719 = vmatpush1.xpose.msra.mxu0 0.0
        %2720 = vmatprep.subr.mxu0 0.0
        %2721 = vmatpush1.xpose.msra.mxu0 0.0
        %2722 = vmatprep.subr.mxu0 0.0
        %2723 = vmatpush1.xpose.msra.mxu0 0.0
        %2724 = vmatprep.subr.mxu0 0.0
        %2725 = vmatpush1.xpose.msra.mxu0 0.0
        %2726 = vmatprep.subr.mxu0 0.0
        %2727 = vmatpush1.xpose.msra.mxu0 0.0
        %2728 = vmatprep.subr.mxu0 0.0
        %2729 = vmatpush1.xpose.msra.mxu0 0.0
        %2730 = vmatprep.subr.mxu0 0.0
        %2731 = vmatpush1.xpose.msra.mxu0 0.0
        %2732 = vmatprep.subr.mxu0 0.0
        %2733 = vmatpush1.xpose.msra.mxu0 0.0
        %2734 = vmatprep.subr.mxu0 0.0
        %2735 = vmatpush1.xpose.msra.mxu0 0.0
        %2736 = vmatprep.subr.mxu0 0.0
        %2737 = vmatpush1.xpose.msra.mxu0 0.0
        %2738 = vmatprep.subr.mxu0 0.0
        %2739 = vmatpush1.xpose.msra.mxu0 0.0
        %2740 = vmatprep.subr.mxu0 0.0
        %2741 = vmatpush1.xpose.msra.mxu0 0.0
        %2742 = vmatprep.subr.mxu0 0.0
        %2743 = vmatpush1.xpose.msra.mxu0 0.0
        %2744 = vmatprep.subr.mxu0 0.0
        %2745 = vmatpush1.xpose.msra.mxu0 0.0
        %2746 = vmatprep.subr.mxu0 0.0
        %2747 = vmatpush1.xpose.msra.mxu0 0.0
        %2748 = vmatprep.subr.mxu0 0.0
        %2749 = vmatpush1.xpose.msra.mxu0 0.0
        %2750 = vmatprep.subr.mxu0 0.0
        %2751 = vmatpush1.xpose.msra.mxu0 0.0
        %2752 = vmatprep.subr.mxu0 0.0
        %2753 = vmatpush1.xpose.msra.mxu0 0.0
        %2754 = vmatprep.subr.mxu0 0.0
        %2755 = vmatpush1.xpose.msra.mxu0 0.0
        %2756 = vmatprep.mubr.f32.mxu0 0.0
        %2757 = vmatmul.mubr.f32.gmra.mrb[0].mxu0 %v2688
        %v2758 = vpop.f32.mrb[0].mxu0
        %v2759 = vadd.f32 0.0, %v2758
        %v2760 = vpop.f32.mrb[0].mxu0
        %2761 = vdwg.mxu0
        %v2762 = vsel %vm693, %v2759, -inf
        %2763 = vmax.xlane.f32.xlu0 %v2762
        %v2764 = vpop.xlane.xlu0 %2763
        %v2765 = vsub.f32 %v2759, %v2764
        %v2766 = vmul.f32 %v2765, 1.442695
        %v2767 = vpow.pop %v2766
        %v2768 = vsel %vm693, %v2767, 0.0
        %2769 = vadd.xlane.f32.xlu0 %v2768
        %v2770 = vpop.xlane.xlu0 %2769
        %v2771 = vrcp.pop %v2770
        %v2772 = vmul.f32 %v2767, %v2771
        %2773 = vrot.lane.b32.xlu0 %v1964, 40
        %v2774 = vpop.permute.xlu0 %2773
        %v2777 = vsel %vm693, %v2772, 0
        %2779 = vmatprep.subr.mxu0 0.0
        %2780 = vmatpush1.msra.mxu0 %v2774
        %2781 = vmatprep.subr.mxu0 0.0
        %2782 = vmatpush1.msra.mxu0 0.0
        %2783 = vmatprep.subr.mxu0 0.0
        %2784 = vmatpush1.msra.mxu0 0.0
        %2785 = vmatprep.subr.mxu0 0.0
        %2786 = vmatpush1.msra.mxu0 0.0
        %2787 = vmatprep.subr.mxu0 0.0
        %2788 = vmatpush1.msra.mxu0 0.0
        %2789 = vmatprep.subr.mxu0 0.0
        %2790 = vmatpush1.msra.mxu0 0.0
        %2791 = vmatprep.subr.mxu0 0.0
        %2792 = vmatpush1.msra.mxu0 0.0
        %2793 = vmatprep.subr.mxu0 0.0
        %2794 = vmatpush1.msra.mxu0 0.0
        %2795 = vmatprep.subr.mxu0 0.0
        %2796 = vmatpush1.msra.mxu0 0.0
        %2797 = vmatprep.subr.mxu0 0.0
        %2798 = vmatpush1.msra.mxu0 0.0
        %2799 = vmatprep.subr.mxu0 0.0
        %2800 = vmatpush1.msra.mxu0 0.0
        %2801 = vmatprep.subr.mxu0 0.0
        %2802 = vmatpush1.msra.mxu0 0.0
        %2803 = vmatprep.subr.mxu0 0.0
        %2804 = vmatpush1.msra.mxu0 0.0
        %2805 = vmatprep.subr.mxu0 0.0
        %2806 = vmatpush1.msra.mxu0 0.0
        %2807 = vmatprep.subr.mxu0 0.0
        %2808 = vmatpush1.msra.mxu0 0.0
        %2809 = vmatprep.subr.mxu0 0.0
        %2810 = vmatpush1.msra.mxu0 0.0
        %2811 = vmatprep.subr.mxu0 0.0
        %2812 = vmatpush1.msra.mxu0 0.0
        %2813 = vmatprep.subr.mxu0 0.0
        %2814 = vmatpush1.msra.mxu0 0.0
        %2815 = vmatprep.subr.mxu0 0.0
        %2816 = vmatpush1.msra.mxu0 0.0
        %2817 = vmatprep.subr.mxu0 0.0
        %2818 = vmatpush1.msra.mxu0 0.0
        %2819 = vmatprep.subr.mxu0 0.0
        %2820 = vmatpush1.msra.mxu0 0.0
        %2821 = vmatprep.subr.mxu0 0.0
        %2822 = vmatpush1.msra.mxu0 0.0
        %2823 = vmatprep.subr.mxu0 0.0
        %2824 = vmatpush1.msra.mxu0 0.0
        %2825 = vmatprep.subr.mxu0 0.0
        %2826 = vmatpush1.msra.mxu0 0.0
        %2827 = vmatprep.subr.mxu0 0.0
        %2828 = vmatpush1.msra.mxu0 0.0
        %2829 = vmatprep.subr.mxu0 0.0
        %2830 = vmatpush1.msra.mxu0 0.0
        %2831 = vmatprep.subr.mxu0 0.0
        %2832 = vmatpush1.msra.mxu0 0.0
        %2833 = vmatprep.subr.mxu0 0.0
        %2834 = vmatpush1.msra.mxu0 0.0
        %2835 = vmatprep.subr.mxu0 0.0
        %2836 = vmatpush1.msra.mxu0 0.0
        %2837 = vmatprep.subr.mxu0 0.0
        %2838 = vmatpush1.msra.mxu0 0.0
        %2839 = vmatprep.subr.mxu0 0.0
        %2840 = vmatpush1.msra.mxu0 0.0
        %2841 = vmatprep.subr.mxu0 0.0
        %2842 = vmatpush1.msra.mxu0 0.0
        %2843 = vmatprep.mubr.f32.mxu0 0.0
        %2844 = vmatmul.mubr.f32.gmra.mrb[0].mxu0 %v2777
        %v2845 = vpop.f32.mrb[0].mxu0
        %v2846 = vadd.f32 0.0, %v2845
        %v2847 = vpop.f32.mrb[0].mxu0
        %2848 = vdwg.mxu0
        %v2849 = vld [vmem:[%s1 + $0x218] sm:$0xff]
        %v2851 = vsel %vm693, %v2846, 0
        %2853 = vmatprep.subr.mxu0 0.0
        %2854 = vmatpush1.msra.mxu0 %v2849
        %2855 = vmatprep.subr.mxu0 0.0
        %2856 = vmatpush1.msra.mxu0 0.0
        %2857 = vmatprep.subr.mxu0 0.0
        %2858 = vmatpush1.msra.mxu0 0.0
        %2859 = vmatprep.subr.mxu0 0.0
        %2860 = vmatpush1.msra.mxu0 0.0
        %2861 = vmatprep.subr.mxu0 0.0
        %2862 = vmatpush1.msra.mxu0 0.0
        %2863 = vmatprep.subr.mxu0 0.0
        %2864 = vmatpush1.msra.mxu0 0.0
        %2865 = vmatprep.subr.mxu0 0.0
        %2866 = vmatpush1.msra.mxu0 0.0
        %2867 = vmatprep.subr.mxu0 0.0
        %2868 = vmatpush1.msra.mxu0 0.0
        %2869 = vmatprep.subr.mxu0 0.0
        %2870 = vmatpush1.msra.mxu0 0.0
        %2871 = vmatprep.subr.mxu0 0.0
        %2872 = vmatpush1.msra.mxu0 0.0
        %2873 = vmatprep.subr.mxu0 0.0
        %2874 = vmatpush1.msra.mxu0 0.0
        %2875 = vmatprep.subr.mxu0 0.0
        %2876 = vmatpush1.msra.mxu0 0.0
        %2877 = vmatprep.subr.mxu0 0.0
        %2878 = vmatpush1.msra.mxu0 0.0
        %2879 = vmatprep.subr.mxu0 0.0
        %2880 = vmatpush1.msra.mxu0 0.0
        %2881 = vmatprep.subr.mxu0 0.0
        %2882 = vmatpush1.msra.mxu0 0.0
        %2883 = vmatprep.subr.mxu0 0.0
        %2884 = vmatpush1.msra.mxu0 0.0
        %2885 = vmatprep.subr.mxu0 0.0
        %2886 = vmatpush1.msra.mxu0 0.0
        %2887 = vmatprep.subr.mxu0 0.0
        %2888 = vmatpush1.msra.mxu0 0.0
        %2889 = vmatprep.subr.mxu0 0.0
        %2890 = vmatpush1.msra.mxu0 0.0
        %2891 = vmatprep.subr.mxu0 0.0
        %2892 = vmatpush1.msra.mxu0 0.0
        %2893 = vmatprep.subr.mxu0 0.0
        %2894 = vmatpush1.msra.mxu0 0.0
        %2895 = vmatprep.subr.mxu0 0.0
        %2896 = vmatpush1.msra.mxu0 0.0
        %2897 = vmatprep.subr.mxu0 0.0
        %2898 = vmatpush1.msra.mxu0 0.0
        %2899 = vmatprep.subr.mxu0 0.0
        %2900 = vmatpush1.msra.mxu0 0.0
        %2901 = vmatprep.subr.mxu0 0.0
        %2902 = vmatpush1.msra.mxu0 0.0
        %2903 = vmatprep.subr.mxu0 0.0
        %2904 = vmatpush1.msra.mxu0 0.0
        %2905 = vmatprep.subr.mxu0 0.0
        %2906 = vmatpush1.msra.mxu0 0.0
        %2907 = vmatprep.subr.mxu0 0.0
        %2908 = vmatpush1.msra.mxu0 0.0
        %2909 = vmatprep.subr.mxu0 0.0
        %2910 = vmatpush1.msra.mxu0 0.0
        %2911 = vmatprep.subr.mxu0 0.0
        %2912 = vmatpush1.msra.mxu0 0.0
        %2913 = vmatprep.subr.mxu0 0.0
        %2914 = vmatpush1.msra.mxu0 0.0
        %2915 = vmatprep.subr.mxu0 0.0
        %2916 = vmatpush1.msra.mxu0 0.0
        %2917 = vmatprep.mubr.f32.mxu0 0.0
        %2918 = vmatmul.mubr.f32.gmra.mrb[0].mxu0 %v2851
        %v2919 = vpop.f32.mrb[0].mxu0
        %v2920 = vadd.f32 0.0, %v2919
        %v2921 = vpop.f32.mrb[0].mxu0
        %2922 = vdwg.mxu0
        %v2923 = vadd.f32 %v2683, %v2920
        %v2924 = vadd.f32 %v1859, %v2923
        %v2925 = vld [vmem:[%s1 + $0x220] sm:$0x1]
        %v2926 = vlaneseq
        %v2927 = vshrl.u32 %v2926, 7
        %v2928 = vsub.s32 0, %v2927
        %v2929 = vrot.slane %v2925, %v2928
        %v2930 = vadd.f32 %v2924, %v2929
        %v2931 = vld [vmem:[%s1 + $0x228] sm:$0x1]
        %v2932 = vld [vmem:[%s1 + $0x230] sm:$0x1]
        %v2933 = vsel %vm344, %v2930, 0.0
        %2934 = vadd.xlane.f32.xlu0 %v2933
        %v2935 = vpop.xlane.xlu0 %2934
        %v2936 = vmul.f32 %v2935, %v587
        %v2937 = vsub.f32 %v2930, %v2936
        %v2938 = vmul.f32 %v2937, %v2937
        %v2939 = vsel %vm344, %v2938, 0.0
        %2940 = vadd.xlane.f32.xlu0 %v2939
        %v2941 = vpop.xlane.xlu0 %2940
        %v2942 = vmul.f32 %v2941, %v587
        %v2943 = vadd.f32 %v2942, 1e-05
        %v2944 = vrsqrt.pop %v2943
        %v2945 = vmul.f32 %v2937, %v2944
        %v2946 = vlaneseq
        %v2947 = vshrl.u32 %v2946, 7
        %v2948 = vsub.s32 0, %v2947
        %v2949 = vrot.slane %v2931, %v2948
        %v2950 = vmul.f32 %v2945, %v2949
        %v2951 = vlaneseq
        %v2952 = vshrl.u32 %v2951, 7
        %v2953 = vsub.s32 0, %v2952
        %v2954 = vrot.slane %v2932, %v2953
        %v2955 = vadd.f32 %v2950, %v2954
        %v2956 = vld [vmem:[%s1 + $0x238] sm:$0xff]
        %v2957 = vld [vmem:[%s1 + $0x240] sm:$0xff]
        %v2958 = vld [vmem:[%s1 + $0x248] sm:$0xff]
        %v2959 = vld [vmem:[%s1 + $0x250] sm:$0xff]
        %v2960 = vld [vmem:[%s1 + $0x258] sm:$0x1]
        %v2961 = vlaneseq
        %v2962 = vshrl.u32 %v2961, 7
        %v2963 = vsub.s32 0, %v2962
        %v2964 = vrot.slane %v2960, %v2963
        %v2966 = vsel %vm344, %v2955, 0
        %2968 = vmatprep.subr.mxu0 0.0
        %2969 = vmatpush1.msra.mxu0 %v2956
        %2970 = vmatprep.subr.mxu0 0.0
        %2971 = vmatpush1.msra.mxu0 %v2957
        %2972 = vmatprep.subr.mxu0 0.0
        %2973 = vmatpush1.msra.mxu0 %v2958
        %2974 = vmatprep.subr.mxu0 0.0
        %2975 = vmatpush1.msra.mxu0 %v2959
        %2976 = vmatprep.subr.mxu0 0.0
        %2977 = vmatpush1.msra.mxu0 0.0
        %2978 = vmatprep.subr.mxu0 0.0
        %2979 = vmatpush1.msra.mxu0 0.0
        %2980 = vmatprep.subr.mxu0 0.0
        %2981 = vmatpush1.msra.mxu0 0.0
        %2982 = vmatprep.subr.mxu0 0.0
        %2983 = vmatpush1.msra.mxu0 0.0
        %2984 = vmatprep.subr.mxu0 0.0
        %2985 = vmatpush1.msra.mxu0 0.0
        %2986 = vmatprep.subr.mxu0 0.0
        %2987 = vmatpush1.msra.mxu0 0.0
        %2988 = vmatprep.subr.mxu0 0.0
        %2989 = vmatpush1.msra.mxu0 0.0
        %2990 = vmatprep.subr.mxu0 0.0
        %2991 = vmatpush1.msra.mxu0 0.0
        %2992 = vmatprep.subr.mxu0 0.0
        %2993 = vmatpush1.msra.mxu0 0.0
        %2994 = vmatprep.subr.mxu0 0.0
        %2995 = vmatpush1.msra.mxu0 0.0
        %2996 = vmatprep.subr.mxu0 0.0
        %2997 = vmatpush1.msra.mxu0 0.0
        %2998 = vmatprep.subr.mxu0 0.0
        %2999 = vmatpush1.msra.mxu0 0.0
        %3000 = vmatprep.subr.mxu0 0.0
        %3001 = vmatpush1.msra.mxu0 0.0
        %3002 = vmatprep.subr.mxu0 0.0
        %3003 = vmatpush1.msra.mxu0 0.0
        %3004 = vmatprep.subr.mxu0 0.0
        %3005 = vmatpush1.msra.mxu0 0.0
        %3006 = vmatprep.subr.mxu0 0.0
        %3007 = vmatpush1.msra.mxu0 0.0
        %3008 = vmatprep.subr.mxu0 0.0
        %3009 = vmatpush1.msra.mxu0 0.0
        %3010 = vmatprep.subr.mxu0 0.0
        %3011 = vmatpush1.msra.mxu0 0.0
        %3012 = vmatprep.subr.mxu0 0.0
        %3013 = vmatpush1.msra.mxu0 0.0
        %3014 = vmatprep.subr.mxu0 0.0
        %3015 = vmatpush1.msra.mxu0 0.0
        %3016 = vmatprep.subr.mxu0 0.0
        %3017 = vmatpush1.msra.mxu0 0.0
        %3018 = vmatprep.subr.mxu0 0.0
        %3019 = vmatpush1.msra.mxu0 0.0
        %3020 = vmatprep.subr.mxu0 0.0
        %3021 = vmatpush1.msra.mxu0 0.0
        %3022 = vmatprep.subr.mxu0 0.0
        %3023 = vmatpush1.msra.mxu0 0.0
        %3024 = vmatprep.subr.mxu0 0.0
        %3025 = vmatpush1.msra.mxu0 0.0
        %3026 = vmatprep.subr.mxu0 0.0
        %3027 = vmatpush1.msra.mxu0 0.0
        %3028 = vmatprep.subr.mxu0 0.0
        %3029 = vmatpush1.msra.mxu0 0.0
        %3030 = vmatprep.subr.mxu0 0.0
        %3031 = vmatpush1.msra.mxu0 0.0
        %3032 = vmatprep.mubr.f32.mxu0 0.0
        %3033 = vmatmul.mubr.f32.gmra.mrb[0].mxu0 %v2966
        %v3034 = vpop.f32.mrb[0].mxu0
        %v3035 = vadd.f32 %v2964, %v3034
        %v3036 = vpop.f32.mrb[0].mxu0
        %3037 = vdwg.mxu0
        %v3038 = vmul.f32 %v3035, 0.5
        %v3039 = vmul.f32 %v3035, 0.70710677
        %v3040 = verf.f32.pop %v3039
        %v3041 = vadd.f32 %v3040, 1.0
        %v3042 = vmul.f32 %v3038, %v3041
        %v3043 = vld [vmem:[%s1 + $0x260] sm:$0xff]
        %v3044 = vld [vmem:[%s1 + $0x268] sm:$0xff]
        %v3045 = vld [vmem:[%s1 + $0x270] sm:$0xff]
        %v3046 = vld [vmem:[%s1 + $0x278] sm:$0xff]
        %v3047 = vld [vmem:[%s1 + $0x280] sm:$0xff]
        %v3048 = vld [vmem:[%s1 + $0x288] sm:$0xff]
        %v3049 = vld [vmem:[%s1 + $0x290] sm:$0xff]
        %v3050 = vld [vmem:[%s1 + $0x298] sm:$0xff]
        %v3051 = vld [vmem:[%s1 + $0x2a0] sm:$0xff]
        %v3052 = vld [vmem:[%s1 + $0x2a8] sm:$0xff]
        %v3053 = vld [vmem:[%s1 + $0x2b0] sm:$0xff]
        %v3054 = vld [vmem:[%s1 + $0x2b8] sm:$0xff]
        %v3055 = vld [vmem:[%s1 + $0x2c0] sm:$0xff]
        %v3056 = vld [vmem:[%s1 + $0x2c8] sm:$0xff]
        %v3057 = vld [vmem:[%s1 + $0x2d0] sm:$0xff]
        %v3058 = vld [vmem:[%s1 + $0x2d8] sm:$0xff]
        %3059 = vmatprep.subr.mxu0 0.0
        %3060 = vmatpush1.msra.mxu0 %v3043
        %3061 = vmatprep.subr.mxu0 0.0
        %3062 = vmatpush1.msra.mxu0 %v3044
        %3063 = vmatprep.subr.mxu0 0.0
        %3064 = vmatpush1.msra.mxu0 %v3045
        %3065 = vmatprep.subr.mxu0 0.0
        %3066 = vmatpush1.msra.mxu0 %v3046
        %3067 = vmatprep.subr.mxu0 0.0
        %3068 = vmatpush1.msra.mxu0 %v3047
        %3069 = vmatprep.subr.mxu0 0.0
        %3070 = vmatpush1.msra.mxu0 %v3048
        %3071 = vmatprep.subr.mxu0 0.0
        %3072 = vmatpush1.msra.mxu0 %v3049
        %3073 = vmatprep.subr.mxu0 0.0
        %3074 = vmatpush1.msra.mxu0 %v3050
        %3075 = vmatprep.subr.mxu0 0.0
        %3076 = vmatpush1.msra.mxu0 %v3051
        %3077 = vmatprep.subr.mxu0 0.0
        %3078 = vmatpush1.msra.mxu0 %v3052
        %3079 = vmatprep.subr.mxu0 0.0
        %3080 = vmatpush1.msra.mxu0 %v3053
        %3081 = vmatprep.subr.mxu0 0.0
        %3082 = vmatpush1.msra.mxu0 %v3054
        %3083 = vmatprep.subr.mxu0 0.0
        %3084 = vmatpush1.msra.mxu0 %v3055
        %3085 = vmatprep.subr.mxu0 0.0
        %3086 = vmatpush1.msra.mxu0 %v3056
        %3087 = vmatprep.subr.mxu0 0.0
        %3088 = vmatpush1.msra.mxu0 %v3057
        %3089 = vmatprep.subr.mxu0 0.0
        %3090 = vmatpush1.msra.mxu0 %v3058
        %3091 = vmatprep.subr.mxu0 0.0
        %3092 = vmatpush1.msra.mxu0 0.0
        %3093 = vmatprep.subr.mxu0 0.0
        %3094 = vmatpush1.msra.mxu0 0.0
        %3095 = vmatprep.subr.mxu0 0.0
        %3096 = vmatpush1.msra.mxu0 0.0
        %3097 = vmatprep.subr.mxu0 0.0
        %3098 = vmatpush1.msra.mxu0 0.0
        %3099 = vmatprep.subr.mxu0 0.0
        %3100 = vmatpush1.msra.mxu0 0.0
        %3101 = vmatprep.subr.mxu0 0.0
        %3102 = vmatpush1.msra.mxu0 0.0
        %3103 = vmatprep.subr.mxu0 0.0
        %3104 = vmatpush1.msra.mxu0 0.0
        %3105 = vmatprep.subr.mxu0 0.0
        %3106 = vmatpush1.msra.mxu0 0.0
        %3107 = vmatprep.subr.mxu0 0.0
        %3108 = vmatpush1.msra.mxu0 0.0
        %3109 = vmatprep.subr.mxu0 0.0
        %3110 = vmatpush1.msra.mxu0 0.0
        %3111 = vmatprep.subr.mxu0 0.0
        %3112 = vmatpush1.msra.mxu0 0.0
        %3113 = vmatprep.subr.mxu0 0.0
        %3114 = vmatpush1.msra.mxu0 0.0
        %3115 = vmatprep.subr.mxu0 0.0
        %3116 = vmatpush1.msra.mxu0 0.0
        %3117 = vmatprep.subr.mxu0 0.0
        %3118 = vmatpush1.msra.mxu0 0.0
        %3119 = vmatprep.subr.mxu0 0.0
        %3120 = vmatpush1.msra.mxu0 0.0
        %3121 = vmatprep.subr.mxu0 0.0
        %3122 = vmatpush1.msra.mxu0 0.0
        %3123 = vmatprep.mubr.f32.mxu0 0.0
        %3124 = vmatmul.mubr.f32.gmra.mrb[0].mxu0 %v3042
        %v3125 = vpop.f32.mrb[0].mxu0
        %v3126 = vadd.f32 0.0, %v3125
        %v3127 = vpop.f32.mrb[0].mxu0
        %3128 = vdwg.mxu0
        %v3129 = vadd.f32 %v2930, %v3126
        %v3130 = vld [vmem:[%s1 + $0x2e0] sm:$0x1]
        %v3131 = vlaneseq
        %v3132 = vshrl.u32 %v3131, 7
        %v3133 = vsub.s32 0, %v3132
        %v3134 = vrot.slane %v3130, %v3133
        %v3135 = vadd.f32 %v3129, %v3134
        %v3136 = vld [vmem:[%s1 + $0x2e8] sm:$0x1]
        %v3137 = vld [vmem:[%s1 + $0x2f0] sm:$0x1]
        %v3138 = vsel %vm344, %v3135, 0.0
        %3139 = vadd.xlane.f32.xlu0 %v3138
        %v3140 = vpop.xlane.xlu0 %3139
        %v3141 = vmul.f32 %v3140, %v587
        %v3142 = vsub.f32 %v3135, %v3141
        %v3143 = vmul.f32 %v3142, %v3142
        %v3144 = vsel %vm344, %v3143, 0.0
        %3145 = vadd.xlane.f32.xlu0 %v3144
        %v3146 = vpop.xlane.xlu0 %3145
        %v3147 = vmul.f32 %v3146, %v587
        %v3148 = vadd.f32 %v3147, 1e-05
        %v3149 = vrsqrt.pop %v3148
        %v3150 = vmul.f32 %v3142, %v3149
        %v3151 = vlaneseq
        %v3152 = vshrl.u32 %v3151, 7
        %v3153 = vsub.s32 0, %v3152
        %v3154 = vrot.slane %v3136, %v3153
        %v3155 = vmul.f32 %v3150, %v3154
        %v3156 = vlaneseq
        %v3157 = vshrl.u32 %v3156, 7
        %v3158 = vsub.s32 0, %v3157
        %v3159 = vrot.slane %v3137, %v3158
        %v3160 = vadd.f32 %v3155, %v3159
        %v3161 = vsel %vm344, %v3160, 0.0
        %v3162 = vrot.slane %v3161, 4
        %v3163 = vadd.f32 %v3161, %v3162
        %v3164 = vrot.slane %v3163, 2
        %v3165 = vadd.f32 %v3163, %v3164
        %v3166 = vrot.slane %v3165, 1
        %v3167 = vadd.f32 %v3165, %v3166
        %v3168 = vrcp.pop 8.0
        %v3169 = vmul.f32 %v3167, %v3168
        %v3170 = vld [vmem:[%s1 + $0x2f8] sm:$0xff]
        %v3171 = vld [vmem:[%s1 + $0x300] sm:$0xff]
        %v3172 = vld [vmem:[%s1 + $0x308] sm:$0xff]
        %v3173 = vld [vmem:[%s1 + $0x310] sm:$0xff]
        %v3174 = vld [vmem:[%s1 + $0x318] sm:$0x1]
        %v3176 = vsel %vm344, %v3169, 0
        %3178 = vmatprep.subr.mxu0 0.0
        %3179 = vmatpush1.msra.mxu0 %v3170
        %3180 = vmatprep.subr.mxu0 0.0
        %3181 = vmatpush1.msra.mxu0 %v3171
        %3182 = vmatprep.subr.mxu0 0.0
        %3183 = vmatpush1.msra.mxu0 %v3172
        %3184 = vmatprep.subr.mxu0 0.0
        %3185 = vmatpush1.msra.mxu0 %v3173
        %3186 = vmatprep.subr.mxu0 0.0
        %3187 = vmatpush1.msra.mxu0 0.0
        %3188 = vmatprep.subr.mxu0 0.0
        %3189 = vmatpush1.msra.mxu0 0.0
        %3190 = vmatprep.subr.mxu0 0.0
        %3191 = vmatpush1.msra.mxu0 0.0
        %3192 = vmatprep.subr.mxu0 0.0
        %3193 = vmatpush1.msra.mxu0 0.0
        %3194 = vmatprep.subr.mxu0 0.0
        %3195 = vmatpush1.msra.mxu0 0.0
        %3196 = vmatprep.subr.mxu0 0.0
        %3197 = vmatpush1.msra.mxu0 0.0
        %3198 = vmatprep.subr.mxu0 0.0
        %3199 = vmatpush1.msra.mxu0 0.0
        %3200 = vmatprep.subr.mxu0 0.0
        %3201 = vmatpush1.msra.mxu0 0.0
        %3202 = vmatprep.subr.mxu0 0.0
        %3203 = vmatpush1.msra.mxu0 0.0
        %3204 = vmatprep.subr.mxu0 0.0
        %3205 = vmatpush1.msra.mxu0 0.0
        %3206 = vmatprep.subr.mxu0 0.0
        %3207 = vmatpush1.msra.mxu0 0.0
        %3208 = vmatprep.subr.mxu0 0.0
        %3209 = vmatpush1.msra.mxu0 0.0
        %3210 = vmatprep.subr.mxu0 0.0
        %3211 = vmatpush1.msra.mxu0 0.0
        %3212 = vmatprep.subr.mxu0 0.0
        %3213 = vmatpush1.msra.mxu0 0.0
        %3214 = vmatprep.subr.mxu0 0.0
        %3215 = vmatpush1.msra.mxu0 0.0
        %3216 = vmatprep.subr.mxu0 0.0
        %3217 = vmatpush1.msra.mxu0 0.0
        %3218 = vmatprep.subr.mxu0 0.0
        %3219 = vmatpush1.msra.mxu0 0.0
        %3220 = vmatprep.subr.mxu0 0.0
        %3221 = vmatpush1.msra.mxu0 0.0
        %3222 = vmatprep.subr.mxu0 0.0
        %3223 = vmatpush1.msra.mxu0 0.0
        %3224 = vmatprep.subr.mxu0 0.0
        %3225 = vmatpush1.msra.mxu0 0.0
        %3226 = vmatprep.subr.mxu0 0.0
        %3227 = vmatpush1.msra.mxu0 0.0
        %3228 = vmatprep.subr.mxu0 0.0
        %3229 = vmatpush1.msra.mxu0 0.0
        %3230 = vmatprep.subr.mxu0 0.0
        %3231 = vmatpush1.msra.mxu0 0.0
        %3232 = vmatprep.subr.mxu0 0.0
        %3233 = vmatpush1.msra.mxu0 0.0
        %3234 = vmatprep.subr.mxu0 0.0
        %3235 = vmatpush1.msra.mxu0 0.0
        %3236 = vmatprep.subr.mxu0 0.0
        %3237 = vmatpush1.msra.mxu0 0.0
        %3238 = vmatprep.subr.mxu0 0.0
        %3239 = vmatpush1.msra.mxu0 0.0
        %3240 = vmatprep.subr.mxu0 0.0
        %3241 = vmatpush1.msra.mxu0 0.0
        %3242 = vmatprep.mubr.f32.mxu0 0.0
        %3243 = vmatmul.mubr.f32.gmra.mrb[0].mxu0 %v3176
        %v3244 = vpop.f32.mrb[0].mxu0
        %v3245 = vadd.f32 %v3174, %v3244
        %v3246 = vpop.f32.mrb[0].mxu0
        %3247 = vdwg.mxu0
        %vm3248 = vcmask 8192
        %3249 = vst.msk [vmem:[%s135] sm:$0x1] %vm3248, %v3245
        %s3250 = sand.u32 %s71, 1
        %s3251 = scalar_lea.sflag [#allocation3], %s3250
        %s3252 = sand.u32 %s71, 1
        %s3253 = scalar_lea.vmem [#allocation2], %s3252
        // Predicated region
        $region29: #{modified_whisper_forward.1} parent=27 // pred_check
          %p3254 = pneg %p81
        $region30: #{modified_whisper_forward.1} parent=27 // pred_check_branch
          %3256 = sbr.rel (%p3254) target = $region32
        $region31: #{modified_whisper_forward.1} parent=27 // pred_region
          %s3258 = ssub.s32 16, 16
          %3259 = vsyncadd %s3251, %s3258
          %s3260 = smul.addr %s16, 16
          %s3261 = scalar_lea.hbm %s2, %s3260
          %s3263 = sshll.u32 %s3253, 4
          %s3264 = int_to_ptr.vmem [resolvable:$true] %s3263
          %3266 = dma.vmem_to_hbm [thread:$0]  %s3264, 16, %s3261, %s3251
        $region32: #{modified_whisper_forward.1} parent=27 // pred_fallthru
          _
      $region28: #{modified_whisper_forward.1} parent=5 // pred_fallthru
        _
      %p3267 = scmp.le.s32.totalorder 2, %s11
      // Predicated region
      $region33: #{modified_whisper_forward.1} parent=5 // pred_check
        %p3268 = pneg %p3267
      $region34: #{modified_whisper_forward.1} parent=5 // pred_check_branch
        %3270 = sbr.rel (%p3268) target = $region36
      $region35: #{modified_whisper_forward.1} parent=5 // pred_region
        %s3271 = ssub.s32 %s11, 2
        // Predicated region
        $region37: #{modified_whisper_forward.1} parent=35 // pred_check
          %p3272 = pneg %p87
        $region38: #{modified_whisper_forward.1} parent=35 // pred_check_branch
          %3274 = sbr.rel (%p3272) target = $region40
        $region39: #{modified_whisper_forward.1} parent=35 // pred_region
          %s3275 = sand.u32 %s72, 1
          %s3276 = scalar_lea.sflag [#allocation3], %s3275
          %s3277 = sand.u32 %s72, 1
          %s3278 = scalar_lea.vmem [#allocation2], %s3277
          %3279 = dma.done %s3276, 16
        $region40: #{modified_whisper_forward.1} parent=35 // pred_fallthru
          _
      $region36: #{modified_whisper_forward.1} parent=5 // pred_fallthru
        _
    $region6: #{modified_whisper_forward.1} parent=1 // loop_footer
      %s15 = sadd.s32 1, %s11
    $region7: #{modified_whisper_forward.1} parent=1 // loop_footer_branch
      %10 = sbr.rel target = $region3
    $region8: #{modified_whisper_forward.1} parent=1 // loop_exit
      _
    %3280 = vsyncpa [#allocation3], 1
    %s3281 = scalar_lea.sflag [#allocation3], 1
    %3282 = vsyncpa %s3281, 1

</llo_original>
